<compile_context>
chip_gen: v7x
topology: tpu7x:2x2x1
jax: 0.10.0
libtpu: 0.0.40
codegen_flags: <defaults>
</compile_context>

<pallas_src>
import jax
import jax.numpy as jnp
from jax import lax
from jax.experimental import pallas as pl
from jax.experimental.pallas import tpu as pltpu


# ----------------------------- Pallas kernel ------------------------------- #

def _sfi_fused_kernel(x_ref, w1_ref, w2_ref, gb_ref, o_ref,
                      xp_ref, f0p_ref, p25_ref, p9_ref, sum_ref, ssq_ref):
    """Fused FirstSFIConvBR forward for one batch element per grid step.

    x_ref  : (1, H, W, Cin)          input image (NHWC block)
    w1_ref : (25*Cin, Cin + c_s)     [block-diag depthwise | s2s 3x3 embedded in 5x5]
    w2_ref : (9*Cin, c_f)            f2f 3x3 im2col weight
    gb_ref : (C_tot, 2)              column 0 = gamma, column 1 = beta
    o_ref  : (N, C_tot, H*W)         resident output slab (lane-dense, NCHW-ready)
    """
    n = pl.program_id(0)
    last = pl.num_programs(0) - 1
    _, H, W, Cin = x_ref.shape
    HW = H * W
    n_total = o_ref.shape[0]

    @pl.when(n == 0)
    def _init():
        # Zero the padded scratch rings and BN accumulators once; interiors are
        # overwritten every step, borders stay zero across the whole grid.
        xp_ref[...] = jnp.zeros_like(xp_ref)
        f0p_ref[...] = jnp.zeros_like(f0p_ref)
        sum_ref[...] = jnp.zeros_like(sum_ref)
        ssq_ref[...] = jnp.zeros_like(ssq_ref)

    # -- padding folded into the kernel: drop the image inside the zero ring --
    xp_ref[2:2 + H, 2:2 + W, :] = x_ref[0]

    # -- 5x5 im2col patches built in VMEM (bf16 MXU operands) -----------------
    for kh in range(5):
        for kw in range(5):
            t = kh * 5 + kw
            patch = xp_ref[kh:kh + H, kw:kw + W, :].reshape(HW, Cin)
            p25_ref[:, t * Cin:(t + 1) * Cin] = patch.astype(p25_ref.dtype)

    # -- one MXU pass: cols [0:Cin] = MCSConv depthwise output,
    #                  cols [Cin:]  = s2s 3x3 conv (taps embedded in 5x5 window)
    y1 = jnp.dot(p25_ref[...], w1_ref[...], preferred_element_type=jnp.float32)
    f0 = y1[:, :Cin]                       # (HW, Cin) depthwise output
    y_s = y1[:, Cin:]                      # (HW, c_s)

    # -- depthwise output into its own zero ring.  (The f2f conv pads the
    #    INTERMEDIATE, so folding the two convs into one 7x7 would be wrong at
    #    the image border; the explicit zero ring keeps exact semantics.) ------
    f0p_ref[1:1 + H, 1:1 + W, :] = f0.reshape(H, W, Cin)

    # -- 3x3 im2col over the depthwise output, second MXU pass ----------------
    for kh in range(3):
        for kw in range(3):
            t = kh * 3 + kw
            patch = f0p_ref[kh:kh + H, kw:kw + W, :].reshape(HW, Cin)
            p9_ref[:, t * Cin:(t + 1) * Cin] = patch.astype(p9_ref.dtype)
    y_f = jnp.dot(p9_ref[...], w2_ref[...], preferred_element_type=jnp.float32)

    # -- lane-dense (C_tot, HW) layout; accumulate BN batch statistics (f32) --
    y = jnp.concatenate([y_s, y_f], axis=-1)          # (HW, C_tot) f32
    yt = jnp.transpose(y, (1, 0))                     # (C_tot, HW): lanes = HW
    sum_ref[...] += jnp.sum(yt, axis=1, keepdims=True)
    ssq_ref[...] += jnp.sum(yt * yt, axis=1, keepdims=True)
    o_ref[pl.ds(n, 1), :, :] = yt[None]

    # -- last step: finalize BatchNorm (biased batch variance) + ReLU over the
    #    VMEM-resident output slab; it is written back to HBM once at the end --
    @pl.when(n == last)
    def _finalize():
        count = jnp.float32(n_total * HW)
        mean = sum_ref[...] / count                       # (C_tot, 1)
        var = ssq_ref[...] / count - mean * mean          # single-pass, f32 accum
        inv = lax.rsqrt(var + 1e-5)
        scale = gb_ref[:, 0:1] * inv                      # gamma / sqrt(var+eps)
        shift = gb_ref[:, 1:2] - mean * scale
        yall = o_ref[...]                                 # (N, C_tot, HW)
        o_ref[...] = jnp.maximum(yall * scale[None] + shift[None],
                                 0.0).astype(o_ref.dtype)


# ------------------------------ JAX wrappers -------------------------------- #

def _prepare_weights(w_s2s, w_f2f, w_mcs):
    """Trace-time (tiny) weight re-layout into the two im2col matrices."""
    c_s, cin = w_s2s.shape[0], w_s2s.shape[1]
    c_f = w_f2f.shape[0]
    # Block-diagonal depthwise matrix: row (t*Cin + ci), col ci = dw[ci, kh, kw].
    dw = jnp.transpose(w_mcs[:, 0, :, :], (1, 2, 0)).reshape(25, cin)   # (25, Cin)
    dw_bd = dw[:, :, None] * jnp.eye(cin, dtype=jnp.float32)[None]      # (25, Cin, Cin)
    w_dw = dw_bd.reshape(25 * cin, cin)
    # s2s 3x3 taps embedded at offset (+1,+1) inside the 5x5 tap window.
    ws_emb = jnp.zeros((5, 5, cin, c_s), jnp.float32)
    ws_emb = ws_emb.at[1:4, 1:4].set(jnp.transpose(w_s2s, (2, 3, 1, 0)))
    w1 = jnp.concatenate([w_dw, ws_emb.reshape(25 * cin, c_s)], axis=1)
    # f2f 3x3 im2col weight (tap-major, cin-minor rows).
    w2 = jnp.transpose(w_f2f, (2, 3, 1, 0)).reshape(9 * cin, c_f)
    return w1.astype(jnp.bfloat16), w2.astype(jnp.bfloat16)


def first_sfi_conv_br(x_nchw, w_s2s, w_f2f, w_mcs, g_s, b_s, g_f, b_f):
    """FirstSFIConvBR forward (stride=1).  Returns (x_s, x_f) in NCHW."""
    N, Cin, H, W = x_nchw.shape
    c_s, c_f = w_s2s.shape[0], w_f2f.shape[0]
    c_tot = c_s + c_f
    HW = H * W

    x = jnp.transpose(x_nchw, (0, 2, 3, 1))          # NCHW -> NHWC (channels minor)
    w1, w2 = _prepare_weights(w_s2s, w_f2f, w_mcs)
    gb = jnp.stack([jnp.concatenate([g_s, g_f]),
                    jnp.concatenate([b_s, b_f])], axis=1).astype(jnp.float32)

    # TODO(synk): for very large H*W the per-image patch scratch should be
    # H-tiled (with a 3-row halo) instead of whole-image; not needed here.
    out = pl.pallas_call(
        _sfi_fused_kernel,
        out_shape=jax.ShapeDtypeStruct((N, c_tot, HW), x.dtype),
        grid_spec=pltpu.PrefetchScalarGridSpec(
            num_scalar_prefetch=0,
            grid=(N,),
            in_specs=[
                pl.BlockSpec((1, H, W, Cin), lambda n: (n, 0, 0, 0)),
                pl.BlockSpec((25 * Cin, Cin + c_s), lambda n: (0, 0)),
                pl.BlockSpec((9 * Cin, c_f), lambda n: (0, 0)),
                pl.BlockSpec((c_tot, 2), lambda n: (0, 0)),
            ],
            # Resident output (same block every step) so the deferred BN/ReLU
            # finalization touches all rows; written back to HBM exactly once.
            out_specs=pl.BlockSpec((N, c_tot, HW), lambda n: (0, 0, 0)),
            scratch_shapes=[
                pltpu.VMEM((H + 4, W + 4, Cin), jnp.float32),   # zero-padded input
                pltpu.VMEM((H + 2, W + 2, Cin), jnp.float32),   # zero-padded depthwise out
                pltpu.VMEM((HW, 25 * Cin), jnp.bfloat16),       # 5x5 im2col patches
                pltpu.VMEM((HW, 9 * Cin), jnp.bfloat16),        # 3x3 im2col patches
                pltpu.VMEM((c_tot, 1), jnp.float32),            # BN sum
                pltpu.VMEM((c_tot, 1), jnp.float32),            # BN sum of squares
            ],
        ),
        compiler_params=pltpu.CompilerParams(
            # The batch axis carries BN statistics + the resident output, so it
            # must be sequential.  TODO(synk): for v7x megacore, compute per-core
            # partial stats + a cheap second normalization pass so this axis can
            # be marked "parallel".
            dimension_semantics=("arbitrary",),
        ),
    )(x, w1, w2, gb)

    out = out.reshape(N, c_tot, H, W)                # already NCHW: no transpose
    return out[:, :c_s], out[:, c_s:]


# ------------------------------ pure-JAX reference --------------------------- #

def _reference(x, w_s2s, w_f2f, w_mcs, g_s, b_s, g_f, b_f):
    dn = ("NCHW", "OIHW", "NCHW")
    cin = x.shape[1]
    hp = lax.Precision.HIGHEST
    xs = lax.conv_general_dilated(x, w_s2s, (1, 1), ((1, 1), (1, 1)),
                                  dimension_numbers=dn, precision=hp)
    xf0 = lax.conv_general_dilated(x, w_mcs, (1, 1), ((2, 2), (2, 2)),
                                   dimension_numbers=dn, feature_group_count=cin,
                                   precision=hp)
    xf = lax.conv_general_dilated(xf0, w_f2f, (1, 1), ((1, 1), (1, 1)),
                                  dimension_numbers=dn, precision=hp)

    def bn_relu(z, g, b):
        m = z.mean(axis=(0, 2, 3), keepdims=True)
        v = ((z - m) ** 2).mean(axis=(0, 2, 3), keepdims=True)
        y = (z - m) * lax.rsqrt(v + 1e-5) * g.reshape(1, -1, 1, 1) + b.reshape(1, -1, 1, 1)
        return jnp.maximum(y, 0.0)

    return bn_relu(xs, g_s, b_s), bn_relu(xf, g_f, b_f)


# ---------------------------------- main ------------------------------------ #

if __name__ == "__main__":
    N, Cin, H, W = 2, 4, 16, 16
    out_channels, alpha = 8, 0.5
    c_f = int(alpha * out_channels)            # 4
    c_s = out_channels - c_f                   # 4

    key = jax.random.PRNGKey(0)
    k_x, k_s, k_f, k_m = jax.random.split(key, 4)

    x = jax.random.normal(k_x, (N, Cin, H, W), jnp.float32)
    w_s2s = 0.1 * jax.random.normal(k_s, (c_s, Cin, 3, 3), jnp.float32)
    w_f2f = 0.1 * jax.random.normal(k_f, (c_f, Cin, 3, 3), jnp.float32)

    # MCSConv constrained weight construction (matches the PyTorch __init__):
    w_mcs = jax.random.normal(k_m, (Cin, 1, 5, 5), jnp.float32)
    central = w_mcs[:, 0, 2, 2]
    summed = w_mcs.sum(axis=(1, 2, 3)) - central
    w_mcs = w_mcs / summed[:, None, None, None]
    w_mcs = w_mcs.at[:, 0, 2, 2].set(-1.0)
    # TODO(synk): MCSConv also defines a bias parameter, but forward() never uses it.

    g_s, b_s = jnp.ones((c_s,), jnp.float32), jnp.zeros((c_s,), jnp.float32)
    g_f, b_f = jnp.ones((c_f,), jnp.float32), jnp.zeros((c_f,), jnp.float32)

    x_s, x_f = first_sfi_conv_br(x, w_s2s, w_f2f, w_mcs, g_s, b_s, g_f, b_f)
    jax.block_until_ready((x_s, x_f))

    xs_ref, xf_ref = _reference(x, w_s2s, w_f2f, w_mcs, g_s, b_s, g_f, b_f)
    assert x_s.shape == (N, c_s, H, W) and x_f.shape == (N, c_f, H, W)
    # Tolerance accounts for bf16 MXU operands (f32 accumulation / f32 epilogue).
    assert jnp.allclose(x_s, xs_ref, atol=2e-2, rtol=2e-2)
    assert jnp.allclose(x_f, xf_ref, atol=2e-2, rtol=2e-2)

    print("KERNEL_OK")
</pallas_src>

<mosaic_0001>
module attributes {stable_mosaic.version = 11 : i64} {
  func.func @_sfi_fused_kernel(%arg0: i32, %arg1: memref<1x16x16x4xf32, #tpu.memory_space<vmem>>, %arg2: memref<100x8xbf16, #tpu.memory_space<vmem>>, %arg3: memref<36x4xbf16, #tpu.memory_space<vmem>>, %arg4: memref<8x2xf32, #tpu.memory_space<vmem>>, %arg5: memref<2x8x256xf32, #tpu.memory_space<vmem>>, %arg6: memref<20x20x4xf32, #tpu.memory_space<vmem>>, %arg7: memref<18x18x4xf32, #tpu.memory_space<vmem>>, %arg8: memref<256x100xbf16, #tpu.memory_space<vmem>>, %arg9: memref<256x36xbf16, #tpu.memory_space<vmem>>, %arg10: memref<8x1xf32, #tpu.memory_space<vmem>>, %arg11: memref<8x1xf32, #tpu.memory_space<vmem>>) attributes {dimension_semantics = [#tpu.dimension_semantics<arbitrary>], iteration_bounds = array<i64: 2>, scalar_prefetch = 0 : i64, scratch_operands = 6 : i64, tpu.core_type = #tpu.core_type<tc>, window_params = [{transform_indices = @transform_0, window_bounds = array<i64: 1, 16, 16, 4>}, {pipeline_mode = #tpu.pipeline_mode<synchronous>, transform_indices = @transform_1, window_bounds = array<i64: 100, 8>}, {pipeline_mode = #tpu.pipeline_mode<synchronous>, transform_indices = @transform_2, window_bounds = array<i64: 36, 4>}, {pipeline_mode = #tpu.pipeline_mode<synchronous>, transform_indices = @transform_3, window_bounds = array<i64: 8, 2>}, {pipeline_mode = #tpu.pipeline_mode<synchronous>, transform_indices = @transform_4, window_bounds = array<i64: 2, 8, 256>}]} {
    %c0_i32 = arith.constant 0 : i32
    %0 = arith.cmpi eq, %arg0, %c0_i32 : i32
    %1 = arith.extui %0 : i1 to i32
    %c0_i32_0 = arith.constant 0 : i32
    %2 = arith.cmpi ne, %1, %c0_i32_0 : i32
    scf.if %2 {
      %cst_175 = arith.constant 0.000000e+00 : f32
      %171 = vector.broadcast %cst_175 : f32 to vector<20x20x4xf32>
      %c0_176 = arith.constant 0 : index
      %c0_177 = arith.constant 0 : index
      %c0_178 = arith.constant 0 : index
      %172 = vector.load %arg6[%c0_176, %c0_177, %c0_178] : memref<20x20x4xf32, #tpu.memory_space<vmem>>, vector<20x20x4xf32>
      tpu.vector_store %arg6[%c0_176, %c0_177, %c0_178], %171 {strides = array<i32>} : memref<20x20x4xf32, #tpu.memory_space<vmem>>, vector<20x20x4xf32>,
      %cst_179 = arith.constant 0.000000e+00 : f32
      %173 = vector.broadcast %cst_179 : f32 to vector<18x18x4xf32>
      %c0_180 = arith.constant 0 : index
      %c0_181 = arith.constant 0 : index
      %c0_182 = arith.constant 0 : index
      %174 = vector.load %arg7[%c0_180, %c0_181, %c0_182] : memref<18x18x4xf32, #tpu.memory_space<vmem>>, vector<18x18x4xf32>
      tpu.vector_store %arg7[%c0_180, %c0_181, %c0_182], %173 {strides = array<i32>} : memref<18x18x4xf32, #tpu.memory_space<vmem>>, vector<18x18x4xf32>,
      %cst_183 = arith.constant 0.000000e+00 : f32
      %175 = vector.broadcast %cst_183 : f32 to vector<8x1xf32>
      %c0_184 = arith.constant 0 : index
      %c0_185 = arith.constant 0 : index
      %176 = vector.load %arg10[%c0_184, %c0_185] : memref<8x1xf32, #tpu.memory_space<vmem>>, vector<8x1xf32>
      tpu.vector_store %arg10[%c0_184, %c0_185], %175 {strides = array<i32>} : memref<8x1xf32, #tpu.memory_space<vmem>>, vector<8x1xf32>,
      %cst_186 = arith.constant 0.000000e+00 : f32
      %177 = vector.broadcast %cst_186 : f32 to vector<8x1xf32>
      %c0_187 = arith.constant 0 : index
      %c0_188 = arith.constant 0 : index
      %178 = vector.load %arg11[%c0_187, %c0_188] : memref<8x1xf32, #tpu.memory_space<vmem>>, vector<8x1xf32>
      tpu.vector_store %arg11[%c0_187, %c0_188], %177 {strides = array<i32>} : memref<8x1xf32, #tpu.memory_space<vmem>>, vector<8x1xf32>,
    } else {
    }
    %c0 = arith.constant 0 : index
    %c0_1 = arith.constant 0 : index
    %c0_2 = arith.constant 0 : index
    %c0_3 = arith.constant 0 : index
    %3 = vector.load %arg1[%c0, %c0_1, %c0_2, %c0_3] : memref<1x16x16x4xf32, #tpu.memory_space<vmem>>, vector<1x16x16x4xf32>
    %4 = vector.shape_cast %3 : vector<1x16x16x4xf32> to vector<16x16x4xf32>
    %c2 = arith.constant 2 : index
    %c2_4 = arith.constant 2 : index
    %c0_5 = arith.constant 0 : index
    %5 = vector.load %arg6[%c2, %c2_4, %c0_5] : memref<20x20x4xf32, #tpu.memory_space<vmem>>, vector<16x16x4xf32>
    tpu.vector_store %arg6[%c2, %c2_4, %c0_5], %4 {strides = array<i32>} : memref<20x20x4xf32, #tpu.memory_space<vmem>>, vector<16x16x4xf32>,
    %c0_6 = arith.constant 0 : index
    %c0_7 = arith.constant 0 : index
    %c0_8 = arith.constant 0 : index
    %6 = vector.load %arg6[%c0_6, %c0_7, %c0_8] : memref<20x20x4xf32, #tpu.memory_space<vmem>>, vector<16x16x4xf32>
    %7 = vector.shape_cast %6 : vector<16x16x4xf32> to vector<256x4xf32>
    %8 = arith.truncf %7 : vector<256x4xf32> to vector<256x4xbf16>
    %c0_9 = arith.constant 0 : index
    %c0_10 = arith.constant 0 : index
    %9 = vector.load %arg8[%c0_9, %c0_10] : memref<256x100xbf16, #tpu.memory_space<vmem>>, vector<256x4xbf16>
    tpu.vector_store %arg8[%c0_9, %c0_10], %8 {strides = array<i32>} : memref<256x100xbf16, #tpu.memory_space<vmem>>, vector<256x4xbf16>,
    %c0_11 = arith.constant 0 : index
    %c1 = arith.constant 1 : index
    %c0_12 = arith.constant 0 : index
    %10 = vector.load %arg6[%c0_11, %c1, %c0_12] : memref<20x20x4xf32, #tpu.memory_space<vmem>>, vector<16x16x4xf32>
    %11 = vector.shape_cast %10 : vector<16x16x4xf32> to vector<256x4xf32>
    %12 = arith.truncf %11 : vector<256x4xf32> to vector<256x4xbf16>
    %c0_13 = arith.constant 0 : index
    %c4 = arith.constant 4 : index
    %13 = vector.load %arg8[%c0_13, %c4] : memref<256x100xbf16, #tpu.memory_space<vmem>>, vector<256x4xbf16>
    tpu.vector_store %arg8[%c0_13, %c4], %12 {strides = array<i32>} : memref<256x100xbf16, #tpu.memory_space<vmem>>, vector<256x4xbf16>,
    %c0_14 = arith.constant 0 : index
    %c2_15 = arith.constant 2 : index
    %c0_16 = arith.constant 0 : index
    %14 = vector.load %arg6[%c0_14, %c2_15, %c0_16] : memref<20x20x4xf32, #tpu.memory_space<vmem>>, vector<16x16x4xf32>
    %15 = vector.shape_cast %14 : vector<16x16x4xf32> to vector<256x4xf32>
    %16 = arith.truncf %15 : vector<256x4xf32> to vector<256x4xbf16>
    %c0_17 = arith.constant 0 : index
    %c8 = arith.constant 8 : index
    %17 = vector.load %arg8[%c0_17, %c8] : memref<256x100xbf16, #tpu.memory_space<vmem>>, vector<256x4xbf16>
    tpu.vector_store %arg8[%c0_17, %c8], %16 {strides = array<i32>} : memref<256x100xbf16, #tpu.memory_space<vmem>>, vector<256x4xbf16>,
    %c0_18 = arith.constant 0 : index
    %c3 = arith.constant 3 : index
    %c0_19 = arith.constant 0 : index
    %18 = vector.load %arg6[%c0_18, %c3, %c0_19] : memref<20x20x4xf32, #tpu.memory_space<vmem>>, vector<16x16x4xf32>
    %19 = vector.shape_cast %18 : vector<16x16x4xf32> to vector<256x4xf32>
    %20 = arith.truncf %19 : vector<256x4xf32> to vector<256x4xbf16>
    %c0_20 = arith.constant 0 : index
    %c12 = arith.constant 12 : index
    %21 = vector.load %arg8[%c0_20, %c12] : memref<256x100xbf16, #tpu.memory_space<vmem>>, vector<256x4xbf16>
    tpu.vector_store %arg8[%c0_20, %c12], %20 {strides = array<i32>} : memref<256x100xbf16, #tpu.memory_space<vmem>>, vector<256x4xbf16>,
    %c0_21 = arith.constant 0 : index
    %c4_22 = arith.constant 4 : index
    %c0_23 = arith.constant 0 : index
    %22 = vector.load %arg6[%c0_21, %c4_22, %c0_23] : memref<20x20x4xf32, #tpu.memory_space<vmem>>, vector<16x16x4xf32>
    %23 = vector.shape_cast %22 : vector<16x16x4xf32> to vector<256x4xf32>
    %24 = arith.truncf %23 : vector<256x4xf32> to vector<256x4xbf16>
    %c0_24 = arith.constant 0 : index
    %c16 = arith.constant 16 : index
    %25 = vector.load %arg8[%c0_24, %c16] : memref<256x100xbf16, #tpu.memory_space<vmem>>, vector<256x4xbf16>
    tpu.vector_store %arg8[%c0_24, %c16], %24 {strides = array<i32>} : memref<256x100xbf16, #tpu.memory_space<vmem>>, vector<256x4xbf16>,
    %c1_25 = arith.constant 1 : index
    %c0_26 = arith.constant 0 : index
    %c0_27 = arith.constant 0 : index
    %26 = vector.load %arg6[%c1_25, %c0_26, %c0_27] : memref<20x20x4xf32, #tpu.memory_space<vmem>>, vector<16x16x4xf32>
    %27 = vector.shape_cast %26 : vector<16x16x4xf32> to vector<256x4xf32>
    %28 = arith.truncf %27 : vector<256x4xf32> to vector<256x4xbf16>
    %c0_28 = arith.constant 0 : index
    %c20 = arith.constant 20 : index
    %29 = vector.load %arg8[%c0_28, %c20] : memref<256x100xbf16, #tpu.memory_space<vmem>>, vector<256x4xbf16>
    tpu.vector_store %arg8[%c0_28, %c20], %28 {strides = array<i32>} : memref<256x100xbf16, #tpu.memory_space<vmem>>, vector<256x4xbf16>,
    %c1_29 = arith.constant 1 : index
    %c1_30 = arith.constant 1 : index
    %c0_31 = arith.constant 0 : index
    %30 = vector.load %arg6[%c1_29, %c1_30, %c0_31] : memref<20x20x4xf32, #tpu.memory_space<vmem>>, vector<16x16x4xf32>
    %31 = vector.shape_cast %30 : vector<16x16x4xf32> to vector<256x4xf32>
    %32 = arith.truncf %31 : vector<256x4xf32> to vector<256x4xbf16>
    %c0_32 = arith.constant 0 : index
    %c24 = arith.constant 24 : index
    %33 = vector.load %arg8[%c0_32, %c24] : memref<256x100xbf16, #tpu.memory_space<vmem>>, vector<256x4xbf16>
    tpu.vector_store %arg8[%c0_32, %c24], %32 {strides = array<i32>} : memref<256x100xbf16, #tpu.memory_space<vmem>>, vector<256x4xbf16>,
    %c1_33 = arith.constant 1 : index
    %c2_34 = arith.constant 2 : index
    %c0_35 = arith.constant 0 : index
    %34 = vector.load %arg6[%c1_33, %c2_34, %c0_35] : memref<20x20x4xf32, #tpu.memory_space<vmem>>, vector<16x16x4xf32>
    %35 = vector.shape_cast %34 : vector<16x16x4xf32> to vector<256x4xf32>
    %36 = arith.truncf %35 : vector<256x4xf32> to vector<256x4xbf16>
    %c0_36 = arith.constant 0 : index
    %c28 = arith.constant 28 : index
    %37 = vector.load %arg8[%c0_36, %c28] : memref<256x100xbf16, #tpu.memory_space<vmem>>, vector<256x4xbf16>
    tpu.vector_store %arg8[%c0_36, %c28], %36 {strides = array<i32>} : memref<256x100xbf16, #tpu.memory_space<vmem>>, vector<256x4xbf16>,
    %c1_37 = arith.constant 1 : index
    %c3_38 = arith.constant 3 : index
    %c0_39 = arith.constant 0 : index
    %38 = vector.load %arg6[%c1_37, %c3_38, %c0_39] : memref<20x20x4xf32, #tpu.memory_space<vmem>>, vector<16x16x4xf32>
    %39 = vector.shape_cast %38 : vector<16x16x4xf32> to vector<256x4xf32>
    %40 = arith.truncf %39 : vector<256x4xf32> to vector<256x4xbf16>
    %c0_40 = arith.constant 0 : index
    %c32 = arith.constant 32 : index
    %41 = vector.load %arg8[%c0_40, %c32] : memref<256x100xbf16, #tpu.memory_space<vmem>>, vector<256x4xbf16>
    tpu.vector_store %arg8[%c0_40, %c32], %40 {strides = array<i32>} : memref<256x100xbf16, #tpu.memory_space<vmem>>, vector<256x4xbf16>,
    %c1_41 = arith.constant 1 : index
    %c4_42 = arith.constant 4 : index
    %c0_43 = arith.constant 0 : index
    %42 = vector.load %arg6[%c1_41, %c4_42, %c0_43] : memref<20x20x4xf32, #tpu.memory_space<vmem>>, vector<16x16x4xf32>
    %43 = vector.shape_cast %42 : vector<16x16x4xf32> to vector<256x4xf32>
    %44 = arith.truncf %43 : vector<256x4xf32> to vector<256x4xbf16>
    %c0_44 = arith.constant 0 : index
    %c36 = arith.constant 36 : index
    %45 = vector.load %arg8[%c0_44, %c36] : memref<256x100xbf16, #tpu.memory_space<vmem>>, vector<256x4xbf16>
    tpu.vector_store %arg8[%c0_44, %c36], %44 {strides = array<i32>} : memref<256x100xbf16, #tpu.memory_space<vmem>>, vector<256x4xbf16>,
    %c2_45 = arith.constant 2 : index
    %c0_46 = arith.constant 0 : index
    %c0_47 = arith.constant 0 : index
    %46 = vector.load %arg6[%c2_45, %c0_46, %c0_47] : memref<20x20x4xf32, #tpu.memory_space<vmem>>, vector<16x16x4xf32>
    %47 = vector.shape_cast %46 : vector<16x16x4xf32> to vector<256x4xf32>
    %48 = arith.truncf %47 : vector<256x4xf32> to vector<256x4xbf16>
    %c0_48 = arith.constant 0 : index
    %c40 = arith.constant 40 : index
    %49 = vector.load %arg8[%c0_48, %c40] : memref<256x100xbf16, #tpu.memory_space<vmem>>, vector<256x4xbf16>
    tpu.vector_store %arg8[%c0_48, %c40], %48 {strides = array<i32>} : memref<256x100xbf16, #tpu.memory_space<vmem>>, vector<256x4xbf16>,
    %c2_49 = arith.constant 2 : index
    %c1_50 = arith.constant 1 : index
    %c0_51 = arith.constant 0 : index
    %50 = vector.load %arg6[%c2_49, %c1_50, %c0_51] : memref<20x20x4xf32, #tpu.memory_space<vmem>>, vector<16x16x4xf32>
    %51 = vector.shape_cast %50 : vector<16x16x4xf32> to vector<256x4xf32>
    %52 = arith.truncf %51 : vector<256x4xf32> to vector<256x4xbf16>
    %c0_52 = arith.constant 0 : index
    %c44 = arith.constant 44 : index
    %53 = vector.load %arg8[%c0_52, %c44] : memref<256x100xbf16, #tpu.memory_space<vmem>>, vector<256x4xbf16>
    tpu.vector_store %arg8[%c0_52, %c44], %52 {strides = array<i32>} : memref<256x100xbf16, #tpu.memory_space<vmem>>, vector<256x4xbf16>,
    %c2_53 = arith.constant 2 : index
    %c2_54 = arith.constant 2 : index
    %c0_55 = arith.constant 0 : index
    %54 = vector.load %arg6[%c2_53, %c2_54, %c0_55] : memref<20x20x4xf32, #tpu.memory_space<vmem>>, vector<16x16x4xf32>
    %55 = vector.shape_cast %54 : vector<16x16x4xf32> to vector<256x4xf32>
    %56 = arith.truncf %55 : vector<256x4xf32> to vector<256x4xbf16>
    %c0_56 = arith.constant 0 : index
    %c48 = arith.constant 48 : index
    %57 = vector.load %arg8[%c0_56, %c48] : memref<256x100xbf16, #tpu.memory_space<vmem>>, vector<256x4xbf16>
    tpu.vector_store %arg8[%c0_56, %c48], %56 {strides = array<i32>} : memref<256x100xbf16, #tpu.memory_space<vmem>>, vector<256x4xbf16>,
    %c2_57 = arith.constant 2 : index
    %c3_58 = arith.constant 3 : index
    %c0_59 = arith.constant 0 : index
    %58 = vector.load %arg6[%c2_57, %c3_58, %c0_59] : memref<20x20x4xf32, #tpu.memory_space<vmem>>, vector<16x16x4xf32>
    %59 = vector.shape_cast %58 : vector<16x16x4xf32> to vector<256x4xf32>
    %60 = arith.truncf %59 : vector<256x4xf32> to vector<256x4xbf16>
    %c0_60 = arith.constant 0 : index
    %c52 = arith.constant 52 : index
    %61 = vector.load %arg8[%c0_60, %c52] : memref<256x100xbf16, #tpu.memory_space<vmem>>, vector<256x4xbf16>
    tpu.vector_store %arg8[%c0_60, %c52], %60 {strides = array<i32>} : memref<256x100xbf16, #tpu.memory_space<vmem>>, vector<256x4xbf16>,
    %c2_61 = arith.constant 2 : index
    %c4_62 = arith.constant 4 : index
    %c0_63 = arith.constant 0 : index
    %62 = vector.load %arg6[%c2_61, %c4_62, %c0_63] : memref<20x20x4xf32, #tpu.memory_space<vmem>>, vector<16x16x4xf32>
    %63 = vector.shape_cast %62 : vector<16x16x4xf32> to vector<256x4xf32>
    %64 = arith.truncf %63 : vector<256x4xf32> to vector<256x4xbf16>
    %c0_64 = arith.constant 0 : index
    %c56 = arith.constant 56 : index
    %65 = vector.load %arg8[%c0_64, %c56] : memref<256x100xbf16, #tpu.memory_space<vmem>>, vector<256x4xbf16>
    tpu.vector_store %arg8[%c0_64, %c56], %64 {strides = array<i32>} : memref<256x100xbf16, #tpu.memory_space<vmem>>, vector<256x4xbf16>,
    %c3_65 = arith.constant 3 : index
    %c0_66 = arith.constant 0 : index
    %c0_67 = arith.constant 0 : index
    %66 = vector.load %arg6[%c3_65, %c0_66, %c0_67] : memref<20x20x4xf32, #tpu.memory_space<vmem>>, vector<16x16x4xf32>
    %67 = vector.shape_cast %66 : vector<16x16x4xf32> to vector<256x4xf32>
    %68 = arith.truncf %67 : vector<256x4xf32> to vector<256x4xbf16>
    %c0_68 = arith.constant 0 : index
    %c60 = arith.constant 60 : index
    %69 = vector.load %arg8[%c0_68, %c60] : memref<256x100xbf16, #tpu.memory_space<vmem>>, vector<256x4xbf16>
    tpu.vector_store %arg8[%c0_68, %c60], %68 {strides = array<i32>} : memref<256x100xbf16, #tpu.memory_space<vmem>>, vector<256x4xbf16>,
    %c3_69 = arith.constant 3 : index
    %c1_70 = arith.constant 1 : index
    %c0_71 = arith.constant 0 : index
    %70 = vector.load %arg6[%c3_69, %c1_70, %c0_71] : memref<20x20x4xf32, #tpu.memory_space<vmem>>, vector<16x16x4xf32>
    %71 = vector.shape_cast %70 : vector<16x16x4xf32> to vector<256x4xf32>
    %72 = arith.truncf %71 : vector<256x4xf32> to vector<256x4xbf16>
    %c0_72 = arith.constant 0 : index
    %c64 = arith.constant 64 : index
    %73 = vector.load %arg8[%c0_72, %c64] : memref<256x100xbf16, #tpu.memory_space<vmem>>, vector<256x4xbf16>
    tpu.vector_store %arg8[%c0_72, %c64], %72 {strides = array<i32>} : memref<256x100xbf16, #tpu.memory_space<vmem>>, vector<256x4xbf16>,
    %c3_73 = arith.constant 3 : index
    %c2_74 = arith.constant 2 : index
    %c0_75 = arith.constant 0 : index
    %74 = vector.load %arg6[%c3_73, %c2_74, %c0_75] : memref<20x20x4xf32, #tpu.memory_space<vmem>>, vector<16x16x4xf32>
    %75 = vector.shape_cast %74 : vector<16x16x4xf32> to vector<256x4xf32>
    %76 = arith.truncf %75 : vector<256x4xf32> to vector<256x4xbf16>
    %c0_76 = arith.constant 0 : index
    %c68 = arith.constant 68 : index
    %77 = vector.load %arg8[%c0_76, %c68] : memref<256x100xbf16, #tpu.memory_space<vmem>>, vector<256x4xbf16>
    tpu.vector_store %arg8[%c0_76, %c68], %76 {strides = array<i32>} : memref<256x100xbf16, #tpu.memory_space<vmem>>, vector<256x4xbf16>,
    %c3_77 = arith.constant 3 : index
    %c3_78 = arith.constant 3 : index
    %c0_79 = arith.constant 0 : index
    %78 = vector.load %arg6[%c3_77, %c3_78, %c0_79] : memref<20x20x4xf32, #tpu.memory_space<vmem>>, vector<16x16x4xf32>
    %79 = vector.shape_cast %78 : vector<16x16x4xf32> to vector<256x4xf32>
    %80 = arith.truncf %79 : vector<256x4xf32> to vector<256x4xbf16>
    %c0_80 = arith.constant 0 : index
    %c72 = arith.constant 72 : index
    %81 = vector.load %arg8[%c0_80, %c72] : memref<256x100xbf16, #tpu.memory_space<vmem>>, vector<256x4xbf16>
    tpu.vector_store %arg8[%c0_80, %c72], %80 {strides = array<i32>} : memref<256x100xbf16, #tpu.memory_space<vmem>>, vector<256x4xbf16>,
    %c3_81 = arith.constant 3 : index
    %c4_82 = arith.constant 4 : index
    %c0_83 = arith.constant 0 : index
    %82 = vector.load %arg6[%c3_81, %c4_82, %c0_83] : memref<20x20x4xf32, #tpu.memory_space<vmem>>, vector<16x16x4xf32>
    %83 = vector.shape_cast %82 : vector<16x16x4xf32> to vector<256x4xf32>
    %84 = arith.truncf %83 : vector<256x4xf32> to vector<256x4xbf16>
    %c0_84 = arith.constant 0 : index
    %c76 = arith.constant 76 : index
    %85 = vector.load %arg8[%c0_84, %c76] : memref<256x100xbf16, #tpu.memory_space<vmem>>, vector<256x4xbf16>
    tpu.vector_store %arg8[%c0_84, %c76], %84 {strides = array<i32>} : memref<256x100xbf16, #tpu.memory_space<vmem>>, vector<256x4xbf16>,
    %c4_85 = arith.constant 4 : index
    %c0_86 = arith.constant 0 : index
    %c0_87 = arith.constant 0 : index
    %86 = vector.load %arg6[%c4_85, %c0_86, %c0_87] : memref<20x20x4xf32, #tpu.memory_space<vmem>>, vector<16x16x4xf32>
    %87 = vector.shape_cast %86 : vector<16x16x4xf32> to vector<256x4xf32>
    %88 = arith.truncf %87 : vector<256x4xf32> to vector<256x4xbf16>
    %c0_88 = arith.constant 0 : index
    %c80 = arith.constant 80 : index
    %89 = vector.load %arg8[%c0_88, %c80] : memref<256x100xbf16, #tpu.memory_space<vmem>>, vector<256x4xbf16>
    tpu.vector_store %arg8[%c0_88, %c80], %88 {strides = array<i32>} : memref<256x100xbf16, #tpu.memory_space<vmem>>, vector<256x4xbf16>,
    %c4_89 = arith.constant 4 : index
    %c1_90 = arith.constant 1 : index
    %c0_91 = arith.constant 0 : index
    %90 = vector.load %arg6[%c4_89, %c1_90, %c0_91] : memref<20x20x4xf32, #tpu.memory_space<vmem>>, vector<16x16x4xf32>
    %91 = vector.shape_cast %90 : vector<16x16x4xf32> to vector<256x4xf32>
    %92 = arith.truncf %91 : vector<256x4xf32> to vector<256x4xbf16>
    %c0_92 = arith.constant 0 : index
    %c84 = arith.constant 84 : index
    %93 = vector.load %arg8[%c0_92, %c84] : memref<256x100xbf16, #tpu.memory_space<vmem>>, vector<256x4xbf16>
    tpu.vector_store %arg8[%c0_92, %c84], %92 {strides = array<i32>} : memref<256x100xbf16, #tpu.memory_space<vmem>>, vector<256x4xbf16>,
    %c4_93 = arith.constant 4 : index
    %c2_94 = arith.constant 2 : index
    %c0_95 = arith.constant 0 : index
    %94 = vector.load %arg6[%c4_93, %c2_94, %c0_95] : memref<20x20x4xf32, #tpu.memory_space<vmem>>, vector<16x16x4xf32>
    %95 = vector.shape_cast %94 : vector<16x16x4xf32> to vector<256x4xf32>
    %96 = arith.truncf %95 : vector<256x4xf32> to vector<256x4xbf16>
    %c0_96 = arith.constant 0 : index
    %c88 = arith.constant 88 : index
    %97 = vector.load %arg8[%c0_96, %c88] : memref<256x100xbf16, #tpu.memory_space<vmem>>, vector<256x4xbf16>
    tpu.vector_store %arg8[%c0_96, %c88], %96 {strides = array<i32>} : memref<256x100xbf16, #tpu.memory_space<vmem>>, vector<256x4xbf16>,
    %c4_97 = arith.constant 4 : index
    %c3_98 = arith.constant 3 : index
    %c0_99 = arith.constant 0 : index
    %98 = vector.load %arg6[%c4_97, %c3_98, %c0_99] : memref<20x20x4xf32, #tpu.memory_space<vmem>>, vector<16x16x4xf32>
    %99 = vector.shape_cast %98 : vector<16x16x4xf32> to vector<256x4xf32>
    %100 = arith.truncf %99 : vector<256x4xf32> to vector<256x4xbf16>
    %c0_100 = arith.constant 0 : index
    %c92 = arith.constant 92 : index
    %101 = vector.load %arg8[%c0_100, %c92] : memref<256x100xbf16, #tpu.memory_space<vmem>>, vector<256x4xbf16>
    tpu.vector_store %arg8[%c0_100, %c92], %100 {strides = array<i32>} : memref<256x100xbf16, #tpu.memory_space<vmem>>, vector<256x4xbf16>,
    %c4_101 = arith.constant 4 : index
    %c4_102 = arith.constant 4 : index
    %c0_103 = arith.constant 0 : index
    %102 = vector.load %arg6[%c4_101, %c4_102, %c0_103] : memref<20x20x4xf32, #tpu.memory_space<vmem>>, vector<16x16x4xf32>
    %103 = vector.shape_cast %102 : vector<16x16x4xf32> to vector<256x4xf32>
    %104 = arith.truncf %103 : vector<256x4xf32> to vector<256x4xbf16>
    %c0_104 = arith.constant 0 : index
    %c96 = arith.constant 96 : index
    %105 = vector.load %arg8[%c0_104, %c96] : memref<256x100xbf16, #tpu.memory_space<vmem>>, vector<256x4xbf16>
    tpu.vector_store %arg8[%c0_104, %c96], %104 {strides = array<i32>} : memref<256x100xbf16, #tpu.memory_space<vmem>>, vector<256x4xbf16>,
    %c0_105 = arith.constant 0 : index
    %c0_106 = arith.constant 0 : index
    %106 = vector.load %arg8[%c0_105, %c0_106] : memref<256x100xbf16, #tpu.memory_space<vmem>>, vector<256x100xbf16>
    %c0_107 = arith.constant 0 : index
    %c0_108 = arith.constant 0 : index
    %107 = vector.load %arg2[%c0_107, %c0_108] : memref<100x8xbf16, #tpu.memory_space<vmem>>, vector<100x8xbf16>
    %cst = arith.constant dense<0.000000e+00> : vector<256x8xf32>
    %108 = tpu.matmul %106, %107, %cst {dimension_numbers = #tpu.dot_dimension_numbers<[1], [0], [0], [1], [0, 0, 1, 1], [], []>} : vector<256x100xbf16>, vector<100x8xbf16>, vector<256x8xf32> -> vector<256x8xf32>
    %109 = vector.extract_strided_slice %108 {offsets = [0, 0], sizes = [256, 4], strides = [1, 1]} : vector<256x8xf32> to vector<256x4xf32>
    %110 = vector.extract_strided_slice %108 {offsets = [0, 4], sizes = [256, 4], strides = [1, 1]} : vector<256x8xf32> to vector<256x4xf32>
    %111 = vector.shape_cast %109 : vector<256x4xf32> to vector<16x16x4xf32>
    %c1_109 = arith.constant 1 : index
    %c1_110 = arith.constant 1 : index
    %c0_111 = arith.constant 0 : index
    %112 = vector.load %arg7[%c1_109, %c1_110, %c0_111] : memref<18x18x4xf32, #tpu.memory_space<vmem>>, vector<16x16x4xf32>
    tpu.vector_store %arg7[%c1_109, %c1_110, %c0_111], %111 {strides = array<i32>} : memref<18x18x4xf32, #tpu.memory_space<vmem>>, vector<16x16x4xf32>,
    %c0_112 = arith.constant 0 : index
    %c0_113 = arith.constant 0 : index
    %c0_114 = arith.constant 0 : index
    %113 = vector.load %arg7[%c0_112, %c0_113, %c0_114] : memref<18x18x4xf32, #tpu.memory_space<vmem>>, vector<16x16x4xf32>
    %114 = vector.shape_cast %113 : vector<16x16x4xf32> to vector<256x4xf32>
    %115 = arith.truncf %114 : vector<256x4xf32> to vector<256x4xbf16>
    %c0_115 = arith.constant 0 : index
    %c0_116 = arith.constant 0 : index
    %116 = vector.load %arg9[%c0_115, %c0_116] : memref<256x36xbf16, #tpu.memory_space<vmem>>, vector<256x4xbf16>
    tpu.vector_store %arg9[%c0_115, %c0_116], %115 {strides = array<i32>} : memref<256x36xbf16, #tpu.memory_space<vmem>>, vector<256x4xbf16>,
    %c0_117 = arith.constant 0 : index
    %c1_118 = arith.constant 1 : index
    %c0_119 = arith.constant 0 : index
    %117 = vector.load %arg7[%c0_117, %c1_118, %c0_119] : memref<18x18x4xf32, #tpu.memory_space<vmem>>, vector<16x16x4xf32>
    %118 = vector.shape_cast %117 : vector<16x16x4xf32> to vector<256x4xf32>
    %119 = arith.truncf %118 : vector<256x4xf32> to vector<256x4xbf16>
    %c0_120 = arith.constant 0 : index
    %c4_121 = arith.constant 4 : index
    %120 = vector.load %arg9[%c0_120, %c4_121] : memref<256x36xbf16, #tpu.memory_space<vmem>>, vector<256x4xbf16>
    tpu.vector_store %arg9[%c0_120, %c4_121], %119 {strides = array<i32>} : memref<256x36xbf16, #tpu.memory_space<vmem>>, vector<256x4xbf16>,
    %c0_122 = arith.constant 0 : index
    %c2_123 = arith.constant 2 : index
    %c0_124 = arith.constant 0 : index
    %121 = vector.load %arg7[%c0_122, %c2_123, %c0_124] : memref<18x18x4xf32, #tpu.memory_space<vmem>>, vector<16x16x4xf32>
    %122 = vector.shape_cast %121 : vector<16x16x4xf32> to vector<256x4xf32>
    %123 = arith.truncf %122 : vector<256x4xf32> to vector<256x4xbf16>
    %c0_125 = arith.constant 0 : index
    %c8_126 = arith.constant 8 : index
    %124 = vector.load %arg9[%c0_125, %c8_126] : memref<256x36xbf16, #tpu.memory_space<vmem>>, vector<256x4xbf16>
    tpu.vector_store %arg9[%c0_125, %c8_126], %123 {strides = array<i32>} : memref<256x36xbf16, #tpu.memory_space<vmem>>, vector<256x4xbf16>,
    %c1_127 = arith.constant 1 : index
    %c0_128 = arith.constant 0 : index
    %c0_129 = arith.constant 0 : index
    %125 = vector.load %arg7[%c1_127, %c0_128, %c0_129] : memref<18x18x4xf32, #tpu.memory_space<vmem>>, vector<16x16x4xf32>
    %126 = vector.shape_cast %125 : vector<16x16x4xf32> to vector<256x4xf32>
    %127 = arith.truncf %126 : vector<256x4xf32> to vector<256x4xbf16>
    %c0_130 = arith.constant 0 : index
    %c12_131 = arith.constant 12 : index
    %128 = vector.load %arg9[%c0_130, %c12_131] : memref<256x36xbf16, #tpu.memory_space<vmem>>, vector<256x4xbf16>
    tpu.vector_store %arg9[%c0_130, %c12_131], %127 {strides = array<i32>} : memref<256x36xbf16, #tpu.memory_space<vmem>>, vector<256x4xbf16>,
    %c1_132 = arith.constant 1 : index
    %c1_133 = arith.constant 1 : index
    %c0_134 = arith.constant 0 : index
    %129 = vector.load %arg7[%c1_132, %c1_133, %c0_134] : memref<18x18x4xf32, #tpu.memory_space<vmem>>, vector<16x16x4xf32>
    %130 = vector.shape_cast %129 : vector<16x16x4xf32> to vector<256x4xf32>
    %131 = arith.truncf %130 : vector<256x4xf32> to vector<256x4xbf16>
    %c0_135 = arith.constant 0 : index
    %c16_136 = arith.constant 16 : index
    %132 = vector.load %arg9[%c0_135, %c16_136] : memref<256x36xbf16, #tpu.memory_space<vmem>>, vector<256x4xbf16>
    tpu.vector_store %arg9[%c0_135, %c16_136], %131 {strides = array<i32>} : memref<256x36xbf16, #tpu.memory_space<vmem>>, vector<256x4xbf16>,
    %c1_137 = arith.constant 1 : index
    %c2_138 = arith.constant 2 : index
    %c0_139 = arith.constant 0 : index
    %133 = vector.load %arg7[%c1_137, %c2_138, %c0_139] : memref<18x18x4xf32, #tpu.memory_space<vmem>>, vector<16x16x4xf32>
    %134 = vector.shape_cast %133 : vector<16x16x4xf32> to vector<256x4xf32>
    %135 = arith.truncf %134 : vector<256x4xf32> to vector<256x4xbf16>
    %c0_140 = arith.constant 0 : index
    %c20_141 = arith.constant 20 : index
    %136 = vector.load %arg9[%c0_140, %c20_141] : memref<256x36xbf16, #tpu.memory_space<vmem>>, vector<256x4xbf16>
    tpu.vector_store %arg9[%c0_140, %c20_141], %135 {strides = array<i32>} : memref<256x36xbf16, #tpu.memory_space<vmem>>, vector<256x4xbf16>,
    %c2_142 = arith.constant 2 : index
    %c0_143 = arith.constant 0 : index
    %c0_144 = arith.constant 0 : index
    %137 = vector.load %arg7[%c2_142, %c0_143, %c0_144] : memref<18x18x4xf32, #tpu.memory_space<vmem>>, vector<16x16x4xf32>
    %138 = vector.shape_cast %137 : vector<16x16x4xf32> to vector<256x4xf32>
    %139 = arith.truncf %138 : vector<256x4xf32> to vector<256x4xbf16>
    %c0_145 = arith.constant 0 : index
    %c24_146 = arith.constant 24 : index
    %140 = vector.load %arg9[%c0_145, %c24_146] : memref<256x36xbf16, #tpu.memory_space<vmem>>, vector<256x4xbf16>
    tpu.vector_store %arg9[%c0_145, %c24_146], %139 {strides = array<i32>} : memref<256x36xbf16, #tpu.memory_space<vmem>>, vector<256x4xbf16>,
    %c2_147 = arith.constant 2 : index
    %c1_148 = arith.constant 1 : index
    %c0_149 = arith.constant 0 : index
    %141 = vector.load %arg7[%c2_147, %c1_148, %c0_149] : memref<18x18x4xf32, #tpu.memory_space<vmem>>, vector<16x16x4xf32>
    %142 = vector.shape_cast %141 : vector<16x16x4xf32> to vector<256x4xf32>
    %143 = arith.truncf %142 : vector<256x4xf32> to vector<256x4xbf16>
    %c0_150 = arith.constant 0 : index
    %c28_151 = arith.constant 28 : index
    %144 = vector.load %arg9[%c0_150, %c28_151] : memref<256x36xbf16, #tpu.memory_space<vmem>>, vector<256x4xbf16>
    tpu.vector_store %arg9[%c0_150, %c28_151], %143 {strides = array<i32>} : memref<256x36xbf16, #tpu.memory_space<vmem>>, vector<256x4xbf16>,
    %c2_152 = arith.constant 2 : index
    %c2_153 = arith.constant 2 : index
    %c0_154 = arith.constant 0 : index
    %145 = vector.load %arg7[%c2_152, %c2_153, %c0_154] : memref<18x18x4xf32, #tpu.memory_space<vmem>>, vector<16x16x4xf32>
    %146 = vector.shape_cast %145 : vector<16x16x4xf32> to vector<256x4xf32>
    %147 = arith.truncf %146 : vector<256x4xf32> to vector<256x4xbf16>
    %c0_155 = arith.constant 0 : index
    %c32_156 = arith.constant 32 : index
    %148 = vector.load %arg9[%c0_155, %c32_156] : memref<256x36xbf16, #tpu.memory_space<vmem>>, vector<256x4xbf16>
    tpu.vector_store %arg9[%c0_155, %c32_156], %147 {strides = array<i32>} : memref<256x36xbf16, #tpu.memory_space<vmem>>, vector<256x4xbf16>,
    %c0_157 = arith.constant 0 : index
    %c0_158 = arith.constant 0 : index
    %149 = vector.load %arg9[%c0_157, %c0_158] : memref<256x36xbf16, #tpu.memory_space<vmem>>, vector<256x36xbf16>
    %c0_159 = arith.constant 0 : index
    %c0_160 = arith.constant 0 : index
    %150 = vector.load %arg3[%c0_159, %c0_160] : memref<36x4xbf16, #tpu.memory_space<vmem>>, vector<36x4xbf16>
    %cst_161 = arith.constant dense<0.000000e+00> : vector<256x4xf32>
    %151 = tpu.matmul %149, %150, %cst_161 {dimension_numbers = #tpu.dot_dimension_numbers<[1], [0], [0], [1], [0, 0, 1, 1], [], []>} : vector<256x36xbf16>, vector<36x4xbf16>, vector<256x4xf32> -> vector<256x4xf32>
    %152 = tpu.concatenate %110, %151 in 1 : vector<256x4xf32>, vector<256x4xf32> -> vector<256x8xf32>
    %153 = tpu.transpose %152, [1, 0] : vector<256x8xf32> -> vector<8x256xf32>
    %c0_162 = arith.constant 0 : index
    %c0_163 = arith.constant 0 : index
    %154 = vector.load %arg10[%c0_162, %c0_163] : memref<8x1xf32, #tpu.memory_space<vmem>>, vector<8x1xf32>
    %cst_164 = arith.constant dense<0.000000e+00> : vector<8xf32>
    %155 = vector.multi_reduction <add>, %153, %cst_164 [1] : vector<8x256xf32> to vector<8xf32>
    %156 = vector.shape_cast %155 : vector<8xf32> to vector<8x1xf32>
    %157 = arith.addf %154, %156 : vector<8x1xf32>
    %c0_165 = arith.constant 0 : index
    %c0_166 = arith.constant 0 : index
    %158 = vector.load %arg10[%c0_165, %c0_166] : memref<8x1xf32, #tpu.memory_space<vmem>>, vector<8x1xf32>
    tpu.vector_store %arg10[%c0_165, %c0_166], %157 {strides = array<i32>} : memref<8x1xf32, #tpu.memory_space<vmem>>, vector<8x1xf32>,
    %c0_167 = arith.constant 0 : index
    %c0_168 = arith.constant 0 : index
    %159 = vector.load %arg11[%c0_167, %c0_168] : memref<8x1xf32, #tpu.memory_space<vmem>>, vector<8x1xf32>
    %160 = arith.mulf %153, %153 : vector<8x256xf32>
    %cst_169 = arith.constant dense<0.000000e+00> : vector<8xf32>
    %161 = vector.multi_reduction <add>, %160, %cst_169 [1] : vector<8x256xf32> to vector<8xf32>
    %162 = vector.shape_cast %161 : vector<8xf32> to vector<8x1xf32>
    %163 = arith.addf %159, %162 : vector<8x1xf32>
    %c0_170 = arith.constant 0 : index
    %c0_171 = arith.constant 0 : index
    %164 = vector.load %arg11[%c0_170, %c0_171] : memref<8x1xf32, #tpu.memory_space<vmem>>, vector<8x1xf32>
    tpu.vector_store %arg11[%c0_170, %c0_171], %163 {strides = array<i32>} : memref<8x1xf32, #tpu.memory_space<vmem>>, vector<8x1xf32>,
    %165 = vector.shape_cast %153 : vector<8x256xf32> to vector<1x8x256xf32>
    %166 = arith.index_cast %arg0 : i32 to index
    %c0_172 = arith.constant 0 : index
    %c0_173 = arith.constant 0 : index
    %167 = vector.load %arg5[%166, %c0_172, %c0_173] : memref<2x8x256xf32, #tpu.memory_space<vmem>>, vector<1x8x256xf32>
    tpu.vector_store %arg5[%166, %c0_172, %c0_173], %165 {strides = array<i32>} : memref<2x8x256xf32, #tpu.memory_space<vmem>>, vector<1x8x256xf32>,
    %c1_i32 = arith.constant 1 : i32
    %168 = arith.cmpi eq, %arg0, %c1_i32 : i32
    %169 = arith.extui %168 : i1 to i32
    %c0_i32_174 = arith.constant 0 : i32
    %170 = arith.cmpi ne, %169, %c0_i32_174 : i32
    scf.if %170 {
      %c0_175 = arith.constant 0 : index
      %c0_176 = arith.constant 0 : index
      %171 = vector.load %arg10[%c0_175, %c0_176] : memref<8x1xf32, #tpu.memory_space<vmem>>, vector<8x1xf32>
      %cst_177 = arith.constant 5.120000e+02 : f32
      %172 = vector.broadcast %cst_177 : f32 to vector<8x1xf32>
      %173 = arith.divf %171, %172 : vector<8x1xf32>
      %c0_178 = arith.constant 0 : index
      %c0_179 = arith.constant 0 : index
      %174 = vector.load %arg11[%c0_178, %c0_179] : memref<8x1xf32, #tpu.memory_space<vmem>>, vector<8x1xf32>
      %cst_180 = arith.constant 5.120000e+02 : f32
      %175 = vector.broadcast %cst_180 : f32 to vector<8x1xf32>
      %176 = arith.divf %174, %175 : vector<8x1xf32>
      %177 = arith.mulf %173, %173 : vector<8x1xf32>
      %178 = arith.subf %176, %177 : vector<8x1xf32>
      %cst_181 = arith.constant 9.99999974E-6 : f32
      %179 = vector.broadcast %cst_181 : f32 to vector<8x1xf32>
      %180 = arith.addf %178, %179 : vector<8x1xf32>
      %181 = math.rsqrt %180 : vector<8x1xf32>
      %c0_182 = arith.constant 0 : index
      %c0_183 = arith.constant 0 : index
      %182 = vector.load %arg4[%c0_182, %c0_183] : memref<8x2xf32, #tpu.memory_space<vmem>>, vector<8x1xf32>
      %183 = arith.mulf %182, %181 : vector<8x1xf32>
      %c0_184 = arith.constant 0 : index
      %c1_185 = arith.constant 1 : index
      %184 = vector.load %arg4[%c0_184, %c1_185] : memref<8x2xf32, #tpu.memory_space<vmem>>, vector<8x1xf32>
      %185 = arith.mulf %173, %183 : vector<8x1xf32>
      %186 = arith.subf %184, %185 : vector<8x1xf32>
      %c0_186 = arith.constant 0 : index
      %c0_187 = arith.constant 0 : index
      %c0_188 = arith.constant 0 : index
      %187 = vector.load %arg5[%c0_186, %c0_187, %c0_188] : memref<2x8x256xf32, #tpu.memory_space<vmem>>, vector<2x8x256xf32>
      %188 = vector.shape_cast %183 : vector<8x1xf32> to vector<1x8x1xf32>
      %189 = vector.broadcast %188 : vector<1x8x1xf32> to vector<2x8x256xf32>
      %190 = arith.mulf %187, %189 : vector<2x8x256xf32>
      %191 = vector.shape_cast %186 : vector<8x1xf32> to vector<1x8x1xf32>
      %192 = vector.broadcast %191 : vector<1x8x1xf32> to vector<2x8x256xf32>
      %193 = arith.addf %190, %192 : vector<2x8x256xf32>
      %cst_189 = arith.constant 0.000000e+00 : f32
      %194 = vector.broadcast %cst_189 : f32 to vector<2x8x256xf32>
      %195 = arith.maximumf %193, %194 : vector<2x8x256xf32>
      %c0_190 = arith.constant 0 : index
      %c0_191 = arith.constant 0 : index
      %c0_192 = arith.constant 0 : index
      %196 = vector.load %arg5[%c0_190, %c0_191, %c0_192] : memref<2x8x256xf32, #tpu.memory_space<vmem>>, vector<2x8x256xf32>
      tpu.vector_store %arg5[%c0_190, %c0_191, %c0_192], %195 {strides = array<i32>} : memref<2x8x256xf32, #tpu.memory_space<vmem>>, vector<2x8x256xf32>,
    } else {
    }
    return
  }
  func.func @transform_0(%arg0: i32) -> (i32, i32, i32, i32) {
    %c0_i32 = arith.constant 0 : i32
    %c0_i32_0 = arith.constant 0 : i32
    %c0_i32_1 = arith.constant 0 : i32
    %c0_i32_2 = arith.constant 0 : i32
    return %arg0, %c0_i32, %c0_i32_0, %c0_i32_1 : i32, i32, i32, i32
  }
  func.func @transform_1(%arg0: i32) -> (i32, i32) {
    %c0_i32 = arith.constant 0 : i32
    %c0_i32_0 = arith.constant 0 : i32
    %c0_i32_1 = arith.constant 0 : i32
    return %c0_i32, %c0_i32_0 : i32, i32
  }
  func.func @transform_2(%arg0: i32) -> (i32, i32) {
    %c0_i32 = arith.constant 0 : i32
    %c0_i32_0 = arith.constant 0 : i32
    %c0_i32_1 = arith.constant 0 : i32
    return %c0_i32, %c0_i32_0 : i32, i32
  }
  func.func @transform_3(%arg0: i32) -> (i32, i32) {
    %c0_i32 = arith.constant 0 : i32
    %c0_i32_0 = arith.constant 0 : i32
    %c0_i32_1 = arith.constant 0 : i32
    return %c0_i32, %c0_i32_0 : i32, i32
  }
  func.func @transform_4(%arg0: i32) -> (i32, i32, i32) {
    %c0_i32 = arith.constant 0 : i32
    %c0_i32_0 = arith.constant 0 : i32
    %c0_i32_1 = arith.constant 0 : i32
    %c0_i32_2 = arith.constant 0 : i32
    return %c0_i32, %c0_i32_0, %c0_i32_1 : i32, i32, i32
  }
}

</mosaic_0001>

<llo_original>
// kernel: tpu_custom_call.1
$region0: #{tpu_custom_call.1}
  #allocation0 [shape = 'u32[]', space=smem, size = 0x4, offset = 0x4, fixed_abs, tag = 'smem constant byte address 0x4 - core index']
  #allocation1 [shape = 'u32[144,128]{1,0:T(1,128)}', space=vmem, size = 0x12000, scoped, tag = 'internal scratch']
  #allocation2 [shape = 'f32[20,20,4]{2,1,0:T(8,128)}', space=vmem, size = 0x3c000, scoped, tag = 'scratch operand']
  #allocation3 [shape = 'f32[18,18,4]{2,1,0:T(8,128)}', space=vmem, size = 0x36000, scoped, tag = 'scratch operand']
  #allocation4 [shape = 'bf16[256,100]{1,0:T(16,128)(2,1)}', space=vmem, size = 0x10000, scoped, tag = 'scratch operand']
  #allocation5 [shape = 'bf16[256,36]{1,0:T(16,128)(2,1)}', space=vmem, size = 0x10000, scoped, tag = 'scratch operand']
  #allocation6 [shape = 'f32[8,1]{1,0:T(8,128)}', space=vmem, size = 0x1000, scoped, tag = 'scratch operand']
  #allocation7 [shape = 'f32[8,1]{1,0:T(8,128)}', space=vmem, size = 0x1000, scoped, tag = 'scratch operand']
  %s0 = inlined_call_operand.vmem [shape: f32[2,16,16,4], index: 0, kind: input, shape index: {}]
  %s1 = inlined_call_operand.vmem [shape: bf16[100,8], index: 1, kind: input, shape index: {}]
  %s2 = inlined_call_operand.vmem [shape: bf16[36,4], index: 2, kind: input, shape index: {}]
  %s3 = inlined_call_operand.vmem [shape: f32[8,2], index: 3, kind: input, shape index: {}]
  %s4 = inlined_call_operand.hbm [shape: f32[2,8,256], index: 4, kind: output, shape index: {}]
  %s5 = sld [smem:[#allocation0]]
  $region57: #{tpu_custom_call.1} parent=0
    _
  %s7 = ssub.s32 1, %s5
  %s8 = scalar_select 0, %s7, %s5
  $region1: #{tpu_custom_call.1} parent=0
    #allocation8 [shape = 'u8[16384]{0}', space=vmem, size = 0x4000, scoped, tag = 'output window, operand 0, single buffered']
    #allocation9 [shape = 's32[2]{0}', space=sflag, size = 0x8, scoped, tag = 'scoped memory for tpu_custom_call.1']
    %9 = vsyncpa [#allocation9], 0
    loop: start=0, step=1, limit=4
    $region2: #{tpu_custom_call.1} parent=1 // loop_pre_header
      _
    $region3: #{tpu_custom_call.1} parent=1 // loop_header
      %s11 = sphi 0, %s15
      %p12 = scmp.ge.s32.totalorder %s11, 4
      %s21 = sphi 0, %s23
      %s24 = sphi 0, %s21
      %s25 = sphi 0, %s24
      %s41 = sphi 0, %s25
      %s45 = sphi 0, %s45
      %s47 = sphi 0, %s45
      %s48 = sphi 0, %s47
      %s62 = sphi 0, %s48
      %s66 = sphi 0, %s66
      %s68 = sphi 0, %s66
      %s69 = sphi 0, %s68
      %s83 = sphi 0, %s69
      %s87 = sphi 0, %s87
      %s89 = sphi 0, %s87
      %s90 = sphi 0, %s89
      %s104 = sphi 0, %s90
      %s108 = sphi 0, %s108
      %s110 = sphi 0, %s108
      %s111 = sphi 0, %s110
      %s125 = sphi 0, %s111
    $region4: #{tpu_custom_call.1} parent=1 // loop_header_branch
      %14 = sbr.rel (%p12) target = $region8
    $region5: #{tpu_custom_call.1} parent=1 // loop_body
      %s16 = ssub.s32 %s11, 1
      %s17 = ssub.s32 %s11, 2
      %s18 = sadd.s32 %s11, 1
      %s19 = ssub.s32 %s11, %s18
      %p20 = scmp.eq.s32.totalorder %s19, 0
      %s22 = sadd.s32 %s21, 1
      %s23 = scalar_select %p20, %s21, %s22
      %p26 = pneg %p20
      %p27 = scmp.eq.s32.totalorder %s11, 1
      %p28 = por %p26, %p27
      %p29 = scmp.ne.s32.totalorder %s21, %s24
      %p30 = scmp.eq.s32.totalorder %s11, 0
      %p31 = por %p29, %p30
      %p32 = scmp.ne.s32.totalorder %s21, %s24
      %p33 = scmp.eq.s32.totalorder %s16, 1
      %p34 = por %p32, %p33
      %p35 = scmp.ne.s32.totalorder %s24, %s25
      %p36 = scmp.eq.s32.totalorder %s16, 0
      %p37 = por %p35, %p36
      %p38 = scmp.ne.s32.totalorder %s24, %s25
      %p39 = scmp.eq.s32.totalorder %s17, 1
      %p40 = por %p38, %p39
      %p42 = scmp.ne.s32.totalorder %s25, %s41
      %p43 = scmp.eq.s32.totalorder %s17, 0
      %p44 = por %p42, %p43
      %s46 = sadd.s32 %s45, 1
      %p49 = scmp.eq.s32.totalorder %s11, 1
      %p50 = scmp.ne.s32.totalorder %s45, %s47
      %p51 = scmp.eq.s32.totalorder %s11, 0
      %p52 = por %p50, %p51
      %p53 = scmp.ne.s32.totalorder %s45, %s47
      %p54 = scmp.eq.s32.totalorder %s16, 1
      %p55 = por %p53, %p54
      %p56 = scmp.ne.s32.totalorder %s47, %s48
      %p57 = scmp.eq.s32.totalorder %s16, 0
      %p58 = por %p56, %p57
      %p59 = scmp.ne.s32.totalorder %s47, %s48
      %p60 = scmp.eq.s32.totalorder %s17, 1
      %p61 = por %p59, %p60
      %p63 = scmp.ne.s32.totalorder %s48, %s62
      %p64 = scmp.eq.s32.totalorder %s17, 0
      %p65 = por %p63, %p64
      %s67 = sadd.s32 %s66, 1
      %p70 = scmp.eq.s32.totalorder %s11, 1
      %p71 = scmp.ne.s32.totalorder %s66, %s68
      %p72 = scmp.eq.s32.totalorder %s11, 0
      %p73 = por %p71, %p72
      %p74 = scmp.ne.s32.totalorder %s66, %s68
      %p75 = scmp.eq.s32.totalorder %s16, 1
      %p76 = por %p74, %p75
      %p77 = scmp.ne.s32.totalorder %s68, %s69
      %p78 = scmp.eq.s32.totalorder %s16, 0
      %p79 = por %p77, %p78
      %p80 = scmp.ne.s32.totalorder %s68, %s69
      %p81 = scmp.eq.s32.totalorder %s17, 1
      %p82 = por %p80, %p81
      %p84 = scmp.ne.s32.totalorder %s69, %s83
      %p85 = scmp.eq.s32.totalorder %s17, 0
      %p86 = por %p84, %p85
      %s88 = sadd.s32 %s87, 1
      %p91 = scmp.eq.s32.totalorder %s11, 1
      %p92 = scmp.ne.s32.totalorder %s87, %s89
      %p93 = scmp.eq.s32.totalorder %s11, 0
      %p94 = por %p92, %p93
      %p95 = scmp.ne.s32.totalorder %s87, %s89
      %p96 = scmp.eq.s32.totalorder %s16, 1
      %p97 = por %p95, %p96
      %p98 = scmp.ne.s32.totalorder %s89, %s90
      %p99 = scmp.eq.s32.totalorder %s16, 0
      %p100 = por %p98, %p99
      %p101 = scmp.ne.s32.totalorder %s89, %s90
      %p102 = scmp.eq.s32.totalorder %s17, 1
      %p103 = por %p101, %p102
      %p105 = scmp.ne.s32.totalorder %s90, %s104
      %p106 = scmp.eq.s32.totalorder %s17, 0
      %p107 = por %p105, %p106
      %s109 = sadd.s32 %s108, 1
      %p112 = scmp.eq.s32.totalorder %s11, 1
      %p113 = scmp.ne.s32.totalorder %s108, %s110
      %p114 = scmp.eq.s32.totalorder %s11, 0
      %p115 = por %p113, %p114
      %p116 = scmp.ne.s32.totalorder %s108, %s110
      %p117 = scmp.eq.s32.totalorder %s16, 1
      %p118 = por %p116, %p117
      %p119 = scmp.ne.s32.totalorder %s110, %s111
      %p120 = scmp.eq.s32.totalorder %s16, 0
      %p121 = por %p119, %p120
      %p122 = scmp.ne.s32.totalorder %s110, %s111
      %p123 = scmp.eq.s32.totalorder %s17, 1
      %p124 = por %p122, %p123
      %p126 = scmp.ne.s32.totalorder %s111, %s125
      %p127 = scmp.eq.s32.totalorder %s17, 0
      %p128 = por %p126, %p127
      %p129 = scmp.le.s32.totalorder 1, %s11
      %p130 = scmp.lt.s32.totalorder %s11, 3
      %p131 = pnand %p129, %p130
      %p132 = pneg %p131
      // Predicated region
      $region9: #{tpu_custom_call.1} parent=5 // pred_check
        _
      $region10: #{tpu_custom_call.1} parent=5 // pred_check_branch
        %134 = sbr.rel (%p131) target = $region12
      $region11: #{tpu_custom_call.1} parent=5 // pred_region
        %s135 = ssub.s32 %s11, 1
        // Predicated region
        $region13: #{tpu_custom_call.1} parent=11 // pred_check
          %p136 = pneg %p58
        $region14: #{tpu_custom_call.1} parent=11 // pred_check_branch
          %138 = sbr.rel (%p136) target = $region16
        $region15: #{tpu_custom_call.1} parent=11 // pred_region
          _
        $region16: #{tpu_custom_call.1} parent=11 // pred_fallthru
          _
        // Predicated region
        $region17: #{tpu_custom_call.1} parent=11 // pred_check
          %p139 = pneg %p79
        $region18: #{tpu_custom_call.1} parent=11 // pred_check_branch
          %141 = sbr.rel (%p139) target = $region20
        $region19: #{tpu_custom_call.1} parent=11 // pred_region
          _
        $region20: #{tpu_custom_call.1} parent=11 // pred_fallthru
          _
        // Predicated region
        $region21: #{tpu_custom_call.1} parent=11 // pred_check
          %p142 = pneg %p100
        $region22: #{tpu_custom_call.1} parent=11 // pred_check_branch
          %144 = sbr.rel (%p142) target = $region24
        $region23: #{tpu_custom_call.1} parent=11 // pred_region
          _
        $region24: #{tpu_custom_call.1} parent=11 // pred_fallthru
          _
      $region12: #{tpu_custom_call.1} parent=5 // pred_fallthru
        _
      %p145 = scmp.lt.s32.totalorder %s11, 2
      // Predicated region
      $region25: #{tpu_custom_call.1} parent=5 // pred_check
        %p146 = pneg %p145
      $region26: #{tpu_custom_call.1} parent=5 // pred_check_branch
        %148 = sbr.rel (%p146) target = $region28
      $region27: #{tpu_custom_call.1} parent=5 // pred_region
        // Predicated region
        $region29: #{tpu_custom_call.1} parent=27 // pred_check
          %p149 = pneg %p31
        $region30: #{tpu_custom_call.1} parent=27 // pred_check_branch
          %151 = sbr.rel (%p149) target = $region32
        $region31: #{tpu_custom_call.1} parent=27 // pred_region
          %p152 = scmp.lt.s32.totalorder %s11, 1
          %s153 = scalar_select %p152, %s11, 1
          %s154 = smul.addr %s153, 32
          %s155 = smul.addr %s154, 8
          %s156 = scalar_lea.vmem %s0, %s155
        $region32: #{tpu_custom_call.1} parent=27 // pred_fallthru
          _
      $region28: #{tpu_custom_call.1} parent=5 // pred_fallthru
        _
      %p157 = scmp.le.s32.totalorder 1, %s11
      %p158 = scmp.lt.s32.totalorder %s11, 3
      %p159 = pnand %p157, %p158
      %p160 = pneg %p159
      // Predicated region
      $region33: #{tpu_custom_call.1} parent=5 // pred_check
        _
      $region34: #{tpu_custom_call.1} parent=5 // pred_check_branch
        %162 = sbr.rel (%p159) target = $region36
      $region35: #{tpu_custom_call.1} parent=5 // pred_region
        %s163 = ssub.s32 %s11, 1
        %p164 = scmp.lt.s32.totalorder %s16, 1
        %s165 = scalar_select %p164, %s16, 1
        %s166 = smul.addr %s165, 32
        %s167 = smul.addr %s166, 8
        %s168 = scalar_lea.vmem %s0, %s167
        %p169 = pneg %p37
        %p170 = pneg %p34
        %p171 = pneg %p58
        %p172 = pneg %p55
        %p173 = pneg %p79
        %p174 = pneg %p76
        %p175 = pneg %p100
        %p176 = pneg %p97
        %p177 = pneg %p121
        %p178 = pneg %p118
        %p179 = scmp.lt.s32.totalorder %s16, 1
        %s180 = scalar_select %p179, %s16, 1
        %s181 = smul.addr %s180, 32
        %s182 = smul.addr %s181, 8
        %s183 = scalar_lea.vmem %s0, %s182
        %p185 = scmp.eq.s32.totalorder %s16, 0
        // Predicated region
        $region37: #{tpu_custom_call.1} parent=35 // pred_check
          %p186 = pneg %p185
        $region38: #{tpu_custom_call.1} parent=35 // pred_check_branch
          %188 = sbr.rel (%p186) target = $region40
        $region39: #{tpu_custom_call.1} parent=35 // pred_region
          %vm189 = vcmask 31744
          %190 = vst.msk [vmem:[#allocation2] sm:$0xff] %vm189, 0.0
          %191 = vst.msk [vmem:[#allocation2 + $0x8] sm:$0xff] %vm189, 0.0
          %vm192 = vcmask 27648
          %193 = vst.msk [vmem:[#allocation2 + $0x10] sm:$0xf] %vm192, 0.0
          %194 = vst.msk [vmem:[#allocation2 + $0x18] sm:$0xff] %vm189, 0.0
          %195 = vst.msk [vmem:[#allocation2 + $0x20] sm:$0xff] %vm189, 0.0
          %196 = vst.msk [vmem:[#allocation2 + $0x28] sm:$0xf] %vm192, 0.0
          %197 = vst.msk [vmem:[#allocation2 + $0x30] sm:$0xff] %vm189, 0.0
          %198 = vst.msk [vmem:[#allocation2 + $0x38] sm:$0xff] %vm189, 0.0
          %199 = vst.msk [vmem:[#allocation2 + $0x40] sm:$0xf] %vm192, 0.0
          %200 = vst.msk [vmem:[#allocation2 + $0x48] sm:$0xff] %vm189, 0.0
          %201 = vst.msk [vmem:[#allocation2 + $0x50] sm:$0xff] %vm189, 0.0
          %202 = vst.msk [vmem:[#allocation2 + $0x58] sm:$0xf] %vm192, 0.0
          %203 = vst.msk [vmem:[#allocation2 + $0x60] sm:$0xff] %vm189, 0.0
          %204 = vst.msk [vmem:[#allocation2 + $0x68] sm:$0xff] %vm189, 0.0
          %205 = vst.msk [vmem:[#allocation2 + $0x70] sm:$0xf] %vm192, 0.0
          %206 = vst.msk [vmem:[#allocation2 + $0x78] sm:$0xff] %vm189, 0.0
          %207 = vst.msk [vmem:[#allocation2 + $0x80] sm:$0xff] %vm189, 0.0
          %208 = vst.msk [vmem:[#allocation2 + $0x88] sm:$0xf] %vm192, 0.0
          %209 = vst.msk [vmem:[#allocation2 + $0x90] sm:$0xff] %vm189, 0.0
          %210 = vst.msk [vmem:[#allocation2 + $0x98] sm:$0xff] %vm189, 0.0
          %211 = vst.msk [vmem:[#allocation2 + $0xa0] sm:$0xf] %vm192, 0.0
          %212 = vst.msk [vmem:[#allocation2 + $0xa8] sm:$0xff] %vm189, 0.0
          %213 = vst.msk [vmem:[#allocation2 + $0xb0] sm:$0xff] %vm189, 0.0
          %214 = vst.msk [vmem:[#allocation2 + $0xb8] sm:$0xf] %vm192, 0.0
          %215 = vst.msk [vmem:[#allocation2 + $0xc0] sm:$0xff] %vm189, 0.0
          %216 = vst.msk [vmem:[#allocation2 + $0xc8] sm:$0xff] %vm189, 0.0
          %217 = vst.msk [vmem:[#allocation2 + $0xd0] sm:$0xf] %vm192, 0.0
          %218 = vst.msk [vmem:[#allocation2 + $0xd8] sm:$0xff] %vm189, 0.0
          %219 = vst.msk [vmem:[#allocation2 + $0xe0] sm:$0xff] %vm189, 0.0
          %220 = vst.msk [vmem:[#allocation2 + $0xe8] sm:$0xf] %vm192, 0.0
          %221 = vst.msk [vmem:[#allocation2 + $0xf0] sm:$0xff] %vm189, 0.0
          %222 = vst.msk [vmem:[#allocation2 + $0xf8] sm:$0xff] %vm189, 0.0
          %223 = vst.msk [vmem:[#allocation2 + $0x100] sm:$0xf] %vm192, 0.0
          %224 = vst.msk [vmem:[#allocation2 + $0x108] sm:$0xff] %vm189, 0.0
          %225 = vst.msk [vmem:[#allocation2 + $0x110] sm:$0xff] %vm189, 0.0
          %226 = vst.msk [vmem:[#allocation2 + $0x118] sm:$0xf] %vm192, 0.0
          %227 = vst.msk [vmem:[#allocation2 + $0x120] sm:$0xff] %vm189, 0.0
          %228 = vst.msk [vmem:[#allocation2 + $0x128] sm:$0xff] %vm189, 0.0
          %229 = vst.msk [vmem:[#allocation2 + $0x130] sm:$0xf] %vm192, 0.0
          %230 = vst.msk [vmem:[#allocation2 + $0x138] sm:$0xff] %vm189, 0.0
          %231 = vst.msk [vmem:[#allocation2 + $0x140] sm:$0xff] %vm189, 0.0
          %232 = vst.msk [vmem:[#allocation2 + $0x148] sm:$0xf] %vm192, 0.0
          %233 = vst.msk [vmem:[#allocation2 + $0x150] sm:$0xff] %vm189, 0.0
          %234 = vst.msk [vmem:[#allocation2 + $0x158] sm:$0xff] %vm189, 0.0
          %235 = vst.msk [vmem:[#allocation2 + $0x160] sm:$0xf] %vm192, 0.0
          %236 = vst.msk [vmem:[#allocation2 + $0x168] sm:$0xff] %vm189, 0.0
          %237 = vst.msk [vmem:[#allocation2 + $0x170] sm:$0xff] %vm189, 0.0
          %238 = vst.msk [vmem:[#allocation2 + $0x178] sm:$0xf] %vm192, 0.0
          %239 = vst.msk [vmem:[#allocation2 + $0x180] sm:$0xff] %vm189, 0.0
          %240 = vst.msk [vmem:[#allocation2 + $0x188] sm:$0xff] %vm189, 0.0
          %241 = vst.msk [vmem:[#allocation2 + $0x190] sm:$0xf] %vm192, 0.0
          %242 = vst.msk [vmem:[#allocation2 + $0x198] sm:$0xff] %vm189, 0.0
          %243 = vst.msk [vmem:[#allocation2 + $0x1a0] sm:$0xff] %vm189, 0.0
          %244 = vst.msk [vmem:[#allocation2 + $0x1a8] sm:$0xf] %vm192, 0.0
          %245 = vst.msk [vmem:[#allocation2 + $0x1b0] sm:$0xff] %vm189, 0.0
          %246 = vst.msk [vmem:[#allocation2 + $0x1b8] sm:$0xff] %vm189, 0.0
          %247 = vst.msk [vmem:[#allocation2 + $0x1c0] sm:$0xf] %vm192, 0.0
          %248 = vst.msk [vmem:[#allocation2 + $0x1c8] sm:$0xff] %vm189, 0.0
          %249 = vst.msk [vmem:[#allocation2 + $0x1d0] sm:$0xff] %vm189, 0.0
          %250 = vst.msk [vmem:[#allocation2 + $0x1d8] sm:$0xf] %vm192, 0.0
          %251 = vst.msk [vmem:[#allocation3] sm:$0xff] %vm189, 0.0
          %252 = vst.msk [vmem:[#allocation3 + $0x8] sm:$0xff] %vm189, 0.0
          %vm253 = vcmask 25600
          %254 = vst.msk [vmem:[#allocation3 + $0x10] sm:$0x3] %vm253, 0.0
          %255 = vst.msk [vmem:[#allocation3 + $0x18] sm:$0xff] %vm189, 0.0
          %256 = vst.msk [vmem:[#allocation3 + $0x20] sm:$0xff] %vm189, 0.0
          %257 = vst.msk [vmem:[#allocation3 + $0x28] sm:$0x3] %vm253, 0.0
          %258 = vst.msk [vmem:[#allocation3 + $0x30] sm:$0xff] %vm189, 0.0
          %259 = vst.msk [vmem:[#allocation3 + $0x38] sm:$0xff] %vm189, 0.0
          %260 = vst.msk [vmem:[#allocation3 + $0x40] sm:$0x3] %vm253, 0.0
          %261 = vst.msk [vmem:[#allocation3 + $0x48] sm:$0xff] %vm189, 0.0
          %262 = vst.msk [vmem:[#allocation3 + $0x50] sm:$0xff] %vm189, 0.0
          %263 = vst.msk [vmem:[#allocation3 + $0x58] sm:$0x3] %vm253, 0.0
          %264 = vst.msk [vmem:[#allocation3 + $0x60] sm:$0xff] %vm189, 0.0
          %265 = vst.msk [vmem:[#allocation3 + $0x68] sm:$0xff] %vm189, 0.0
          %266 = vst.msk [vmem:[#allocation3 + $0x70] sm:$0x3] %vm253, 0.0
          %267 = vst.msk [vmem:[#allocation3 + $0x78] sm:$0xff] %vm189, 0.0
          %268 = vst.msk [vmem:[#allocation3 + $0x80] sm:$0xff] %vm189, 0.0
          %269 = vst.msk [vmem:[#allocation3 + $0x88] sm:$0x3] %vm253, 0.0
          %270 = vst.msk [vmem:[#allocation3 + $0x90] sm:$0xff] %vm189, 0.0
          %271 = vst.msk [vmem:[#allocation3 + $0x98] sm:$0xff] %vm189, 0.0
          %272 = vst.msk [vmem:[#allocation3 + $0xa0] sm:$0x3] %vm253, 0.0
          %273 = vst.msk [vmem:[#allocation3 + $0xa8] sm:$0xff] %vm189, 0.0
          %274 = vst.msk [vmem:[#allocation3 + $0xb0] sm:$0xff] %vm189, 0.0
          %275 = vst.msk [vmem:[#allocation3 + $0xb8] sm:$0x3] %vm253, 0.0
          %276 = vst.msk [vmem:[#allocation3 + $0xc0] sm:$0xff] %vm189, 0.0
          %277 = vst.msk [vmem:[#allocation3 + $0xc8] sm:$0xff] %vm189, 0.0
          %278 = vst.msk [vmem:[#allocation3 + $0xd0] sm:$0x3] %vm253, 0.0
          %279 = vst.msk [vmem:[#allocation3 + $0xd8] sm:$0xff] %vm189, 0.0
          %280 = vst.msk [vmem:[#allocation3 + $0xe0] sm:$0xff] %vm189, 0.0
          %281 = vst.msk [vmem:[#allocation3 + $0xe8] sm:$0x3] %vm253, 0.0
          %282 = vst.msk [vmem:[#allocation3 + $0xf0] sm:$0xff] %vm189, 0.0
          %283 = vst.msk [vmem:[#allocation3 + $0xf8] sm:$0xff] %vm189, 0.0
          %284 = vst.msk [vmem:[#allocation3 + $0x100] sm:$0x3] %vm253, 0.0
          %285 = vst.msk [vmem:[#allocation3 + $0x108] sm:$0xff] %vm189, 0.0
          %286 = vst.msk [vmem:[#allocation3 + $0x110] sm:$0xff] %vm189, 0.0
          %287 = vst.msk [vmem:[#allocation3 + $0x118] sm:$0x3] %vm253, 0.0
          %288 = vst.msk [vmem:[#allocation3 + $0x120] sm:$0xff] %vm189, 0.0
          %289 = vst.msk [vmem:[#allocation3 + $0x128] sm:$0xff] %vm189, 0.0
          %290 = vst.msk [vmem:[#allocation3 + $0x130] sm:$0x3] %vm253, 0.0
          %291 = vst.msk [vmem:[#allocation3 + $0x138] sm:$0xff] %vm189, 0.0
          %292 = vst.msk [vmem:[#allocation3 + $0x140] sm:$0xff] %vm189, 0.0
          %293 = vst.msk [vmem:[#allocation3 + $0x148] sm:$0x3] %vm253, 0.0
          %294 = vst.msk [vmem:[#allocation3 + $0x150] sm:$0xff] %vm189, 0.0
          %295 = vst.msk [vmem:[#allocation3 + $0x158] sm:$0xff] %vm189, 0.0
          %296 = vst.msk [vmem:[#allocation3 + $0x160] sm:$0x3] %vm253, 0.0
          %297 = vst.msk [vmem:[#allocation3 + $0x168] sm:$0xff] %vm189, 0.0
          %298 = vst.msk [vmem:[#allocation3 + $0x170] sm:$0xff] %vm189, 0.0
          %299 = vst.msk [vmem:[#allocation3 + $0x178] sm:$0x3] %vm253, 0.0
          %300 = vst.msk [vmem:[#allocation3 + $0x180] sm:$0xff] %vm189, 0.0
          %301 = vst.msk [vmem:[#allocation3 + $0x188] sm:$0xff] %vm189, 0.0
          %302 = vst.msk [vmem:[#allocation3 + $0x190] sm:$0x3] %vm253, 0.0
          %303 = vst.msk [vmem:[#allocation3 + $0x198] sm:$0xff] %vm189, 0.0
          %304 = vst.msk [vmem:[#allocation3 + $0x1a0] sm:$0xff] %vm189, 0.0
          %305 = vst.msk [vmem:[#allocation3 + $0x1a8] sm:$0x3] %vm253, 0.0
          %vm306 = vcmask 7168
          %307 = vst.msk [vmem:[#allocation6] sm:$0xff] %vm306, 0.0
          %308 = vst.msk [vmem:[#allocation7] sm:$0xff] %vm306, 0.0
        $region40: #{tpu_custom_call.1} parent=35 // pred_fallthru
          _
        %v309 = vld [vmem:[%s183] sm:$0xff]
        %v310 = vld [vmem:[%s183 + $0x8] sm:$0xff]
        %v311 = vld [vmem:[%s183 + $0x10] sm:$0xff]
        %v312 = vld [vmem:[%s183 + $0x18] sm:$0xff]
        %v313 = vld [vmem:[%s183 + $0x20] sm:$0xff]
        %v314 = vld [vmem:[%s183 + $0x28] sm:$0xff]
        %v315 = vld [vmem:[%s183 + $0x30] sm:$0xff]
        %v316 = vld [vmem:[%s183 + $0x38] sm:$0xff]
        %v317 = vld [vmem:[%s183 + $0x40] sm:$0xff]
        %v318 = vld [vmem:[%s183 + $0x48] sm:$0xff]
        %v319 = vld [vmem:[%s183 + $0x50] sm:$0xff]
        %v320 = vld [vmem:[%s183 + $0x58] sm:$0xff]
        %v321 = vld [vmem:[%s183 + $0x60] sm:$0xff]
        %v322 = vld [vmem:[%s183 + $0x68] sm:$0xff]
        %v323 = vld [vmem:[%s183 + $0x70] sm:$0xff]
        %v324 = vld [vmem:[%s183 + $0x78] sm:$0xff]
        %v325 = vld [vmem:[%s183 + $0x80] sm:$0xff]
        %v326 = vld [vmem:[%s183 + $0x88] sm:$0xff]
        %v327 = vld [vmem:[%s183 + $0x90] sm:$0xff]
        %v328 = vld [vmem:[%s183 + $0x98] sm:$0xff]
        %v329 = vld [vmem:[%s183 + $0xa0] sm:$0xff]
        %v330 = vld [vmem:[%s183 + $0xa8] sm:$0xff]
        %v331 = vld [vmem:[%s183 + $0xb0] sm:$0xff]
        %v332 = vld [vmem:[%s183 + $0xb8] sm:$0xff]
        %v333 = vld [vmem:[%s183 + $0xc0] sm:$0xff]
        %v334 = vld [vmem:[%s183 + $0xc8] sm:$0xff]
        %v335 = vld [vmem:[%s183 + $0xd0] sm:$0xff]
        %v336 = vld [vmem:[%s183 + $0xd8] sm:$0xff]
        %v337 = vld [vmem:[%s183 + $0xe0] sm:$0xff]
        %v338 = vld [vmem:[%s183 + $0xe8] sm:$0xff]
        %v339 = vld [vmem:[%s183 + $0xf0] sm:$0xff]
        %v340 = vld [vmem:[%s183 + $0xf8] sm:$0xff]
        %s341 = scalar_lea.vmem [#allocation2], 48
        %vm342 = vcmask 31744
        %343 = vst.msk [vmem:[%s341 + $0x2] sm:$0xff] %vm342, %v309
        %344 = vst.msk [vmem:[%s341 + $0xa] sm:$0xff] %vm342, %v310
        %345 = vst.msk [vmem:[%s341 + $0x1a] sm:$0xff] %vm342, %v311
        %346 = vst.msk [vmem:[%s341 + $0x22] sm:$0xff] %vm342, %v312
        %347 = vst.msk [vmem:[%s341 + $0x32] sm:$0xff] %vm342, %v313
        %348 = vst.msk [vmem:[%s341 + $0x3a] sm:$0xff] %vm342, %v314
        %349 = vst.msk [vmem:[%s341 + $0x4a] sm:$0xff] %vm342, %v315
        %350 = vst.msk [vmem:[%s341 + $0x52] sm:$0xff] %vm342, %v316
        %351 = vst.msk [vmem:[%s341 + $0x62] sm:$0xff] %vm342, %v317
        %352 = vst.msk [vmem:[%s341 + $0x6a] sm:$0xff] %vm342, %v318
        %353 = vst.msk [vmem:[%s341 + $0x7a] sm:$0xff] %vm342, %v319
        %354 = vst.msk [vmem:[%s341 + $0x82] sm:$0xff] %vm342, %v320
        %355 = vst.msk [vmem:[%s341 + $0x92] sm:$0xff] %vm342, %v321
        %356 = vst.msk [vmem:[%s341 + $0x9a] sm:$0xff] %vm342, %v322
        %357 = vst.msk [vmem:[%s341 + $0xaa] sm:$0xff] %vm342, %v323
        %358 = vst.msk [vmem:[%s341 + $0xb2] sm:$0xff] %vm342, %v324
        %359 = vst.msk [vmem:[%s341 + $0xc2] sm:$0xff] %vm342, %v325
        %360 = vst.msk [vmem:[%s341 + $0xca] sm:$0xff] %vm342, %v326
        %361 = vst.msk [vmem:[%s341 + $0xda] sm:$0xff] %vm342, %v327
        %362 = vst.msk [vmem:[%s341 + $0xe2] sm:$0xff] %vm342, %v328
        %363 = vst.msk [vmem:[%s341 + $0xf2] sm:$0xff] %vm342, %v329
        %364 = vst.msk [vmem:[%s341 + $0xfa] sm:$0xff] %vm342, %v330
        %365 = vst.msk [vmem:[%s341 + $0x10a] sm:$0xff] %vm342, %v331
        %366 = vst.msk [vmem:[%s341 + $0x112] sm:$0xff] %vm342, %v332
        %367 = vst.msk [vmem:[%s341 + $0x122] sm:$0xff] %vm342, %v333
        %368 = vst.msk [vmem:[%s341 + $0x12a] sm:$0xff] %vm342, %v334
        %369 = vst.msk [vmem:[%s341 + $0x13a] sm:$0xff] %vm342, %v335
        %370 = vst.msk [vmem:[%s341 + $0x142] sm:$0xff] %vm342, %v336
        %371 = vst.msk [vmem:[%s341 + $0x152] sm:$0xff] %vm342, %v337
        %372 = vst.msk [vmem:[%s341 + $0x15a] sm:$0xff] %vm342, %v338
        %373 = vst.msk [vmem:[%s341 + $0x16a] sm:$0xff] %vm342, %v339
        %374 = vst.msk [vmem:[%s341 + $0x172] sm:$0xff] %vm342, %v340
        %v375 = vld [vmem:[#allocation2] sm:$0xff]
        %v376 = vld [vmem:[#allocation2 + $0x8] sm:$0xff]
        %v377 = vld [vmem:[#allocation2 + $0x18] sm:$0xff]
        %v378 = vld [vmem:[#allocation2 + $0x20] sm:$0xff]
        %v379 = vld [vmem:[#allocation2 + $0x30] sm:$0xff]
        %v380 = vld [vmem:[#allocation2 + $0x38] sm:$0xff]
        %v381 = vld [vmem:[#allocation2 + $0x48] sm:$0xff]
        %v382 = vld [vmem:[#allocation2 + $0x50] sm:$0xff]
        %v383 = vld [vmem:[#allocation2 + $0x60] sm:$0xff]
        %v384 = vld [vmem:[#allocation2 + $0x68] sm:$0xff]
        %v385 = vld [vmem:[#allocation2 + $0x78] sm:$0xff]
        %v386 = vld [vmem:[#allocation2 + $0x80] sm:$0xff]
        %v387 = vld [vmem:[#allocation2 + $0x90] sm:$0xff]
        %v388 = vld [vmem:[#allocation2 + $0x98] sm:$0xff]
        %v389 = vld [vmem:[#allocation2 + $0xa8] sm:$0xff]
        %v390 = vld [vmem:[#allocation2 + $0xb0] sm:$0xff]
        %v391 = vld [vmem:[#allocation2 + $0xc0] sm:$0xff]
        %v392 = vld [vmem:[#allocation2 + $0xc8] sm:$0xff]
        %v393 = vld [vmem:[#allocation2 + $0xd8] sm:$0xff]
        %v394 = vld [vmem:[#allocation2 + $0xe0] sm:$0xff]
        %v395 = vld [vmem:[#allocation2 + $0xf0] sm:$0xff]
        %v396 = vld [vmem:[#allocation2 + $0xf8] sm:$0xff]
        %v397 = vld [vmem:[#allocation2 + $0x108] sm:$0xff]
        %v398 = vld [vmem:[#allocation2 + $0x110] sm:$0xff]
        %v399 = vld [vmem:[#allocation2 + $0x120] sm:$0xff]
        %v400 = vld [vmem:[#allocation2 + $0x128] sm:$0xff]
        %v401 = vld [vmem:[#allocation2 + $0x138] sm:$0xff]
        %v402 = vld [vmem:[#allocation2 + $0x140] sm:$0xff]
        %v403 = vld [vmem:[#allocation2 + $0x150] sm:$0xff]
        %v404 = vld [vmem:[#allocation2 + $0x158] sm:$0xff]
        %v405 = vld [vmem:[#allocation2 + $0x168] sm:$0xff]
        %v406 = vld [vmem:[#allocation2 + $0x170] sm:$0xff]
        %v407 = vpack.c.bf16 %v376, %v375
        %v408 = vpack.c.bf16 %v378, %v377
        %v409 = vpack.c.bf16 %v380, %v379
        %v410 = vpack.c.bf16 %v382, %v381
        %v411 = vpack.c.bf16 %v384, %v383
        %v412 = vpack.c.bf16 %v386, %v385
        %v413 = vpack.c.bf16 %v388, %v387
        %v414 = vpack.c.bf16 %v390, %v389
        %v415 = vpack.c.bf16 %v392, %v391
        %v416 = vpack.c.bf16 %v394, %v393
        %v417 = vpack.c.bf16 %v396, %v395
        %v418 = vpack.c.bf16 %v398, %v397
        %v419 = vpack.c.bf16 %v400, %v399
        %v420 = vpack.c.bf16 %v402, %v401
        %v421 = vpack.c.bf16 %v404, %v403
        %v422 = vpack.c.bf16 %v406, %v405
        %423 = vst.msk [vmem:[#allocation4] sm:$0xff] %vm342, %v407
        %424 = vst.msk [vmem:[#allocation4 + $0x8] sm:$0xff] %vm342, %v408
        %425 = vst.msk [vmem:[#allocation4 + $0x10] sm:$0xff] %vm342, %v409
        %426 = vst.msk [vmem:[#allocation4 + $0x18] sm:$0xff] %vm342, %v410
        %427 = vst.msk [vmem:[#allocation4 + $0x20] sm:$0xff] %vm342, %v411
        %428 = vst.msk [vmem:[#allocation4 + $0x28] sm:$0xff] %vm342, %v412
        %429 = vst.msk [vmem:[#allocation4 + $0x30] sm:$0xff] %vm342, %v413
        %430 = vst.msk [vmem:[#allocation4 + $0x38] sm:$0xff] %vm342, %v414
        %431 = vst.msk [vmem:[#allocation4 + $0x40] sm:$0xff] %vm342, %v415
        %432 = vst.msk [vmem:[#allocation4 + $0x48] sm:$0xff] %vm342, %v416
        %433 = vst.msk [vmem:[#allocation4 + $0x50] sm:$0xff] %vm342, %v417
        %434 = vst.msk [vmem:[#allocation4 + $0x58] sm:$0xff] %vm342, %v418
        %435 = vst.msk [vmem:[#allocation4 + $0x60] sm:$0xff] %vm342, %v419
        %436 = vst.msk [vmem:[#allocation4 + $0x68] sm:$0xff] %vm342, %v420
        %437 = vst.msk [vmem:[#allocation4 + $0x70] sm:$0xff] %vm342, %v421
        %438 = vst.msk [vmem:[#allocation4 + $0x78] sm:$0xff] %vm342, %v422
        %v439 = vld [vmem:[#allocation2 + $0x1] sm:$0xff]
        %v440 = vld [vmem:[#allocation2 + $0x9] sm:$0xff]
        %v441 = vld [vmem:[#allocation2 + $0x19] sm:$0xff]
        %v442 = vld [vmem:[#allocation2 + $0x21] sm:$0xff]
        %v443 = vld [vmem:[#allocation2 + $0x31] sm:$0xff]
        %v444 = vld [vmem:[#allocation2 + $0x39] sm:$0xff]
        %v445 = vld [vmem:[#allocation2 + $0x49] sm:$0xff]
        %v446 = vld [vmem:[#allocation2 + $0x51] sm:$0xff]
        %v447 = vld [vmem:[#allocation2 + $0x61] sm:$0xff]
        %v448 = vld [vmem:[#allocation2 + $0x69] sm:$0xff]
        %v449 = vld [vmem:[#allocation2 + $0x79] sm:$0xff]
        %v450 = vld [vmem:[#allocation2 + $0x81] sm:$0xff]
        %v451 = vld [vmem:[#allocation2 + $0x91] sm:$0xff]
        %v452 = vld [vmem:[#allocation2 + $0x99] sm:$0xff]
        %v453 = vld [vmem:[#allocation2 + $0xa9] sm:$0xff]
        %v454 = vld [vmem:[#allocation2 + $0xb1] sm:$0xff]
        %v455 = vld [vmem:[#allocation2 + $0xc1] sm:$0xff]
        %v456 = vld [vmem:[#allocation2 + $0xc9] sm:$0xff]
        %v457 = vld [vmem:[#allocation2 + $0xd9] sm:$0xff]
        %v458 = vld [vmem:[#allocation2 + $0xe1] sm:$0xff]
        %v459 = vld [vmem:[#allocation2 + $0xf1] sm:$0xff]
        %v460 = vld [vmem:[#allocation2 + $0xf9] sm:$0xff]
        %v461 = vld [vmem:[#allocation2 + $0x109] sm:$0xff]
        %v462 = vld [vmem:[#allocation2 + $0x111] sm:$0xff]
        %v463 = vld [vmem:[#allocation2 + $0x121] sm:$0xff]
        %v464 = vld [vmem:[#allocation2 + $0x129] sm:$0xff]
        %v465 = vld [vmem:[#allocation2 + $0x139] sm:$0xff]
        %v466 = vld [vmem:[#allocation2 + $0x141] sm:$0xff]
        %v467 = vld [vmem:[#allocation2 + $0x151] sm:$0xff]
        %v468 = vld [vmem:[#allocation2 + $0x159] sm:$0xff]
        %v469 = vld [vmem:[#allocation2 + $0x169] sm:$0xff]
        %v470 = vld [vmem:[#allocation2 + $0x171] sm:$0xff]
        %v471 = vpack.c.bf16 %v440, %v439
        %v472 = vpack.c.bf16 %v442, %v441
        %v473 = vpack.c.bf16 %v444, %v443
        %v474 = vpack.c.bf16 %v446, %v445
        %v475 = vpack.c.bf16 %v448, %v447
        %v476 = vpack.c.bf16 %v450, %v449
        %v477 = vpack.c.bf16 %v452, %v451
        %v478 = vpack.c.bf16 %v454, %v453
        %v479 = vpack.c.bf16 %v456, %v455
        %v480 = vpack.c.bf16 %v458, %v457
        %v481 = vpack.c.bf16 %v460, %v459
        %v482 = vpack.c.bf16 %v462, %v461
        %v483 = vpack.c.bf16 %v464, %v463
        %v484 = vpack.c.bf16 %v466, %v465
        %v485 = vpack.c.bf16 %v468, %v467
        %v486 = vpack.c.bf16 %v470, %v469
        %503 = vrot.lane.b32.xlu0 %v471, 4
        %v504 = vpop.permute.xlu0 %503
        %505 = vrot.lane.b32.xlu0 %v472, 4
        %v506 = vpop.permute.xlu0 %505
        %507 = vrot.lane.b32.xlu0 %v473, 4
        %v508 = vpop.permute.xlu0 %507
        %509 = vrot.lane.b32.xlu0 %v474, 4
        %v510 = vpop.permute.xlu0 %509
        %511 = vrot.lane.b32.xlu0 %v475, 4
        %v512 = vpop.permute.xlu0 %511
        %513 = vrot.lane.b32.xlu0 %v476, 4
        %v514 = vpop.permute.xlu0 %513
        %515 = vrot.lane.b32.xlu0 %v477, 4
        %v516 = vpop.permute.xlu0 %515
        %517 = vrot.lane.b32.xlu0 %v478, 4
        %v518 = vpop.permute.xlu0 %517
        %519 = vrot.lane.b32.xlu0 %v479, 4
        %v520 = vpop.permute.xlu0 %519
        %521 = vrot.lane.b32.xlu0 %v480, 4
        %v522 = vpop.permute.xlu0 %521
        %523 = vrot.lane.b32.xlu0 %v481, 4
        %v524 = vpop.permute.xlu0 %523
        %525 = vrot.lane.b32.xlu0 %v482, 4
        %v526 = vpop.permute.xlu0 %525
        %527 = vrot.lane.b32.xlu0 %v483, 4
        %v528 = vpop.permute.xlu0 %527
        %529 = vrot.lane.b32.xlu0 %v484, 4
        %v530 = vpop.permute.xlu0 %529
        %531 = vrot.lane.b32.xlu0 %v485, 4
        %v532 = vpop.permute.xlu0 %531
        %533 = vrot.lane.b32.xlu0 %v486, 4
        %v534 = vpop.permute.xlu0 %533
        %vm551 = vcmask 64544
        %552 = vst.msk [vmem:[#allocation4] sm:$0xff] %vm551, %v504
        %553 = vst.msk [vmem:[#allocation4 + $0x8] sm:$0xff] %vm551, %v506
        %554 = vst.msk [vmem:[#allocation4 + $0x10] sm:$0xff] %vm551, %v508
        %555 = vst.msk [vmem:[#allocation4 + $0x18] sm:$0xff] %vm551, %v510
        %556 = vst.msk [vmem:[#allocation4 + $0x20] sm:$0xff] %vm551, %v512
        %557 = vst.msk [vmem:[#allocation4 + $0x28] sm:$0xff] %vm551, %v514
        %558 = vst.msk [vmem:[#allocation4 + $0x30] sm:$0xff] %vm551, %v516
        %559 = vst.msk [vmem:[#allocation4 + $0x38] sm:$0xff] %vm551, %v518
        %560 = vst.msk [vmem:[#allocation4 + $0x40] sm:$0xff] %vm551, %v520
        %561 = vst.msk [vmem:[#allocation4 + $0x48] sm:$0xff] %vm551, %v522
        %562 = vst.msk [vmem:[#allocation4 + $0x50] sm:$0xff] %vm551, %v524
        %563 = vst.msk [vmem:[#allocation4 + $0x58] sm:$0xff] %vm551, %v526
        %564 = vst.msk [vmem:[#allocation4 + $0x60] sm:$0xff] %vm551, %v528
        %565 = vst.msk [vmem:[#allocation4 + $0x68] sm:$0xff] %vm551, %v530
        %566 = vst.msk [vmem:[#allocation4 + $0x70] sm:$0xff] %vm551, %v532
        %567 = vst.msk [vmem:[#allocation4 + $0x78] sm:$0xff] %vm551, %v534
        %v568 = vld [vmem:[#allocation2 + $0x2] sm:$0xff]
        %v569 = vld [vmem:[#allocation2 + $0xa] sm:$0xff]
        %v570 = vld [vmem:[#allocation2 + $0x1a] sm:$0xff]
        %v571 = vld [vmem:[#allocation2 + $0x22] sm:$0xff]
        %v572 = vld [vmem:[#allocation2 + $0x32] sm:$0xff]
        %v573 = vld [vmem:[#allocation2 + $0x3a] sm:$0xff]
        %v574 = vld [vmem:[#allocation2 + $0x4a] sm:$0xff]
        %v575 = vld [vmem:[#allocation2 + $0x52] sm:$0xff]
        %v576 = vld [vmem:[#allocation2 + $0x62] sm:$0xff]
        %v577 = vld [vmem:[#allocation2 + $0x6a] sm:$0xff]
        %v578 = vld [vmem:[#allocation2 + $0x7a] sm:$0xff]
        %v579 = vld [vmem:[#allocation2 + $0x82] sm:$0xff]
        %v580 = vld [vmem:[#allocation2 + $0x92] sm:$0xff]
        %v581 = vld [vmem:[#allocation2 + $0x9a] sm:$0xff]
        %v582 = vld [vmem:[#allocation2 + $0xaa] sm:$0xff]
        %v583 = vld [vmem:[#allocation2 + $0xb2] sm:$0xff]
        %v584 = vld [vmem:[#allocation2 + $0xc2] sm:$0xff]
        %v585 = vld [vmem:[#allocation2 + $0xca] sm:$0xff]
        %v586 = vld [vmem:[#allocation2 + $0xda] sm:$0xff]
        %v587 = vld [vmem:[#allocation2 + $0xe2] sm:$0xff]
        %v588 = vld [vmem:[#allocation2 + $0xf2] sm:$0xff]
        %v589 = vld [vmem:[#allocation2 + $0xfa] sm:$0xff]
        %v590 = vld [vmem:[#allocation2 + $0x10a] sm:$0xff]
        %v591 = vld [vmem:[#allocation2 + $0x112] sm:$0xff]
        %v592 = vld [vmem:[#allocation2 + $0x122] sm:$0xff]
        %v593 = vld [vmem:[#allocation2 + $0x12a] sm:$0xff]
        %v594 = vld [vmem:[#allocation2 + $0x13a] sm:$0xff]
        %v595 = vld [vmem:[#allocation2 + $0x142] sm:$0xff]
        %v596 = vld [vmem:[#allocation2 + $0x152] sm:$0xff]
        %v597 = vld [vmem:[#allocation2 + $0x15a] sm:$0xff]
        %v598 = vld [vmem:[#allocation2 + $0x16a] sm:$0xff]
        %v599 = vld [vmem:[#allocation2 + $0x172] sm:$0xff]
        %v600 = vpack.c.bf16 %v569, %v568
        %v601 = vpack.c.bf16 %v571, %v570
        %v602 = vpack.c.bf16 %v573, %v572
        %v603 = vpack.c.bf16 %v575, %v574
        %v604 = vpack.c.bf16 %v577, %v576
        %v605 = vpack.c.bf16 %v579, %v578
        %v606 = vpack.c.bf16 %v581, %v580
        %v607 = vpack.c.bf16 %v583, %v582
        %v608 = vpack.c.bf16 %v585, %v584
        %v609 = vpack.c.bf16 %v587, %v586
        %v610 = vpack.c.bf16 %v589, %v588
        %v611 = vpack.c.bf16 %v591, %v590
        %v612 = vpack.c.bf16 %v593, %v592
        %v613 = vpack.c.bf16 %v595, %v594
        %v614 = vpack.c.bf16 %v597, %v596
        %v615 = vpack.c.bf16 %v599, %v598
        %632 = vrot.lane.b32.xlu0 %v600, 8
        %v633 = vpop.permute.xlu0 %632
        %634 = vrot.lane.b32.xlu0 %v601, 8
        %v635 = vpop.permute.xlu0 %634
        %636 = vrot.lane.b32.xlu0 %v602, 8
        %v637 = vpop.permute.xlu0 %636
        %638 = vrot.lane.b32.xlu0 %v603, 8
        %v639 = vpop.permute.xlu0 %638
        %640 = vrot.lane.b32.xlu0 %v604, 8
        %v641 = vpop.permute.xlu0 %640
        %642 = vrot.lane.b32.xlu0 %v605, 8
        %v643 = vpop.permute.xlu0 %642
        %644 = vrot.lane.b32.xlu0 %v606, 8
        %v645 = vpop.permute.xlu0 %644
        %646 = vrot.lane.b32.xlu0 %v607, 8
        %v647 = vpop.permute.xlu0 %646
        %648 = vrot.lane.b32.xlu0 %v608, 8
        %v649 = vpop.permute.xlu0 %648
        %650 = vrot.lane.b32.xlu0 %v609, 8
        %v651 = vpop.permute.xlu0 %650
        %652 = vrot.lane.b32.xlu0 %v610, 8
        %v653 = vpop.permute.xlu0 %652
        %654 = vrot.lane.b32.xlu0 %v611, 8
        %v655 = vpop.permute.xlu0 %654
        %656 = vrot.lane.b32.xlu0 %v612, 8
        %v657 = vpop.permute.xlu0 %656
        %658 = vrot.lane.b32.xlu0 %v613, 8
        %v659 = vpop.permute.xlu0 %658
        %660 = vrot.lane.b32.xlu0 %v614, 8
        %v661 = vpop.permute.xlu0 %660
        %662 = vrot.lane.b32.xlu0 %v615, 8
        %v663 = vpop.permute.xlu0 %662
        %vm680 = vcmask 97344
        %681 = vst.msk [vmem:[#allocation4] sm:$0xff] %vm680, %v633
        %682 = vst.msk [vmem:[#allocation4 + $0x8] sm:$0xff] %vm680, %v635
        %683 = vst.msk [vmem:[#allocation4 + $0x10] sm:$0xff] %vm680, %v637
        %684 = vst.msk [vmem:[#allocation4 + $0x18] sm:$0xff] %vm680, %v639
        %685 = vst.msk [vmem:[#allocation4 + $0x20] sm:$0xff] %vm680, %v641
        %686 = vst.msk [vmem:[#allocation4 + $0x28] sm:$0xff] %vm680, %v643
        %687 = vst.msk [vmem:[#allocation4 + $0x30] sm:$0xff] %vm680, %v645
        %688 = vst.msk [vmem:[#allocation4 + $0x38] sm:$0xff] %vm680, %v647
        %689 = vst.msk [vmem:[#allocation4 + $0x40] sm:$0xff] %vm680, %v649
        %690 = vst.msk [vmem:[#allocation4 + $0x48] sm:$0xff] %vm680, %v651
        %691 = vst.msk [vmem:[#allocation4 + $0x50] sm:$0xff] %vm680, %v653
        %692 = vst.msk [vmem:[#allocation4 + $0x58] sm:$0xff] %vm680, %v655
        %693 = vst.msk [vmem:[#allocation4 + $0x60] sm:$0xff] %vm680, %v657
        %694 = vst.msk [vmem:[#allocation4 + $0x68] sm:$0xff] %vm680, %v659
        %695 = vst.msk [vmem:[#allocation4 + $0x70] sm:$0xff] %vm680, %v661
        %696 = vst.msk [vmem:[#allocation4 + $0x78] sm:$0xff] %vm680, %v663
        %v697 = vld [vmem:[#allocation2 + $0x3] sm:$0xff]
        %v698 = vld [vmem:[#allocation2 + $0xb] sm:$0xff]
        %v699 = vld [vmem:[#allocation2 + $0x1b] sm:$0xff]
        %v700 = vld [vmem:[#allocation2 + $0x23] sm:$0xff]
        %v701 = vld [vmem:[#allocation2 + $0x33] sm:$0xff]
        %v702 = vld [vmem:[#allocation2 + $0x3b] sm:$0xff]
        %v703 = vld [vmem:[#allocation2 + $0x4b] sm:$0xff]
        %v704 = vld [vmem:[#allocation2 + $0x53] sm:$0xff]
        %v705 = vld [vmem:[#allocation2 + $0x63] sm:$0xff]
        %v706 = vld [vmem:[#allocation2 + $0x6b] sm:$0xff]
        %v707 = vld [vmem:[#allocation2 + $0x7b] sm:$0xff]
        %v708 = vld [vmem:[#allocation2 + $0x83] sm:$0xff]
        %v709 = vld [vmem:[#allocation2 + $0x93] sm:$0xff]
        %v710 = vld [vmem:[#allocation2 + $0x9b] sm:$0xff]
        %v711 = vld [vmem:[#allocation2 + $0xab] sm:$0xff]
        %v712 = vld [vmem:[#allocation2 + $0xb3] sm:$0xff]
        %v713 = vld [vmem:[#allocation2 + $0xc3] sm:$0xff]
        %v714 = vld [vmem:[#allocation2 + $0xcb] sm:$0xff]
        %v715 = vld [vmem:[#allocation2 + $0xdb] sm:$0xff]
        %v716 = vld [vmem:[#allocation2 + $0xe3] sm:$0xff]
        %v717 = vld [vmem:[#allocation2 + $0xf3] sm:$0xff]
        %v718 = vld [vmem:[#allocation2 + $0xfb] sm:$0xff]
        %v719 = vld [vmem:[#allocation2 + $0x10b] sm:$0xff]
        %v720 = vld [vmem:[#allocation2 + $0x113] sm:$0xff]
        %v721 = vld [vmem:[#allocation2 + $0x123] sm:$0xff]
        %v722 = vld [vmem:[#allocation2 + $0x12b] sm:$0xff]
        %v723 = vld [vmem:[#allocation2 + $0x13b] sm:$0xff]
        %v724 = vld [vmem:[#allocation2 + $0x143] sm:$0xff]
        %v725 = vld [vmem:[#allocation2 + $0x153] sm:$0xff]
        %v726 = vld [vmem:[#allocation2 + $0x15b] sm:$0xff]
        %v727 = vld [vmem:[#allocation2 + $0x16b] sm:$0xff]
        %v728 = vld [vmem:[#allocation2 + $0x173] sm:$0xff]
        %v729 = vpack.c.bf16 %v698, %v697
        %v730 = vpack.c.bf16 %v700, %v699
        %v731 = vpack.c.bf16 %v702, %v701
        %v732 = vpack.c.bf16 %v704, %v703
        %v733 = vpack.c.bf16 %v706, %v705
        %v734 = vpack.c.bf16 %v708, %v707
        %v735 = vpack.c.bf16 %v710, %v709
        %v736 = vpack.c.bf16 %v712, %v711
        %v737 = vpack.c.bf16 %v714, %v713
        %v738 = vpack.c.bf16 %v716, %v715
        %v739 = vpack.c.bf16 %v718, %v717
        %v740 = vpack.c.bf16 %v720, %v719
        %v741 = vpack.c.bf16 %v722, %v721
        %v742 = vpack.c.bf16 %v724, %v723
        %v743 = vpack.c.bf16 %v726, %v725
        %v744 = vpack.c.bf16 %v728, %v727
        %761 = vrot.lane.b32.xlu0 %v729, 12
        %v762 = vpop.permute.xlu0 %761
        %763 = vrot.lane.b32.xlu0 %v730, 12
        %v764 = vpop.permute.xlu0 %763
        %765 = vrot.lane.b32.xlu0 %v731, 12
        %v766 = vpop.permute.xlu0 %765
        %767 = vrot.lane.b32.xlu0 %v732, 12
        %v768 = vpop.permute.xlu0 %767
        %769 = vrot.lane.b32.xlu0 %v733, 12
        %v770 = vpop.permute.xlu0 %769
        %771 = vrot.lane.b32.xlu0 %v734, 12
        %v772 = vpop.permute.xlu0 %771
        %773 = vrot.lane.b32.xlu0 %v735, 12
        %v774 = vpop.permute.xlu0 %773
        %775 = vrot.lane.b32.xlu0 %v736, 12
        %v776 = vpop.permute.xlu0 %775
        %777 = vrot.lane.b32.xlu0 %v737, 12
        %v778 = vpop.permute.xlu0 %777
        %779 = vrot.lane.b32.xlu0 %v738, 12
        %v780 = vpop.permute.xlu0 %779
        %781 = vrot.lane.b32.xlu0 %v739, 12
        %v782 = vpop.permute.xlu0 %781
        %783 = vrot.lane.b32.xlu0 %v740, 12
        %v784 = vpop.permute.xlu0 %783
        %785 = vrot.lane.b32.xlu0 %v741, 12
        %v786 = vpop.permute.xlu0 %785
        %787 = vrot.lane.b32.xlu0 %v742, 12
        %v788 = vpop.permute.xlu0 %787
        %789 = vrot.lane.b32.xlu0 %v743, 12
        %v790 = vpop.permute.xlu0 %789
        %791 = vrot.lane.b32.xlu0 %v744, 12
        %v792 = vpop.permute.xlu0 %791
        %vm809 = vcmask 130144
        %810 = vst.msk [vmem:[#allocation4] sm:$0xff] %vm809, %v762
        %811 = vst.msk [vmem:[#allocation4 + $0x8] sm:$0xff] %vm809, %v764
        %812 = vst.msk [vmem:[#allocation4 + $0x10] sm:$0xff] %vm809, %v766
        %813 = vst.msk [vmem:[#allocation4 + $0x18] sm:$0xff] %vm809, %v768
        %814 = vst.msk [vmem:[#allocation4 + $0x20] sm:$0xff] %vm809, %v770
        %815 = vst.msk [vmem:[#allocation4 + $0x28] sm:$0xff] %vm809, %v772
        %816 = vst.msk [vmem:[#allocation4 + $0x30] sm:$0xff] %vm809, %v774
        %817 = vst.msk [vmem:[#allocation4 + $0x38] sm:$0xff] %vm809, %v776
        %818 = vst.msk [vmem:[#allocation4 + $0x40] sm:$0xff] %vm809, %v778
        %819 = vst.msk [vmem:[#allocation4 + $0x48] sm:$0xff] %vm809, %v780
        %820 = vst.msk [vmem:[#allocation4 + $0x50] sm:$0xff] %vm809, %v782
        %821 = vst.msk [vmem:[#allocation4 + $0x58] sm:$0xff] %vm809, %v784
        %822 = vst.msk [vmem:[#allocation4 + $0x60] sm:$0xff] %vm809, %v786
        %823 = vst.msk [vmem:[#allocation4 + $0x68] sm:$0xff] %vm809, %v788
        %824 = vst.msk [vmem:[#allocation4 + $0x70] sm:$0xff] %vm809, %v790
        %825 = vst.msk [vmem:[#allocation4 + $0x78] sm:$0xff] %vm809, %v792
        %v826 = vld [vmem:[#allocation2 + $0x4] sm:$0xff]
        %v827 = vld [vmem:[#allocation2 + $0xc] sm:$0xff]
        %v828 = vld [vmem:[#allocation2 + $0x1c] sm:$0xff]
        %v829 = vld [vmem:[#allocation2 + $0x24] sm:$0xff]
        %v830 = vld [vmem:[#allocation2 + $0x34] sm:$0xff]
        %v831 = vld [vmem:[#allocation2 + $0x3c] sm:$0xff]
        %v832 = vld [vmem:[#allocation2 + $0x4c] sm:$0xff]
        %v833 = vld [vmem:[#allocation2 + $0x54] sm:$0xff]
        %v834 = vld [vmem:[#allocation2 + $0x64] sm:$0xff]
        %v835 = vld [vmem:[#allocation2 + $0x6c] sm:$0xff]
        %v836 = vld [vmem:[#allocation2 + $0x7c] sm:$0xff]
        %v837 = vld [vmem:[#allocation2 + $0x84] sm:$0xff]
        %v838 = vld [vmem:[#allocation2 + $0x94] sm:$0xff]
        %v839 = vld [vmem:[#allocation2 + $0x9c] sm:$0xff]
        %v840 = vld [vmem:[#allocation2 + $0xac] sm:$0xff]
        %v841 = vld [vmem:[#allocation2 + $0xb4] sm:$0xff]
        %v842 = vld [vmem:[#allocation2 + $0xc4] sm:$0xff]
        %v843 = vld [vmem:[#allocation2 + $0xcc] sm:$0xff]
        %v844 = vld [vmem:[#allocation2 + $0xdc] sm:$0xff]
        %v845 = vld [vmem:[#allocation2 + $0xe4] sm:$0xff]
        %v846 = vld [vmem:[#allocation2 + $0xf4] sm:$0xff]
        %v847 = vld [vmem:[#allocation2 + $0xfc] sm:$0xff]
        %v848 = vld [vmem:[#allocation2 + $0x10c] sm:$0xff]
        %v849 = vld [vmem:[#allocation2 + $0x114] sm:$0xff]
        %v850 = vld [vmem:[#allocation2 + $0x124] sm:$0xff]
        %v851 = vld [vmem:[#allocation2 + $0x12c] sm:$0xff]
        %v852 = vld [vmem:[#allocation2 + $0x13c] sm:$0xff]
        %v853 = vld [vmem:[#allocation2 + $0x144] sm:$0xff]
        %v854 = vld [vmem:[#allocation2 + $0x154] sm:$0xff]
        %v855 = vld [vmem:[#allocation2 + $0x15c] sm:$0xff]
        %v856 = vld [vmem:[#allocation2 + $0x16c] sm:$0xff]
        %v857 = vld [vmem:[#allocation2 + $0x174] sm:$0xff]
        %v858 = vpack.c.bf16 %v827, %v826
        %v859 = vpack.c.bf16 %v829, %v828
        %v860 = vpack.c.bf16 %v831, %v830
        %v861 = vpack.c.bf16 %v833, %v832
        %v862 = vpack.c.bf16 %v835, %v834
        %v863 = vpack.c.bf16 %v837, %v836
        %v864 = vpack.c.bf16 %v839, %v838
        %v865 = vpack.c.bf16 %v841, %v840
        %v866 = vpack.c.bf16 %v843, %v842
        %v867 = vpack.c.bf16 %v845, %v844
        %v868 = vpack.c.bf16 %v847, %v846
        %v869 = vpack.c.bf16 %v849, %v848
        %v870 = vpack.c.bf16 %v851, %v850
        %v871 = vpack.c.bf16 %v853, %v852
        %v872 = vpack.c.bf16 %v855, %v854
        %v873 = vpack.c.bf16 %v857, %v856
        %890 = vrot.lane.b32.xlu0 %v858, 16
        %v891 = vpop.permute.xlu0 %890
        %892 = vrot.lane.b32.xlu0 %v859, 16
        %v893 = vpop.permute.xlu0 %892
        %894 = vrot.lane.b32.xlu0 %v860, 16
        %v895 = vpop.permute.xlu0 %894
        %896 = vrot.lane.b32.xlu0 %v861, 16
        %v897 = vpop.permute.xlu0 %896
        %898 = vrot.lane.b32.xlu0 %v862, 16
        %v899 = vpop.permute.xlu0 %898
        %900 = vrot.lane.b32.xlu0 %v863, 16
        %v901 = vpop.permute.xlu0 %900
        %902 = vrot.lane.b32.xlu0 %v864, 16
        %v903 = vpop.permute.xlu0 %902
        %904 = vrot.lane.b32.xlu0 %v865, 16
        %v905 = vpop.permute.xlu0 %904
        %906 = vrot.lane.b32.xlu0 %v866, 16
        %v907 = vpop.permute.xlu0 %906
        %908 = vrot.lane.b32.xlu0 %v867, 16
        %v909 = vpop.permute.xlu0 %908
        %910 = vrot.lane.b32.xlu0 %v868, 16
        %v911 = vpop.permute.xlu0 %910
        %912 = vrot.lane.b32.xlu0 %v869, 16
        %v913 = vpop.permute.xlu0 %912
        %914 = vrot.lane.b32.xlu0 %v870, 16
        %v915 = vpop.permute.xlu0 %914
        %916 = vrot.lane.b32.xlu0 %v871, 16
        %v917 = vpop.permute.xlu0 %916
        %918 = vrot.lane.b32.xlu0 %v872, 16
        %v919 = vpop.permute.xlu0 %918
        %920 = vrot.lane.b32.xlu0 %v873, 16
        %v921 = vpop.permute.xlu0 %920
        %vm938 = vcmask 162944
        %939 = vst.msk [vmem:[#allocation4] sm:$0xff] %vm938, %v891
        %940 = vst.msk [vmem:[#allocation4 + $0x8] sm:$0xff] %vm938, %v893
        %941 = vst.msk [vmem:[#allocation4 + $0x10] sm:$0xff] %vm938, %v895
        %942 = vst.msk [vmem:[#allocation4 + $0x18] sm:$0xff] %vm938, %v897
        %943 = vst.msk [vmem:[#allocation4 + $0x20] sm:$0xff] %vm938, %v899
        %944 = vst.msk [vmem:[#allocation4 + $0x28] sm:$0xff] %vm938, %v901
        %945 = vst.msk [vmem:[#allocation4 + $0x30] sm:$0xff] %vm938, %v903
        %946 = vst.msk [vmem:[#allocation4 + $0x38] sm:$0xff] %vm938, %v905
        %947 = vst.msk [vmem:[#allocation4 + $0x40] sm:$0xff] %vm938, %v907
        %948 = vst.msk [vmem:[#allocation4 + $0x48] sm:$0xff] %vm938, %v909
        %949 = vst.msk [vmem:[#allocation4 + $0x50] sm:$0xff] %vm938, %v911
        %950 = vst.msk [vmem:[#allocation4 + $0x58] sm:$0xff] %vm938, %v913
        %951 = vst.msk [vmem:[#allocation4 + $0x60] sm:$0xff] %vm938, %v915
        %952 = vst.msk [vmem:[#allocation4 + $0x68] sm:$0xff] %vm938, %v917
        %953 = vst.msk [vmem:[#allocation4 + $0x70] sm:$0xff] %vm938, %v919
        %954 = vst.msk [vmem:[#allocation4 + $0x78] sm:$0xff] %vm938, %v921
        %s955 = scalar_lea.vmem [#allocation2], 24
        %v956 = vld [vmem:[%s955] sm:$0xff]
        %v957 = vld [vmem:[%s955 + $0x8] sm:$0xff]
        %v958 = vld [vmem:[%s955 + $0x18] sm:$0xff]
        %v959 = vld [vmem:[%s955 + $0x20] sm:$0xff]
        %v960 = vld [vmem:[%s955 + $0x30] sm:$0xff]
        %v961 = vld [vmem:[%s955 + $0x38] sm:$0xff]
        %v962 = vld [vmem:[%s955 + $0x48] sm:$0xff]
        %v963 = vld [vmem:[%s955 + $0x50] sm:$0xff]
        %v964 = vld [vmem:[%s955 + $0x60] sm:$0xff]
        %v965 = vld [vmem:[%s955 + $0x68] sm:$0xff]
        %v966 = vld [vmem:[%s955 + $0x78] sm:$0xff]
        %v967 = vld [vmem:[%s955 + $0x80] sm:$0xff]
        %v968 = vld [vmem:[%s955 + $0x90] sm:$0xff]
        %v969 = vld [vmem:[%s955 + $0x98] sm:$0xff]
        %v970 = vld [vmem:[%s955 + $0xa8] sm:$0xff]
        %v971 = vld [vmem:[%s955 + $0xb0] sm:$0xff]
        %v972 = vld [vmem:[%s955 + $0xc0] sm:$0xff]
        %v973 = vld [vmem:[%s955 + $0xc8] sm:$0xff]
        %v974 = vld [vmem:[%s955 + $0xd8] sm:$0xff]
        %v975 = vld [vmem:[%s955 + $0xe0] sm:$0xff]
        %v976 = vld [vmem:[%s955 + $0xf0] sm:$0xff]
        %v977 = vld [vmem:[%s955 + $0xf8] sm:$0xff]
        %v978 = vld [vmem:[%s955 + $0x108] sm:$0xff]
        %v979 = vld [vmem:[%s955 + $0x110] sm:$0xff]
        %v980 = vld [vmem:[%s955 + $0x120] sm:$0xff]
        %v981 = vld [vmem:[%s955 + $0x128] sm:$0xff]
        %v982 = vld [vmem:[%s955 + $0x138] sm:$0xff]
        %v983 = vld [vmem:[%s955 + $0x140] sm:$0xff]
        %v984 = vld [vmem:[%s955 + $0x150] sm:$0xff]
        %v985 = vld [vmem:[%s955 + $0x158] sm:$0xff]
        %v986 = vld [vmem:[%s955 + $0x168] sm:$0xff]
        %v987 = vld [vmem:[%s955 + $0x170] sm:$0xff]
        %v988 = vpack.c.bf16 %v957, %v956
        %v989 = vpack.c.bf16 %v959, %v958
        %v990 = vpack.c.bf16 %v961, %v960
        %v991 = vpack.c.bf16 %v963, %v962
        %v992 = vpack.c.bf16 %v965, %v964
        %v993 = vpack.c.bf16 %v967, %v966
        %v994 = vpack.c.bf16 %v969, %v968
        %v995 = vpack.c.bf16 %v971, %v970
        %v996 = vpack.c.bf16 %v973, %v972
        %v997 = vpack.c.bf16 %v975, %v974
        %v998 = vpack.c.bf16 %v977, %v976
        %v999 = vpack.c.bf16 %v979, %v978
        %v1000 = vpack.c.bf16 %v981, %v980
        %v1001 = vpack.c.bf16 %v983, %v982
        %v1002 = vpack.c.bf16 %v985, %v984
        %v1003 = vpack.c.bf16 %v987, %v986
        %1020 = vrot.lane.b32.xlu0 %v988, 20
        %v1021 = vpop.permute.xlu0 %1020
        %1022 = vrot.lane.b32.xlu0 %v989, 20
        %v1023 = vpop.permute.xlu0 %1022
        %1024 = vrot.lane.b32.xlu0 %v990, 20
        %v1025 = vpop.permute.xlu0 %1024
        %1026 = vrot.lane.b32.xlu0 %v991, 20
        %v1027 = vpop.permute.xlu0 %1026
        %1028 = vrot.lane.b32.xlu0 %v992, 20
        %v1029 = vpop.permute.xlu0 %1028
        %1030 = vrot.lane.b32.xlu0 %v993, 20
        %v1031 = vpop.permute.xlu0 %1030
        %1032 = vrot.lane.b32.xlu0 %v994, 20
        %v1033 = vpop.permute.xlu0 %1032
        %1034 = vrot.lane.b32.xlu0 %v995, 20
        %v1035 = vpop.permute.xlu0 %1034
        %1036 = vrot.lane.b32.xlu0 %v996, 20
        %v1037 = vpop.permute.xlu0 %1036
        %1038 = vrot.lane.b32.xlu0 %v997, 20
        %v1039 = vpop.permute.xlu0 %1038
        %1040 = vrot.lane.b32.xlu0 %v998, 20
        %v1041 = vpop.permute.xlu0 %1040
        %1042 = vrot.lane.b32.xlu0 %v999, 20
        %v1043 = vpop.permute.xlu0 %1042
        %1044 = vrot.lane.b32.xlu0 %v1000, 20
        %v1045 = vpop.permute.xlu0 %1044
        %1046 = vrot.lane.b32.xlu0 %v1001, 20
        %v1047 = vpop.permute.xlu0 %1046
        %1048 = vrot.lane.b32.xlu0 %v1002, 20
        %v1049 = vpop.permute.xlu0 %1048
        %1050 = vrot.lane.b32.xlu0 %v1003, 20
        %v1051 = vpop.permute.xlu0 %1050
        %vm1068 = vcmask 195744
        %1069 = vst.msk [vmem:[#allocation4] sm:$0xff] %vm1068, %v1021
        %1070 = vst.msk [vmem:[#allocation4 + $0x8] sm:$0xff] %vm1068, %v1023
        %1071 = vst.msk [vmem:[#allocation4 + $0x10] sm:$0xff] %vm1068, %v1025
        %1072 = vst.msk [vmem:[#allocation4 + $0x18] sm:$0xff] %vm1068, %v1027
        %1073 = vst.msk [vmem:[#allocation4 + $0x20] sm:$0xff] %vm1068, %v1029
        %1074 = vst.msk [vmem:[#allocation4 + $0x28] sm:$0xff] %vm1068, %v1031
        %1075 = vst.msk [vmem:[#allocation4 + $0x30] sm:$0xff] %vm1068, %v1033
        %1076 = vst.msk [vmem:[#allocation4 + $0x38] sm:$0xff] %vm1068, %v1035
        %1077 = vst.msk [vmem:[#allocation4 + $0x40] sm:$0xff] %vm1068, %v1037
        %1078 = vst.msk [vmem:[#allocation4 + $0x48] sm:$0xff] %vm1068, %v1039
        %1079 = vst.msk [vmem:[#allocation4 + $0x50] sm:$0xff] %vm1068, %v1041
        %1080 = vst.msk [vmem:[#allocation4 + $0x58] sm:$0xff] %vm1068, %v1043
        %1081 = vst.msk [vmem:[#allocation4 + $0x60] sm:$0xff] %vm1068, %v1045
        %1082 = vst.msk [vmem:[#allocation4 + $0x68] sm:$0xff] %vm1068, %v1047
        %1083 = vst.msk [vmem:[#allocation4 + $0x70] sm:$0xff] %vm1068, %v1049
        %1084 = vst.msk [vmem:[#allocation4 + $0x78] sm:$0xff] %vm1068, %v1051
        %v1085 = vld [vmem:[%s955 + $0x1] sm:$0xff]
        %v1086 = vld [vmem:[%s955 + $0x9] sm:$0xff]
        %v1087 = vld [vmem:[%s955 + $0x19] sm:$0xff]
        %v1088 = vld [vmem:[%s955 + $0x21] sm:$0xff]
        %v1089 = vld [vmem:[%s955 + $0x31] sm:$0xff]
        %v1090 = vld [vmem:[%s955 + $0x39] sm:$0xff]
        %v1091 = vld [vmem:[%s955 + $0x49] sm:$0xff]
        %v1092 = vld [vmem:[%s955 + $0x51] sm:$0xff]
        %v1093 = vld [vmem:[%s955 + $0x61] sm:$0xff]
        %v1094 = vld [vmem:[%s955 + $0x69] sm:$0xff]
        %v1095 = vld [vmem:[%s955 + $0x79] sm:$0xff]
        %v1096 = vld [vmem:[%s955 + $0x81] sm:$0xff]
        %v1097 = vld [vmem:[%s955 + $0x91] sm:$0xff]
        %v1098 = vld [vmem:[%s955 + $0x99] sm:$0xff]
        %v1099 = vld [vmem:[%s955 + $0xa9] sm:$0xff]
        %v1100 = vld [vmem:[%s955 + $0xb1] sm:$0xff]
        %v1101 = vld [vmem:[%s955 + $0xc1] sm:$0xff]
        %v1102 = vld [vmem:[%s955 + $0xc9] sm:$0xff]
        %v1103 = vld [vmem:[%s955 + $0xd9] sm:$0xff]
        %v1104 = vld [vmem:[%s955 + $0xe1] sm:$0xff]
        %v1105 = vld [vmem:[%s955 + $0xf1] sm:$0xff]
        %v1106 = vld [vmem:[%s955 + $0xf9] sm:$0xff]
        %v1107 = vld [vmem:[%s955 + $0x109] sm:$0xff]
        %v1108 = vld [vmem:[%s955 + $0x111] sm:$0xff]
        %v1109 = vld [vmem:[%s955 + $0x121] sm:$0xff]
        %v1110 = vld [vmem:[%s955 + $0x129] sm:$0xff]
        %v1111 = vld [vmem:[%s955 + $0x139] sm:$0xff]
        %v1112 = vld [vmem:[%s955 + $0x141] sm:$0xff]
        %v1113 = vld [vmem:[%s955 + $0x151] sm:$0xff]
        %v1114 = vld [vmem:[%s955 + $0x159] sm:$0xff]
        %v1115 = vld [vmem:[%s955 + $0x169] sm:$0xff]
        %v1116 = vld [vmem:[%s955 + $0x171] sm:$0xff]
        %v1117 = vpack.c.bf16 %v1086, %v1085
        %v1118 = vpack.c.bf16 %v1088, %v1087
        %v1119 = vpack.c.bf16 %v1090, %v1089
        %v1120 = vpack.c.bf16 %v1092, %v1091
        %v1121 = vpack.c.bf16 %v1094, %v1093
        %v1122 = vpack.c.bf16 %v1096, %v1095
        %v1123 = vpack.c.bf16 %v1098, %v1097
        %v1124 = vpack.c.bf16 %v1100, %v1099
        %v1125 = vpack.c.bf16 %v1102, %v1101
        %v1126 = vpack.c.bf16 %v1104, %v1103
        %v1127 = vpack.c.bf16 %v1106, %v1105
        %v1128 = vpack.c.bf16 %v1108, %v1107
        %v1129 = vpack.c.bf16 %v1110, %v1109
        %v1130 = vpack.c.bf16 %v1112, %v1111
        %v1131 = vpack.c.bf16 %v1114, %v1113
        %v1132 = vpack.c.bf16 %v1116, %v1115
        %1149 = vrot.lane.b32.xlu0 %v1117, 24
        %v1150 = vpop.permute.xlu0 %1149
        %1151 = vrot.lane.b32.xlu0 %v1118, 24
        %v1152 = vpop.permute.xlu0 %1151
        %1153 = vrot.lane.b32.xlu0 %v1119, 24
        %v1154 = vpop.permute.xlu0 %1153
        %1155 = vrot.lane.b32.xlu0 %v1120, 24
        %v1156 = vpop.permute.xlu0 %1155
        %1157 = vrot.lane.b32.xlu0 %v1121, 24
        %v1158 = vpop.permute.xlu0 %1157
        %1159 = vrot.lane.b32.xlu0 %v1122, 24
        %v1160 = vpop.permute.xlu0 %1159
        %1161 = vrot.lane.b32.xlu0 %v1123, 24
        %v1162 = vpop.permute.xlu0 %1161
        %1163 = vrot.lane.b32.xlu0 %v1124, 24
        %v1164 = vpop.permute.xlu0 %1163
        %1165 = vrot.lane.b32.xlu0 %v1125, 24
        %v1166 = vpop.permute.xlu0 %1165
        %1167 = vrot.lane.b32.xlu0 %v1126, 24
        %v1168 = vpop.permute.xlu0 %1167
        %1169 = vrot.lane.b32.xlu0 %v1127, 24
        %v1170 = vpop.permute.xlu0 %1169
        %1171 = vrot.lane.b32.xlu0 %v1128, 24
        %v1172 = vpop.permute.xlu0 %1171
        %1173 = vrot.lane.b32.xlu0 %v1129, 24
        %v1174 = vpop.permute.xlu0 %1173
        %1175 = vrot.lane.b32.xlu0 %v1130, 24
        %v1176 = vpop.permute.xlu0 %1175
        %1177 = vrot.lane.b32.xlu0 %v1131, 24
        %v1178 = vpop.permute.xlu0 %1177
        %1179 = vrot.lane.b32.xlu0 %v1132, 24
        %v1180 = vpop.permute.xlu0 %1179
        %vm1197 = vcmask 228544
        %1198 = vst.msk [vmem:[#allocation4] sm:$0xff] %vm1197, %v1150
        %1199 = vst.msk [vmem:[#allocation4 + $0x8] sm:$0xff] %vm1197, %v1152
        %1200 = vst.msk [vmem:[#allocation4 + $0x10] sm:$0xff] %vm1197, %v1154
        %1201 = vst.msk [vmem:[#allocation4 + $0x18] sm:$0xff] %vm1197, %v1156
        %1202 = vst.msk [vmem:[#allocation4 + $0x20] sm:$0xff] %vm1197, %v1158
        %1203 = vst.msk [vmem:[#allocation4 + $0x28] sm:$0xff] %vm1197, %v1160
        %1204 = vst.msk [vmem:[#allocation4 + $0x30] sm:$0xff] %vm1197, %v1162
        %1205 = vst.msk [vmem:[#allocation4 + $0x38] sm:$0xff] %vm1197, %v1164
        %1206 = vst.msk [vmem:[#allocation4 + $0x40] sm:$0xff] %vm1197, %v1166
        %1207 = vst.msk [vmem:[#allocation4 + $0x48] sm:$0xff] %vm1197, %v1168
        %1208 = vst.msk [vmem:[#allocation4 + $0x50] sm:$0xff] %vm1197, %v1170
        %1209 = vst.msk [vmem:[#allocation4 + $0x58] sm:$0xff] %vm1197, %v1172
        %1210 = vst.msk [vmem:[#allocation4 + $0x60] sm:$0xff] %vm1197, %v1174
        %1211 = vst.msk [vmem:[#allocation4 + $0x68] sm:$0xff] %vm1197, %v1176
        %1212 = vst.msk [vmem:[#allocation4 + $0x70] sm:$0xff] %vm1197, %v1178
        %1213 = vst.msk [vmem:[#allocation4 + $0x78] sm:$0xff] %vm1197, %v1180
        %v1214 = vld [vmem:[%s955 + $0x2] sm:$0xff]
        %v1215 = vld [vmem:[%s955 + $0xa] sm:$0xff]
        %v1216 = vld [vmem:[%s955 + $0x1a] sm:$0xff]
        %v1217 = vld [vmem:[%s955 + $0x22] sm:$0xff]
        %v1218 = vld [vmem:[%s955 + $0x32] sm:$0xff]
        %v1219 = vld [vmem:[%s955 + $0x3a] sm:$0xff]
        %v1220 = vld [vmem:[%s955 + $0x4a] sm:$0xff]
        %v1221 = vld [vmem:[%s955 + $0x52] sm:$0xff]
        %v1222 = vld [vmem:[%s955 + $0x62] sm:$0xff]
        %v1223 = vld [vmem:[%s955 + $0x6a] sm:$0xff]
        %v1224 = vld [vmem:[%s955 + $0x7a] sm:$0xff]
        %v1225 = vld [vmem:[%s955 + $0x82] sm:$0xff]
        %v1226 = vld [vmem:[%s955 + $0x92] sm:$0xff]
        %v1227 = vld [vmem:[%s955 + $0x9a] sm:$0xff]
        %v1228 = vld [vmem:[%s955 + $0xaa] sm:$0xff]
        %v1229 = vld [vmem:[%s955 + $0xb2] sm:$0xff]
        %v1230 = vld [vmem:[%s955 + $0xc2] sm:$0xff]
        %v1231 = vld [vmem:[%s955 + $0xca] sm:$0xff]
        %v1232 = vld [vmem:[%s955 + $0xda] sm:$0xff]
        %v1233 = vld [vmem:[%s955 + $0xe2] sm:$0xff]
        %v1234 = vld [vmem:[%s955 + $0xf2] sm:$0xff]
        %v1235 = vld [vmem:[%s955 + $0xfa] sm:$0xff]
        %v1236 = vld [vmem:[%s955 + $0x10a] sm:$0xff]
        %v1237 = vld [vmem:[%s955 + $0x112] sm:$0xff]
        %v1238 = vld [vmem:[%s955 + $0x122] sm:$0xff]
        %v1239 = vld [vmem:[%s955 + $0x12a] sm:$0xff]
        %v1240 = vld [vmem:[%s955 + $0x13a] sm:$0xff]
        %v1241 = vld [vmem:[%s955 + $0x142] sm:$0xff]
        %v1242 = vld [vmem:[%s955 + $0x152] sm:$0xff]
        %v1243 = vld [vmem:[%s955 + $0x15a] sm:$0xff]
        %v1244 = vld [vmem:[%s955 + $0x16a] sm:$0xff]
        %v1245 = vld [vmem:[%s955 + $0x172] sm:$0xff]
        %v1246 = vpack.c.bf16 %v1215, %v1214
        %v1247 = vpack.c.bf16 %v1217, %v1216
        %v1248 = vpack.c.bf16 %v1219, %v1218
        %v1249 = vpack.c.bf16 %v1221, %v1220
        %v1250 = vpack.c.bf16 %v1223, %v1222
        %v1251 = vpack.c.bf16 %v1225, %v1224
        %v1252 = vpack.c.bf16 %v1227, %v1226
        %v1253 = vpack.c.bf16 %v1229, %v1228
        %v1254 = vpack.c.bf16 %v1231, %v1230
        %v1255 = vpack.c.bf16 %v1233, %v1232
        %v1256 = vpack.c.bf16 %v1235, %v1234
        %v1257 = vpack.c.bf16 %v1237, %v1236
        %v1258 = vpack.c.bf16 %v1239, %v1238
        %v1259 = vpack.c.bf16 %v1241, %v1240
        %v1260 = vpack.c.bf16 %v1243, %v1242
        %v1261 = vpack.c.bf16 %v1245, %v1244
        %1278 = vrot.lane.b32.xlu0 %v1246, 28
        %v1279 = vpop.permute.xlu0 %1278
        %1280 = vrot.lane.b32.xlu0 %v1247, 28
        %v1281 = vpop.permute.xlu0 %1280
        %1282 = vrot.lane.b32.xlu0 %v1248, 28
        %v1283 = vpop.permute.xlu0 %1282
        %1284 = vrot.lane.b32.xlu0 %v1249, 28
        %v1285 = vpop.permute.xlu0 %1284
        %1286 = vrot.lane.b32.xlu0 %v1250, 28
        %v1287 = vpop.permute.xlu0 %1286
        %1288 = vrot.lane.b32.xlu0 %v1251, 28
        %v1289 = vpop.permute.xlu0 %1288
        %1290 = vrot.lane.b32.xlu0 %v1252, 28
        %v1291 = vpop.permute.xlu0 %1290
        %1292 = vrot.lane.b32.xlu0 %v1253, 28
        %v1293 = vpop.permute.xlu0 %1292
        %1294 = vrot.lane.b32.xlu0 %v1254, 28
        %v1295 = vpop.permute.xlu0 %1294
        %1296 = vrot.lane.b32.xlu0 %v1255, 28
        %v1297 = vpop.permute.xlu0 %1296
        %1298 = vrot.lane.b32.xlu0 %v1256, 28
        %v1299 = vpop.permute.xlu0 %1298
        %1300 = vrot.lane.b32.xlu0 %v1257, 28
        %v1301 = vpop.permute.xlu0 %1300
        %1302 = vrot.lane.b32.xlu0 %v1258, 28
        %v1303 = vpop.permute.xlu0 %1302
        %1304 = vrot.lane.b32.xlu0 %v1259, 28
        %v1305 = vpop.permute.xlu0 %1304
        %1306 = vrot.lane.b32.xlu0 %v1260, 28
        %v1307 = vpop.permute.xlu0 %1306
        %1308 = vrot.lane.b32.xlu0 %v1261, 28
        %v1309 = vpop.permute.xlu0 %1308
        %vm1326 = vcmask 261344
        %1327 = vst.msk [vmem:[#allocation4] sm:$0xff] %vm1326, %v1279
        %1328 = vst.msk [vmem:[#allocation4 + $0x8] sm:$0xff] %vm1326, %v1281
        %1329 = vst.msk [vmem:[#allocation4 + $0x10] sm:$0xff] %vm1326, %v1283
        %1330 = vst.msk [vmem:[#allocation4 + $0x18] sm:$0xff] %vm1326, %v1285
        %1331 = vst.msk [vmem:[#allocation4 + $0x20] sm:$0xff] %vm1326, %v1287
        %1332 = vst.msk [vmem:[#allocation4 + $0x28] sm:$0xff] %vm1326, %v1289
        %1333 = vst.msk [vmem:[#allocation4 + $0x30] sm:$0xff] %vm1326, %v1291
        %1334 = vst.msk [vmem:[#allocation4 + $0x38] sm:$0xff] %vm1326, %v1293
        %1335 = vst.msk [vmem:[#allocation4 + $0x40] sm:$0xff] %vm1326, %v1295
        %1336 = vst.msk [vmem:[#allocation4 + $0x48] sm:$0xff] %vm1326, %v1297
        %1337 = vst.msk [vmem:[#allocation4 + $0x50] sm:$0xff] %vm1326, %v1299
        %1338 = vst.msk [vmem:[#allocation4 + $0x58] sm:$0xff] %vm1326, %v1301
        %1339 = vst.msk [vmem:[#allocation4 + $0x60] sm:$0xff] %vm1326, %v1303
        %1340 = vst.msk [vmem:[#allocation4 + $0x68] sm:$0xff] %vm1326, %v1305
        %1341 = vst.msk [vmem:[#allocation4 + $0x70] sm:$0xff] %vm1326, %v1307
        %1342 = vst.msk [vmem:[#allocation4 + $0x78] sm:$0xff] %vm1326, %v1309
        %v1343 = vld [vmem:[%s955 + $0x3] sm:$0xff]
        %v1344 = vld [vmem:[%s955 + $0xb] sm:$0xff]
        %v1345 = vld [vmem:[%s955 + $0x1b] sm:$0xff]
        %v1346 = vld [vmem:[%s955 + $0x23] sm:$0xff]
        %v1347 = vld [vmem:[%s955 + $0x33] sm:$0xff]
        %v1348 = vld [vmem:[%s955 + $0x3b] sm:$0xff]
        %v1349 = vld [vmem:[%s955 + $0x4b] sm:$0xff]
        %v1350 = vld [vmem:[%s955 + $0x53] sm:$0xff]
        %v1351 = vld [vmem:[%s955 + $0x63] sm:$0xff]
        %v1352 = vld [vmem:[%s955 + $0x6b] sm:$0xff]
        %v1353 = vld [vmem:[%s955 + $0x7b] sm:$0xff]
        %v1354 = vld [vmem:[%s955 + $0x83] sm:$0xff]
        %v1355 = vld [vmem:[%s955 + $0x93] sm:$0xff]
        %v1356 = vld [vmem:[%s955 + $0x9b] sm:$0xff]
        %v1357 = vld [vmem:[%s955 + $0xab] sm:$0xff]
        %v1358 = vld [vmem:[%s955 + $0xb3] sm:$0xff]
        %v1359 = vld [vmem:[%s955 + $0xc3] sm:$0xff]
        %v1360 = vld [vmem:[%s955 + $0xcb] sm:$0xff]
        %v1361 = vld [vmem:[%s955 + $0xdb] sm:$0xff]
        %v1362 = vld [vmem:[%s955 + $0xe3] sm:$0xff]
        %v1363 = vld [vmem:[%s955 + $0xf3] sm:$0xff]
        %v1364 = vld [vmem:[%s955 + $0xfb] sm:$0xff]
        %v1365 = vld [vmem:[%s955 + $0x10b] sm:$0xff]
        %v1366 = vld [vmem:[%s955 + $0x113] sm:$0xff]
        %v1367 = vld [vmem:[%s955 + $0x123] sm:$0xff]
        %v1368 = vld [vmem:[%s955 + $0x12b] sm:$0xff]
        %v1369 = vld [vmem:[%s955 + $0x13b] sm:$0xff]
        %v1370 = vld [vmem:[%s955 + $0x143] sm:$0xff]
        %v1371 = vld [vmem:[%s955 + $0x153] sm:$0xff]
        %v1372 = vld [vmem:[%s955 + $0x15b] sm:$0xff]
        %v1373 = vld [vmem:[%s955 + $0x16b] sm:$0xff]
        %v1374 = vld [vmem:[%s955 + $0x173] sm:$0xff]
        %v1375 = vpack.c.bf16 %v1344, %v1343
        %v1376 = vpack.c.bf16 %v1346, %v1345
        %v1377 = vpack.c.bf16 %v1348, %v1347
        %v1378 = vpack.c.bf16 %v1350, %v1349
        %v1379 = vpack.c.bf16 %v1352, %v1351
        %v1380 = vpack.c.bf16 %v1354, %v1353
        %v1381 = vpack.c.bf16 %v1356, %v1355
        %v1382 = vpack.c.bf16 %v1358, %v1357
        %v1383 = vpack.c.bf16 %v1360, %v1359
        %v1384 = vpack.c.bf16 %v1362, %v1361
        %v1385 = vpack.c.bf16 %v1364, %v1363
        %v1386 = vpack.c.bf16 %v1366, %v1365
        %v1387 = vpack.c.bf16 %v1368, %v1367
        %v1388 = vpack.c.bf16 %v1370, %v1369
        %v1389 = vpack.c.bf16 %v1372, %v1371
        %v1390 = vpack.c.bf16 %v1374, %v1373
        %1407 = vrot.lane.b32.xlu0 %v1375, 32
        %v1408 = vpop.permute.xlu0 %1407
        %1409 = vrot.lane.b32.xlu0 %v1376, 32
        %v1410 = vpop.permute.xlu0 %1409
        %1411 = vrot.lane.b32.xlu0 %v1377, 32
        %v1412 = vpop.permute.xlu0 %1411
        %1413 = vrot.lane.b32.xlu0 %v1378, 32
        %v1414 = vpop.permute.xlu0 %1413
        %1415 = vrot.lane.b32.xlu0 %v1379, 32
        %v1416 = vpop.permute.xlu0 %1415
        %1417 = vrot.lane.b32.xlu0 %v1380, 32
        %v1418 = vpop.permute.xlu0 %1417
        %1419 = vrot.lane.b32.xlu0 %v1381, 32
        %v1420 = vpop.permute.xlu0 %1419
        %1421 = vrot.lane.b32.xlu0 %v1382, 32
        %v1422 = vpop.permute.xlu0 %1421
        %1423 = vrot.lane.b32.xlu0 %v1383, 32
        %v1424 = vpop.permute.xlu0 %1423
        %1425 = vrot.lane.b32.xlu0 %v1384, 32
        %v1426 = vpop.permute.xlu0 %1425
        %1427 = vrot.lane.b32.xlu0 %v1385, 32
        %v1428 = vpop.permute.xlu0 %1427
        %1429 = vrot.lane.b32.xlu0 %v1386, 32
        %v1430 = vpop.permute.xlu0 %1429
        %1431 = vrot.lane.b32.xlu0 %v1387, 32
        %v1432 = vpop.permute.xlu0 %1431
        %1433 = vrot.lane.b32.xlu0 %v1388, 32
        %v1434 = vpop.permute.xlu0 %1433
        %1435 = vrot.lane.b32.xlu0 %v1389, 32
        %v1436 = vpop.permute.xlu0 %1435
        %1437 = vrot.lane.b32.xlu0 %v1390, 32
        %v1438 = vpop.permute.xlu0 %1437
        %vm1455 = vcmask 294144
        %1456 = vst.msk [vmem:[#allocation4] sm:$0xff] %vm1455, %v1408
        %1457 = vst.msk [vmem:[#allocation4 + $0x8] sm:$0xff] %vm1455, %v1410
        %1458 = vst.msk [vmem:[#allocation4 + $0x10] sm:$0xff] %vm1455, %v1412
        %1459 = vst.msk [vmem:[#allocation4 + $0x18] sm:$0xff] %vm1455, %v1414
        %1460 = vst.msk [vmem:[#allocation4 + $0x20] sm:$0xff] %vm1455, %v1416
        %1461 = vst.msk [vmem:[#allocation4 + $0x28] sm:$0xff] %vm1455, %v1418
        %1462 = vst.msk [vmem:[#allocation4 + $0x30] sm:$0xff] %vm1455, %v1420
        %1463 = vst.msk [vmem:[#allocation4 + $0x38] sm:$0xff] %vm1455, %v1422
        %1464 = vst.msk [vmem:[#allocation4 + $0x40] sm:$0xff] %vm1455, %v1424
        %1465 = vst.msk [vmem:[#allocation4 + $0x48] sm:$0xff] %vm1455, %v1426
        %1466 = vst.msk [vmem:[#allocation4 + $0x50] sm:$0xff] %vm1455, %v1428
        %1467 = vst.msk [vmem:[#allocation4 + $0x58] sm:$0xff] %vm1455, %v1430
        %1468 = vst.msk [vmem:[#allocation4 + $0x60] sm:$0xff] %vm1455, %v1432
        %1469 = vst.msk [vmem:[#allocation4 + $0x68] sm:$0xff] %vm1455, %v1434
        %1470 = vst.msk [vmem:[#allocation4 + $0x70] sm:$0xff] %vm1455, %v1436
        %1471 = vst.msk [vmem:[#allocation4 + $0x78] sm:$0xff] %vm1455, %v1438
        %v1472 = vld [vmem:[%s955 + $0x4] sm:$0xff]
        %v1473 = vld [vmem:[%s955 + $0xc] sm:$0xff]
        %v1474 = vld [vmem:[%s955 + $0x1c] sm:$0xff]
        %v1475 = vld [vmem:[%s955 + $0x24] sm:$0xff]
        %v1476 = vld [vmem:[%s955 + $0x34] sm:$0xff]
        %v1477 = vld [vmem:[%s955 + $0x3c] sm:$0xff]
        %v1478 = vld [vmem:[%s955 + $0x4c] sm:$0xff]
        %v1479 = vld [vmem:[%s955 + $0x54] sm:$0xff]
        %v1480 = vld [vmem:[%s955 + $0x64] sm:$0xff]
        %v1481 = vld [vmem:[%s955 + $0x6c] sm:$0xff]
        %v1482 = vld [vmem:[%s955 + $0x7c] sm:$0xff]
        %v1483 = vld [vmem:[%s955 + $0x84] sm:$0xff]
        %v1484 = vld [vmem:[%s955 + $0x94] sm:$0xff]
        %v1485 = vld [vmem:[%s955 + $0x9c] sm:$0xff]
        %v1486 = vld [vmem:[%s955 + $0xac] sm:$0xff]
        %v1487 = vld [vmem:[%s955 + $0xb4] sm:$0xff]
        %v1488 = vld [vmem:[%s955 + $0xc4] sm:$0xff]
        %v1489 = vld [vmem:[%s955 + $0xcc] sm:$0xff]
        %v1490 = vld [vmem:[%s955 + $0xdc] sm:$0xff]
        %v1491 = vld [vmem:[%s955 + $0xe4] sm:$0xff]
        %v1492 = vld [vmem:[%s955 + $0xf4] sm:$0xff]
        %v1493 = vld [vmem:[%s955 + $0xfc] sm:$0xff]
        %v1494 = vld [vmem:[%s955 + $0x10c] sm:$0xff]
        %v1495 = vld [vmem:[%s955 + $0x114] sm:$0xff]
        %v1496 = vld [vmem:[%s955 + $0x124] sm:$0xff]
        %v1497 = vld [vmem:[%s955 + $0x12c] sm:$0xff]
        %v1498 = vld [vmem:[%s955 + $0x13c] sm:$0xff]
        %v1499 = vld [vmem:[%s955 + $0x144] sm:$0xff]
        %v1500 = vld [vmem:[%s955 + $0x154] sm:$0xff]
        %v1501 = vld [vmem:[%s955 + $0x15c] sm:$0xff]
        %v1502 = vld [vmem:[%s955 + $0x16c] sm:$0xff]
        %v1503 = vld [vmem:[%s955 + $0x174] sm:$0xff]
        %v1504 = vpack.c.bf16 %v1473, %v1472
        %v1505 = vpack.c.bf16 %v1475, %v1474
        %v1506 = vpack.c.bf16 %v1477, %v1476
        %v1507 = vpack.c.bf16 %v1479, %v1478
        %v1508 = vpack.c.bf16 %v1481, %v1480
        %v1509 = vpack.c.bf16 %v1483, %v1482
        %v1510 = vpack.c.bf16 %v1485, %v1484
        %v1511 = vpack.c.bf16 %v1487, %v1486
        %v1512 = vpack.c.bf16 %v1489, %v1488
        %v1513 = vpack.c.bf16 %v1491, %v1490
        %v1514 = vpack.c.bf16 %v1493, %v1492
        %v1515 = vpack.c.bf16 %v1495, %v1494
        %v1516 = vpack.c.bf16 %v1497, %v1496
        %v1517 = vpack.c.bf16 %v1499, %v1498
        %v1518 = vpack.c.bf16 %v1501, %v1500
        %v1519 = vpack.c.bf16 %v1503, %v1502
        %1536 = vrot.lane.b32.xlu0 %v1504, 36
        %v1537 = vpop.permute.xlu0 %1536
        %1538 = vrot.lane.b32.xlu0 %v1505, 36
        %v1539 = vpop.permute.xlu0 %1538
        %1540 = vrot.lane.b32.xlu0 %v1506, 36
        %v1541 = vpop.permute.xlu0 %1540
        %1542 = vrot.lane.b32.xlu0 %v1507, 36
        %v1543 = vpop.permute.xlu0 %1542
        %1544 = vrot.lane.b32.xlu0 %v1508, 36
        %v1545 = vpop.permute.xlu0 %1544
        %1546 = vrot.lane.b32.xlu0 %v1509, 36
        %v1547 = vpop.permute.xlu0 %1546
        %1548 = vrot.lane.b32.xlu0 %v1510, 36
        %v1549 = vpop.permute.xlu0 %1548
        %1550 = vrot.lane.b32.xlu0 %v1511, 36
        %v1551 = vpop.permute.xlu0 %1550
        %1552 = vrot.lane.b32.xlu0 %v1512, 36
        %v1553 = vpop.permute.xlu0 %1552
        %1554 = vrot.lane.b32.xlu0 %v1513, 36
        %v1555 = vpop.permute.xlu0 %1554
        %1556 = vrot.lane.b32.xlu0 %v1514, 36
        %v1557 = vpop.permute.xlu0 %1556
        %1558 = vrot.lane.b32.xlu0 %v1515, 36
        %v1559 = vpop.permute.xlu0 %1558
        %1560 = vrot.lane.b32.xlu0 %v1516, 36
        %v1561 = vpop.permute.xlu0 %1560
        %1562 = vrot.lane.b32.xlu0 %v1517, 36
        %v1563 = vpop.permute.xlu0 %1562
        %1564 = vrot.lane.b32.xlu0 %v1518, 36
        %v1565 = vpop.permute.xlu0 %1564
        %1566 = vrot.lane.b32.xlu0 %v1519, 36
        %v1567 = vpop.permute.xlu0 %1566
        %vm1584 = vcmask 326944
        %1585 = vst.msk [vmem:[#allocation4] sm:$0xff] %vm1584, %v1537
        %1586 = vst.msk [vmem:[#allocation4 + $0x8] sm:$0xff] %vm1584, %v1539
        %1587 = vst.msk [vmem:[#allocation4 + $0x10] sm:$0xff] %vm1584, %v1541
        %1588 = vst.msk [vmem:[#allocation4 + $0x18] sm:$0xff] %vm1584, %v1543
        %1589 = vst.msk [vmem:[#allocation4 + $0x20] sm:$0xff] %vm1584, %v1545
        %1590 = vst.msk [vmem:[#allocation4 + $0x28] sm:$0xff] %vm1584, %v1547
        %1591 = vst.msk [vmem:[#allocation4 + $0x30] sm:$0xff] %vm1584, %v1549
        %1592 = vst.msk [vmem:[#allocation4 + $0x38] sm:$0xff] %vm1584, %v1551
        %1593 = vst.msk [vmem:[#allocation4 + $0x40] sm:$0xff] %vm1584, %v1553
        %1594 = vst.msk [vmem:[#allocation4 + $0x48] sm:$0xff] %vm1584, %v1555
        %1595 = vst.msk [vmem:[#allocation4 + $0x50] sm:$0xff] %vm1584, %v1557
        %1596 = vst.msk [vmem:[#allocation4 + $0x58] sm:$0xff] %vm1584, %v1559
        %1597 = vst.msk [vmem:[#allocation4 + $0x60] sm:$0xff] %vm1584, %v1561
        %1598 = vst.msk [vmem:[#allocation4 + $0x68] sm:$0xff] %vm1584, %v1563
        %1599 = vst.msk [vmem:[#allocation4 + $0x70] sm:$0xff] %vm1584, %v1565
        %1600 = vst.msk [vmem:[#allocation4 + $0x78] sm:$0xff] %vm1584, %v1567
        %v1601 = vld [vmem:[%s341] sm:$0xff]
        %v1602 = vld [vmem:[%s341 + $0x8] sm:$0xff]
        %v1603 = vld [vmem:[%s341 + $0x18] sm:$0xff]
        %v1604 = vld [vmem:[%s341 + $0x20] sm:$0xff]
        %v1605 = vld [vmem:[%s341 + $0x30] sm:$0xff]
        %v1606 = vld [vmem:[%s341 + $0x38] sm:$0xff]
        %v1607 = vld [vmem:[%s341 + $0x48] sm:$0xff]
        %v1608 = vld [vmem:[%s341 + $0x50] sm:$0xff]
        %v1609 = vld [vmem:[%s341 + $0x60] sm:$0xff]
        %v1610 = vld [vmem:[%s341 + $0x68] sm:$0xff]
        %v1611 = vld [vmem:[%s341 + $0x78] sm:$0xff]
        %v1612 = vld [vmem:[%s341 + $0x80] sm:$0xff]
        %v1613 = vld [vmem:[%s341 + $0x90] sm:$0xff]
        %v1614 = vld [vmem:[%s341 + $0x98] sm:$0xff]
        %v1615 = vld [vmem:[%s341 + $0xa8] sm:$0xff]
        %v1616 = vld [vmem:[%s341 + $0xb0] sm:$0xff]
        %v1617 = vld [vmem:[%s341 + $0xc0] sm:$0xff]
        %v1618 = vld [vmem:[%s341 + $0xc8] sm:$0xff]
        %v1619 = vld [vmem:[%s341 + $0xd8] sm:$0xff]
        %v1620 = vld [vmem:[%s341 + $0xe0] sm:$0xff]
        %v1621 = vld [vmem:[%s341 + $0xf0] sm:$0xff]
        %v1622 = vld [vmem:[%s341 + $0xf8] sm:$0xff]
        %v1623 = vld [vmem:[%s341 + $0x108] sm:$0xff]
        %v1624 = vld [vmem:[%s341 + $0x110] sm:$0xff]
        %v1625 = vld [vmem:[%s341 + $0x120] sm:$0xff]
        %v1626 = vld [vmem:[%s341 + $0x128] sm:$0xff]
        %v1627 = vld [vmem:[%s341 + $0x138] sm:$0xff]
        %v1628 = vld [vmem:[%s341 + $0x140] sm:$0xff]
        %v1629 = vld [vmem:[%s341 + $0x150] sm:$0xff]
        %v1630 = vld [vmem:[%s341 + $0x158] sm:$0xff]
        %v1631 = vld [vmem:[%s341 + $0x168] sm:$0xff]
        %v1632 = vld [vmem:[%s341 + $0x170] sm:$0xff]
        %v1633 = vpack.c.bf16 %v1602, %v1601
        %v1634 = vpack.c.bf16 %v1604, %v1603
        %v1635 = vpack.c.bf16 %v1606, %v1605
        %v1636 = vpack.c.bf16 %v1608, %v1607
        %v1637 = vpack.c.bf16 %v1610, %v1609
        %v1638 = vpack.c.bf16 %v1612, %v1611
        %v1639 = vpack.c.bf16 %v1614, %v1613
        %v1640 = vpack.c.bf16 %v1616, %v1615
        %v1641 = vpack.c.bf16 %v1618, %v1617
        %v1642 = vpack.c.bf16 %v1620, %v1619
        %v1643 = vpack.c.bf16 %v1622, %v1621
        %v1644 = vpack.c.bf16 %v1624, %v1623
        %v1645 = vpack.c.bf16 %v1626, %v1625
        %v1646 = vpack.c.bf16 %v1628, %v1627
        %v1647 = vpack.c.bf16 %v1630, %v1629
        %v1648 = vpack.c.bf16 %v1632, %v1631
        %1665 = vrot.lane.b32.xlu0 %v1633, 40
        %v1666 = vpop.permute.xlu0 %1665
        %1667 = vrot.lane.b32.xlu0 %v1634, 40
        %v1668 = vpop.permute.xlu0 %1667
        %1669 = vrot.lane.b32.xlu0 %v1635, 40
        %v1670 = vpop.permute.xlu0 %1669
        %1671 = vrot.lane.b32.xlu0 %v1636, 40
        %v1672 = vpop.permute.xlu0 %1671
        %1673 = vrot.lane.b32.xlu0 %v1637, 40
        %v1674 = vpop.permute.xlu0 %1673
        %1675 = vrot.lane.b32.xlu0 %v1638, 40
        %v1676 = vpop.permute.xlu0 %1675
        %1677 = vrot.lane.b32.xlu0 %v1639, 40
        %v1678 = vpop.permute.xlu0 %1677
        %1679 = vrot.lane.b32.xlu0 %v1640, 40
        %v1680 = vpop.permute.xlu0 %1679
        %1681 = vrot.lane.b32.xlu0 %v1641, 40
        %v1682 = vpop.permute.xlu0 %1681
        %1683 = vrot.lane.b32.xlu0 %v1642, 40
        %v1684 = vpop.permute.xlu0 %1683
        %1685 = vrot.lane.b32.xlu0 %v1643, 40
        %v1686 = vpop.permute.xlu0 %1685
        %1687 = vrot.lane.b32.xlu0 %v1644, 40
        %v1688 = vpop.permute.xlu0 %1687
        %1689 = vrot.lane.b32.xlu0 %v1645, 40
        %v1690 = vpop.permute.xlu0 %1689
        %1691 = vrot.lane.b32.xlu0 %v1646, 40
        %v1692 = vpop.permute.xlu0 %1691
        %1693 = vrot.lane.b32.xlu0 %v1647, 40
        %v1694 = vpop.permute.xlu0 %1693
        %1695 = vrot.lane.b32.xlu0 %v1648, 40
        %v1696 = vpop.permute.xlu0 %1695
        %vm1713 = vcmask 359744
        %1714 = vst.msk [vmem:[#allocation4] sm:$0xff] %vm1713, %v1666
        %1715 = vst.msk [vmem:[#allocation4 + $0x8] sm:$0xff] %vm1713, %v1668
        %1716 = vst.msk [vmem:[#allocation4 + $0x10] sm:$0xff] %vm1713, %v1670
        %1717 = vst.msk [vmem:[#allocation4 + $0x18] sm:$0xff] %vm1713, %v1672
        %1718 = vst.msk [vmem:[#allocation4 + $0x20] sm:$0xff] %vm1713, %v1674
        %1719 = vst.msk [vmem:[#allocation4 + $0x28] sm:$0xff] %vm1713, %v1676
        %1720 = vst.msk [vmem:[#allocation4 + $0x30] sm:$0xff] %vm1713, %v1678
        %1721 = vst.msk [vmem:[#allocation4 + $0x38] sm:$0xff] %vm1713, %v1680
        %1722 = vst.msk [vmem:[#allocation4 + $0x40] sm:$0xff] %vm1713, %v1682
        %1723 = vst.msk [vmem:[#allocation4 + $0x48] sm:$0xff] %vm1713, %v1684
        %1724 = vst.msk [vmem:[#allocation4 + $0x50] sm:$0xff] %vm1713, %v1686
        %1725 = vst.msk [vmem:[#allocation4 + $0x58] sm:$0xff] %vm1713, %v1688
        %1726 = vst.msk [vmem:[#allocation4 + $0x60] sm:$0xff] %vm1713, %v1690
        %1727 = vst.msk [vmem:[#allocation4 + $0x68] sm:$0xff] %vm1713, %v1692
        %1728 = vst.msk [vmem:[#allocation4 + $0x70] sm:$0xff] %vm1713, %v1694
        %1729 = vst.msk [vmem:[#allocation4 + $0x78] sm:$0xff] %vm1713, %v1696
        %v1730 = vld [vmem:[%s341 + $0x1] sm:$0xff]
        %v1731 = vld [vmem:[%s341 + $0x9] sm:$0xff]
        %v1732 = vld [vmem:[%s341 + $0x19] sm:$0xff]
        %v1733 = vld [vmem:[%s341 + $0x21] sm:$0xff]
        %v1734 = vld [vmem:[%s341 + $0x31] sm:$0xff]
        %v1735 = vld [vmem:[%s341 + $0x39] sm:$0xff]
        %v1736 = vld [vmem:[%s341 + $0x49] sm:$0xff]
        %v1737 = vld [vmem:[%s341 + $0x51] sm:$0xff]
        %v1738 = vld [vmem:[%s341 + $0x61] sm:$0xff]
        %v1739 = vld [vmem:[%s341 + $0x69] sm:$0xff]
        %v1740 = vld [vmem:[%s341 + $0x79] sm:$0xff]
        %v1741 = vld [vmem:[%s341 + $0x81] sm:$0xff]
        %v1742 = vld [vmem:[%s341 + $0x91] sm:$0xff]
        %v1743 = vld [vmem:[%s341 + $0x99] sm:$0xff]
        %v1744 = vld [vmem:[%s341 + $0xa9] sm:$0xff]
        %v1745 = vld [vmem:[%s341 + $0xb1] sm:$0xff]
        %v1746 = vld [vmem:[%s341 + $0xc1] sm:$0xff]
        %v1747 = vld [vmem:[%s341 + $0xc9] sm:$0xff]
        %v1748 = vld [vmem:[%s341 + $0xd9] sm:$0xff]
        %v1749 = vld [vmem:[%s341 + $0xe1] sm:$0xff]
        %v1750 = vld [vmem:[%s341 + $0xf1] sm:$0xff]
        %v1751 = vld [vmem:[%s341 + $0xf9] sm:$0xff]
        %v1752 = vld [vmem:[%s341 + $0x109] sm:$0xff]
        %v1753 = vld [vmem:[%s341 + $0x111] sm:$0xff]
        %v1754 = vld [vmem:[%s341 + $0x121] sm:$0xff]
        %v1755 = vld [vmem:[%s341 + $0x129] sm:$0xff]
        %v1756 = vld [vmem:[%s341 + $0x139] sm:$0xff]
        %v1757 = vld [vmem:[%s341 + $0x141] sm:$0xff]
        %v1758 = vld [vmem:[%s341 + $0x151] sm:$0xff]
        %v1759 = vld [vmem:[%s341 + $0x159] sm:$0xff]
        %v1760 = vld [vmem:[%s341 + $0x169] sm:$0xff]
        %v1761 = vld [vmem:[%s341 + $0x171] sm:$0xff]
        %v1762 = vpack.c.bf16 %v1731, %v1730
        %v1763 = vpack.c.bf16 %v1733, %v1732
        %v1764 = vpack.c.bf16 %v1735, %v1734
        %v1765 = vpack.c.bf16 %v1737, %v1736
        %v1766 = vpack.c.bf16 %v1739, %v1738
        %v1767 = vpack.c.bf16 %v1741, %v1740
        %v1768 = vpack.c.bf16 %v1743, %v1742
        %v1769 = vpack.c.bf16 %v1745, %v1744
        %v1770 = vpack.c.bf16 %v1747, %v1746
        %v1771 = vpack.c.bf16 %v1749, %v1748
        %v1772 = vpack.c.bf16 %v1751, %v1750
        %v1773 = vpack.c.bf16 %v1753, %v1752
        %v1774 = vpack.c.bf16 %v1755, %v1754
        %v1775 = vpack.c.bf16 %v1757, %v1756
        %v1776 = vpack.c.bf16 %v1759, %v1758
        %v1777 = vpack.c.bf16 %v1761, %v1760
        %1794 = vrot.lane.b32.xlu0 %v1762, 44
        %v1795 = vpop.permute.xlu0 %1794
        %1796 = vrot.lane.b32.xlu0 %v1763, 44
        %v1797 = vpop.permute.xlu0 %1796
        %1798 = vrot.lane.b32.xlu0 %v1764, 44
        %v1799 = vpop.permute.xlu0 %1798
        %1800 = vrot.lane.b32.xlu0 %v1765, 44
        %v1801 = vpop.permute.xlu0 %1800
        %1802 = vrot.lane.b32.xlu0 %v1766, 44
        %v1803 = vpop.permute.xlu0 %1802
        %1804 = vrot.lane.b32.xlu0 %v1767, 44
        %v1805 = vpop.permute.xlu0 %1804
        %1806 = vrot.lane.b32.xlu0 %v1768, 44
        %v1807 = vpop.permute.xlu0 %1806
        %1808 = vrot.lane.b32.xlu0 %v1769, 44
        %v1809 = vpop.permute.xlu0 %1808
        %1810 = vrot.lane.b32.xlu0 %v1770, 44
        %v1811 = vpop.permute.xlu0 %1810
        %1812 = vrot.lane.b32.xlu0 %v1771, 44
        %v1813 = vpop.permute.xlu0 %1812
        %1814 = vrot.lane.b32.xlu0 %v1772, 44
        %v1815 = vpop.permute.xlu0 %1814
        %1816 = vrot.lane.b32.xlu0 %v1773, 44
        %v1817 = vpop.permute.xlu0 %1816
        %1818 = vrot.lane.b32.xlu0 %v1774, 44
        %v1819 = vpop.permute.xlu0 %1818
        %1820 = vrot.lane.b32.xlu0 %v1775, 44
        %v1821 = vpop.permute.xlu0 %1820
        %1822 = vrot.lane.b32.xlu0 %v1776, 44
        %v1823 = vpop.permute.xlu0 %1822
        %1824 = vrot.lane.b32.xlu0 %v1777, 44
        %v1825 = vpop.permute.xlu0 %1824
        %vm1842 = vcmask 392544
        %1843 = vst.msk [vmem:[#allocation4] sm:$0xff] %vm1842, %v1795
        %1844 = vst.msk [vmem:[#allocation4 + $0x8] sm:$0xff] %vm1842, %v1797
        %1845 = vst.msk [vmem:[#allocation4 + $0x10] sm:$0xff] %vm1842, %v1799
        %1846 = vst.msk [vmem:[#allocation4 + $0x18] sm:$0xff] %vm1842, %v1801
        %1847 = vst.msk [vmem:[#allocation4 + $0x20] sm:$0xff] %vm1842, %v1803
        %1848 = vst.msk [vmem:[#allocation4 + $0x28] sm:$0xff] %vm1842, %v1805
        %1849 = vst.msk [vmem:[#allocation4 + $0x30] sm:$0xff] %vm1842, %v1807
        %1850 = vst.msk [vmem:[#allocation4 + $0x38] sm:$0xff] %vm1842, %v1809
        %1851 = vst.msk [vmem:[#allocation4 + $0x40] sm:$0xff] %vm1842, %v1811
        %1852 = vst.msk [vmem:[#allocation4 + $0x48] sm:$0xff] %vm1842, %v1813
        %1853 = vst.msk [vmem:[#allocation4 + $0x50] sm:$0xff] %vm1842, %v1815
        %1854 = vst.msk [vmem:[#allocation4 + $0x58] sm:$0xff] %vm1842, %v1817
        %1855 = vst.msk [vmem:[#allocation4 + $0x60] sm:$0xff] %vm1842, %v1819
        %1856 = vst.msk [vmem:[#allocation4 + $0x68] sm:$0xff] %vm1842, %v1821
        %1857 = vst.msk [vmem:[#allocation4 + $0x70] sm:$0xff] %vm1842, %v1823
        %1858 = vst.msk [vmem:[#allocation4 + $0x78] sm:$0xff] %vm1842, %v1825
        %v1859 = vld [vmem:[%s341 + $0x2] sm:$0xff]
        %v1860 = vld [vmem:[%s341 + $0xa] sm:$0xff]
        %v1861 = vld [vmem:[%s341 + $0x1a] sm:$0xff]
        %v1862 = vld [vmem:[%s341 + $0x22] sm:$0xff]
        %v1863 = vld [vmem:[%s341 + $0x32] sm:$0xff]
        %v1864 = vld [vmem:[%s341 + $0x3a] sm:$0xff]
        %v1865 = vld [vmem:[%s341 + $0x4a] sm:$0xff]
        %v1866 = vld [vmem:[%s341 + $0x52] sm:$0xff]
        %v1867 = vld [vmem:[%s341 + $0x62] sm:$0xff]
        %v1868 = vld [vmem:[%s341 + $0x6a] sm:$0xff]
        %v1869 = vld [vmem:[%s341 + $0x7a] sm:$0xff]
        %v1870 = vld [vmem:[%s341 + $0x82] sm:$0xff]
        %v1871 = vld [vmem:[%s341 + $0x92] sm:$0xff]
        %v1872 = vld [vmem:[%s341 + $0x9a] sm:$0xff]
        %v1873 = vld [vmem:[%s341 + $0xaa] sm:$0xff]
        %v1874 = vld [vmem:[%s341 + $0xb2] sm:$0xff]
        %v1875 = vld [vmem:[%s341 + $0xc2] sm:$0xff]
        %v1876 = vld [vmem:[%s341 + $0xca] sm:$0xff]
        %v1877 = vld [vmem:[%s341 + $0xda] sm:$0xff]
        %v1878 = vld [vmem:[%s341 + $0xe2] sm:$0xff]
        %v1879 = vld [vmem:[%s341 + $0xf2] sm:$0xff]
        %v1880 = vld [vmem:[%s341 + $0xfa] sm:$0xff]
        %v1881 = vld [vmem:[%s341 + $0x10a] sm:$0xff]
        %v1882 = vld [vmem:[%s341 + $0x112] sm:$0xff]
        %v1883 = vld [vmem:[%s341 + $0x122] sm:$0xff]
        %v1884 = vld [vmem:[%s341 + $0x12a] sm:$0xff]
        %v1885 = vld [vmem:[%s341 + $0x13a] sm:$0xff]
        %v1886 = vld [vmem:[%s341 + $0x142] sm:$0xff]
        %v1887 = vld [vmem:[%s341 + $0x152] sm:$0xff]
        %v1888 = vld [vmem:[%s341 + $0x15a] sm:$0xff]
        %v1889 = vld [vmem:[%s341 + $0x16a] sm:$0xff]
        %v1890 = vld [vmem:[%s341 + $0x172] sm:$0xff]
        %v1891 = vpack.c.bf16 %v1860, %v1859
        %v1892 = vpack.c.bf16 %v1862, %v1861
        %v1893 = vpack.c.bf16 %v1864, %v1863
        %v1894 = vpack.c.bf16 %v1866, %v1865
        %v1895 = vpack.c.bf16 %v1868, %v1867
        %v1896 = vpack.c.bf16 %v1870, %v1869
        %v1897 = vpack.c.bf16 %v1872, %v1871
        %v1898 = vpack.c.bf16 %v1874, %v1873
        %v1899 = vpack.c.bf16 %v1876, %v1875
        %v1900 = vpack.c.bf16 %v1878, %v1877
        %v1901 = vpack.c.bf16 %v1880, %v1879
        %v1902 = vpack.c.bf16 %v1882, %v1881
        %v1903 = vpack.c.bf16 %v1884, %v1883
        %v1904 = vpack.c.bf16 %v1886, %v1885
        %v1905 = vpack.c.bf16 %v1888, %v1887
        %v1906 = vpack.c.bf16 %v1890, %v1889
        %1923 = vrot.lane.b32.xlu0 %v1891, 48
        %v1924 = vpop.permute.xlu0 %1923
        %1925 = vrot.lane.b32.xlu0 %v1892, 48
        %v1926 = vpop.permute.xlu0 %1925
        %1927 = vrot.lane.b32.xlu0 %v1893, 48
        %v1928 = vpop.permute.xlu0 %1927
        %1929 = vrot.lane.b32.xlu0 %v1894, 48
        %v1930 = vpop.permute.xlu0 %1929
        %1931 = vrot.lane.b32.xlu0 %v1895, 48
        %v1932 = vpop.permute.xlu0 %1931
        %1933 = vrot.lane.b32.xlu0 %v1896, 48
        %v1934 = vpop.permute.xlu0 %1933
        %1935 = vrot.lane.b32.xlu0 %v1897, 48
        %v1936 = vpop.permute.xlu0 %1935
        %1937 = vrot.lane.b32.xlu0 %v1898, 48
        %v1938 = vpop.permute.xlu0 %1937
        %1939 = vrot.lane.b32.xlu0 %v1899, 48
        %v1940 = vpop.permute.xlu0 %1939
        %1941 = vrot.lane.b32.xlu0 %v1900, 48
        %v1942 = vpop.permute.xlu0 %1941
        %1943 = vrot.lane.b32.xlu0 %v1901, 48
        %v1944 = vpop.permute.xlu0 %1943
        %1945 = vrot.lane.b32.xlu0 %v1902, 48
        %v1946 = vpop.permute.xlu0 %1945
        %1947 = vrot.lane.b32.xlu0 %v1903, 48
        %v1948 = vpop.permute.xlu0 %1947
        %1949 = vrot.lane.b32.xlu0 %v1904, 48
        %v1950 = vpop.permute.xlu0 %1949
        %1951 = vrot.lane.b32.xlu0 %v1905, 48
        %v1952 = vpop.permute.xlu0 %1951
        %1953 = vrot.lane.b32.xlu0 %v1906, 48
        %v1954 = vpop.permute.xlu0 %1953
        %vm1971 = vcmask 425344
        %1972 = vst.msk [vmem:[#allocation4] sm:$0xff] %vm1971, %v1924
        %1973 = vst.msk [vmem:[#allocation4 + $0x8] sm:$0xff] %vm1971, %v1926
        %1974 = vst.msk [vmem:[#allocation4 + $0x10] sm:$0xff] %vm1971, %v1928
        %1975 = vst.msk [vmem:[#allocation4 + $0x18] sm:$0xff] %vm1971, %v1930
        %1976 = vst.msk [vmem:[#allocation4 + $0x20] sm:$0xff] %vm1971, %v1932
        %1977 = vst.msk [vmem:[#allocation4 + $0x28] sm:$0xff] %vm1971, %v1934
        %1978 = vst.msk [vmem:[#allocation4 + $0x30] sm:$0xff] %vm1971, %v1936
        %1979 = vst.msk [vmem:[#allocation4 + $0x38] sm:$0xff] %vm1971, %v1938
        %1980 = vst.msk [vmem:[#allocation4 + $0x40] sm:$0xff] %vm1971, %v1940
        %1981 = vst.msk [vmem:[#allocation4 + $0x48] sm:$0xff] %vm1971, %v1942
        %1982 = vst.msk [vmem:[#allocation4 + $0x50] sm:$0xff] %vm1971, %v1944
        %1983 = vst.msk [vmem:[#allocation4 + $0x58] sm:$0xff] %vm1971, %v1946
        %1984 = vst.msk [vmem:[#allocation4 + $0x60] sm:$0xff] %vm1971, %v1948
        %1985 = vst.msk [vmem:[#allocation4 + $0x68] sm:$0xff] %vm1971, %v1950
        %1986 = vst.msk [vmem:[#allocation4 + $0x70] sm:$0xff] %vm1971, %v1952
        %1987 = vst.msk [vmem:[#allocation4 + $0x78] sm:$0xff] %vm1971, %v1954
        %v1988 = vld [vmem:[%s341 + $0x3] sm:$0xff]
        %v1989 = vld [vmem:[%s341 + $0xb] sm:$0xff]
        %v1990 = vld [vmem:[%s341 + $0x1b] sm:$0xff]
        %v1991 = vld [vmem:[%s341 + $0x23] sm:$0xff]
        %v1992 = vld [vmem:[%s341 + $0x33] sm:$0xff]
        %v1993 = vld [vmem:[%s341 + $0x3b] sm:$0xff]
        %v1994 = vld [vmem:[%s341 + $0x4b] sm:$0xff]
        %v1995 = vld [vmem:[%s341 + $0x53] sm:$0xff]
        %v1996 = vld [vmem:[%s341 + $0x63] sm:$0xff]
        %v1997 = vld [vmem:[%s341 + $0x6b] sm:$0xff]
        %v1998 = vld [vmem:[%s341 + $0x7b] sm:$0xff]
        %v1999 = vld [vmem:[%s341 + $0x83] sm:$0xff]
        %v2000 = vld [vmem:[%s341 + $0x93] sm:$0xff]
        %v2001 = vld [vmem:[%s341 + $0x9b] sm:$0xff]
        %v2002 = vld [vmem:[%s341 + $0xab] sm:$0xff]
        %v2003 = vld [vmem:[%s341 + $0xb3] sm:$0xff]
        %v2004 = vld [vmem:[%s341 + $0xc3] sm:$0xff]
        %v2005 = vld [vmem:[%s341 + $0xcb] sm:$0xff]
        %v2006 = vld [vmem:[%s341 + $0xdb] sm:$0xff]
        %v2007 = vld [vmem:[%s341 + $0xe3] sm:$0xff]
        %v2008 = vld [vmem:[%s341 + $0xf3] sm:$0xff]
        %v2009 = vld [vmem:[%s341 + $0xfb] sm:$0xff]
        %v2010 = vld [vmem:[%s341 + $0x10b] sm:$0xff]
        %v2011 = vld [vmem:[%s341 + $0x113] sm:$0xff]
        %v2012 = vld [vmem:[%s341 + $0x123] sm:$0xff]
        %v2013 = vld [vmem:[%s341 + $0x12b] sm:$0xff]
        %v2014 = vld [vmem:[%s341 + $0x13b] sm:$0xff]
        %v2015 = vld [vmem:[%s341 + $0x143] sm:$0xff]
        %v2016 = vld [vmem:[%s341 + $0x153] sm:$0xff]
        %v2017 = vld [vmem:[%s341 + $0x15b] sm:$0xff]
        %v2018 = vld [vmem:[%s341 + $0x16b] sm:$0xff]
        %v2019 = vld [vmem:[%s341 + $0x173] sm:$0xff]
        %v2020 = vpack.c.bf16 %v1989, %v1988
        %v2021 = vpack.c.bf16 %v1991, %v1990
        %v2022 = vpack.c.bf16 %v1993, %v1992
        %v2023 = vpack.c.bf16 %v1995, %v1994
        %v2024 = vpack.c.bf16 %v1997, %v1996
        %v2025 = vpack.c.bf16 %v1999, %v1998
        %v2026 = vpack.c.bf16 %v2001, %v2000
        %v2027 = vpack.c.bf16 %v2003, %v2002
        %v2028 = vpack.c.bf16 %v2005, %v2004
        %v2029 = vpack.c.bf16 %v2007, %v2006
        %v2030 = vpack.c.bf16 %v2009, %v2008
        %v2031 = vpack.c.bf16 %v2011, %v2010
        %v2032 = vpack.c.bf16 %v2013, %v2012
        %v2033 = vpack.c.bf16 %v2015, %v2014
        %v2034 = vpack.c.bf16 %v2017, %v2016
        %v2035 = vpack.c.bf16 %v2019, %v2018
        %2052 = vrot.lane.b32.xlu0 %v2020, 52
        %v2053 = vpop.permute.xlu0 %2052
        %2054 = vrot.lane.b32.xlu0 %v2021, 52
        %v2055 = vpop.permute.xlu0 %2054
        %2056 = vrot.lane.b32.xlu0 %v2022, 52
        %v2057 = vpop.permute.xlu0 %2056
        %2058 = vrot.lane.b32.xlu0 %v2023, 52
        %v2059 = vpop.permute.xlu0 %2058
        %2060 = vrot.lane.b32.xlu0 %v2024, 52
        %v2061 = vpop.permute.xlu0 %2060
        %2062 = vrot.lane.b32.xlu0 %v2025, 52
        %v2063 = vpop.permute.xlu0 %2062
        %2064 = vrot.lane.b32.xlu0 %v2026, 52
        %v2065 = vpop.permute.xlu0 %2064
        %2066 = vrot.lane.b32.xlu0 %v2027, 52
        %v2067 = vpop.permute.xlu0 %2066
        %2068 = vrot.lane.b32.xlu0 %v2028, 52
        %v2069 = vpop.permute.xlu0 %2068
        %2070 = vrot.lane.b32.xlu0 %v2029, 52
        %v2071 = vpop.permute.xlu0 %2070
        %2072 = vrot.lane.b32.xlu0 %v2030, 52
        %v2073 = vpop.permute.xlu0 %2072
        %2074 = vrot.lane.b32.xlu0 %v2031, 52
        %v2075 = vpop.permute.xlu0 %2074
        %2076 = vrot.lane.b32.xlu0 %v2032, 52
        %v2077 = vpop.permute.xlu0 %2076
        %2078 = vrot.lane.b32.xlu0 %v2033, 52
        %v2079 = vpop.permute.xlu0 %2078
        %2080 = vrot.lane.b32.xlu0 %v2034, 52
        %v2081 = vpop.permute.xlu0 %2080
        %2082 = vrot.lane.b32.xlu0 %v2035, 52
        %v2083 = vpop.permute.xlu0 %2082
        %vm2100 = vcmask 458144
        %2101 = vst.msk [vmem:[#allocation4] sm:$0xff] %vm2100, %v2053
        %2102 = vst.msk [vmem:[#allocation4 + $0x8] sm:$0xff] %vm2100, %v2055
        %2103 = vst.msk [vmem:[#allocation4 + $0x10] sm:$0xff] %vm2100, %v2057
        %2104 = vst.msk [vmem:[#allocation4 + $0x18] sm:$0xff] %vm2100, %v2059
        %2105 = vst.msk [vmem:[#allocation4 + $0x20] sm:$0xff] %vm2100, %v2061
        %2106 = vst.msk [vmem:[#allocation4 + $0x28] sm:$0xff] %vm2100, %v2063
        %2107 = vst.msk [vmem:[#allocation4 + $0x30] sm:$0xff] %vm2100, %v2065
        %2108 = vst.msk [vmem:[#allocation4 + $0x38] sm:$0xff] %vm2100, %v2067
        %2109 = vst.msk [vmem:[#allocation4 + $0x40] sm:$0xff] %vm2100, %v2069
        %2110 = vst.msk [vmem:[#allocation4 + $0x48] sm:$0xff] %vm2100, %v2071
        %2111 = vst.msk [vmem:[#allocation4 + $0x50] sm:$0xff] %vm2100, %v2073
        %2112 = vst.msk [vmem:[#allocation4 + $0x58] sm:$0xff] %vm2100, %v2075
        %2113 = vst.msk [vmem:[#allocation4 + $0x60] sm:$0xff] %vm2100, %v2077
        %2114 = vst.msk [vmem:[#allocation4 + $0x68] sm:$0xff] %vm2100, %v2079
        %2115 = vst.msk [vmem:[#allocation4 + $0x70] sm:$0xff] %vm2100, %v2081
        %2116 = vst.msk [vmem:[#allocation4 + $0x78] sm:$0xff] %vm2100, %v2083
        %v2117 = vld [vmem:[%s341 + $0x4] sm:$0xff]
        %v2118 = vld [vmem:[%s341 + $0xc] sm:$0xff]
        %v2119 = vld [vmem:[%s341 + $0x1c] sm:$0xff]
        %v2120 = vld [vmem:[%s341 + $0x24] sm:$0xff]
        %v2121 = vld [vmem:[%s341 + $0x34] sm:$0xff]
        %v2122 = vld [vmem:[%s341 + $0x3c] sm:$0xff]
        %v2123 = vld [vmem:[%s341 + $0x4c] sm:$0xff]
        %v2124 = vld [vmem:[%s341 + $0x54] sm:$0xff]
        %v2125 = vld [vmem:[%s341 + $0x64] sm:$0xff]
        %v2126 = vld [vmem:[%s341 + $0x6c] sm:$0xff]
        %v2127 = vld [vmem:[%s341 + $0x7c] sm:$0xff]
        %v2128 = vld [vmem:[%s341 + $0x84] sm:$0xff]
        %v2129 = vld [vmem:[%s341 + $0x94] sm:$0xff]
        %v2130 = vld [vmem:[%s341 + $0x9c] sm:$0xff]
        %v2131 = vld [vmem:[%s341 + $0xac] sm:$0xff]
        %v2132 = vld [vmem:[%s341 + $0xb4] sm:$0xff]
        %v2133 = vld [vmem:[%s341 + $0xc4] sm:$0xff]
        %v2134 = vld [vmem:[%s341 + $0xcc] sm:$0xff]
        %v2135 = vld [vmem:[%s341 + $0xdc] sm:$0xff]
        %v2136 = vld [vmem:[%s341 + $0xe4] sm:$0xff]
        %v2137 = vld [vmem:[%s341 + $0xf4] sm:$0xff]
        %v2138 = vld [vmem:[%s341 + $0xfc] sm:$0xff]
        %v2139 = vld [vmem:[%s341 + $0x10c] sm:$0xff]
        %v2140 = vld [vmem:[%s341 + $0x114] sm:$0xff]
        %v2141 = vld [vmem:[%s341 + $0x124] sm:$0xff]
        %v2142 = vld [vmem:[%s341 + $0x12c] sm:$0xff]
        %v2143 = vld [vmem:[%s341 + $0x13c] sm:$0xff]
        %v2144 = vld [vmem:[%s341 + $0x144] sm:$0xff]
        %v2145 = vld [vmem:[%s341 + $0x154] sm:$0xff]
        %v2146 = vld [vmem:[%s341 + $0x15c] sm:$0xff]
        %v2147 = vld [vmem:[%s341 + $0x16c] sm:$0xff]
        %v2148 = vld [vmem:[%s341 + $0x174] sm:$0xff]
        %v2149 = vpack.c.bf16 %v2118, %v2117
        %v2150 = vpack.c.bf16 %v2120, %v2119
        %v2151 = vpack.c.bf16 %v2122, %v2121
        %v2152 = vpack.c.bf16 %v2124, %v2123
        %v2153 = vpack.c.bf16 %v2126, %v2125
        %v2154 = vpack.c.bf16 %v2128, %v2127
        %v2155 = vpack.c.bf16 %v2130, %v2129
        %v2156 = vpack.c.bf16 %v2132, %v2131
        %v2157 = vpack.c.bf16 %v2134, %v2133
        %v2158 = vpack.c.bf16 %v2136, %v2135
        %v2159 = vpack.c.bf16 %v2138, %v2137
        %v2160 = vpack.c.bf16 %v2140, %v2139
        %v2161 = vpack.c.bf16 %v2142, %v2141
        %v2162 = vpack.c.bf16 %v2144, %v2143
        %v2163 = vpack.c.bf16 %v2146, %v2145
        %v2164 = vpack.c.bf16 %v2148, %v2147
        %2181 = vrot.lane.b32.xlu0 %v2149, 56
        %v2182 = vpop.permute.xlu0 %2181
        %2183 = vrot.lane.b32.xlu0 %v2150, 56
        %v2184 = vpop.permute.xlu0 %2183
        %2185 = vrot.lane.b32.xlu0 %v2151, 56
        %v2186 = vpop.permute.xlu0 %2185
        %2187 = vrot.lane.b32.xlu0 %v2152, 56
        %v2188 = vpop.permute.xlu0 %2187
        %2189 = vrot.lane.b32.xlu0 %v2153, 56
        %v2190 = vpop.permute.xlu0 %2189
        %2191 = vrot.lane.b32.xlu0 %v2154, 56
        %v2192 = vpop.permute.xlu0 %2191
        %2193 = vrot.lane.b32.xlu0 %v2155, 56
        %v2194 = vpop.permute.xlu0 %2193
        %2195 = vrot.lane.b32.xlu0 %v2156, 56
        %v2196 = vpop.permute.xlu0 %2195
        %2197 = vrot.lane.b32.xlu0 %v2157, 56
        %v2198 = vpop.permute.xlu0 %2197
        %2199 = vrot.lane.b32.xlu0 %v2158, 56
        %v2200 = vpop.permute.xlu0 %2199
        %2201 = vrot.lane.b32.xlu0 %v2159, 56
        %v2202 = vpop.permute.xlu0 %2201
        %2203 = vrot.lane.b32.xlu0 %v2160, 56
        %v2204 = vpop.permute.xlu0 %2203
        %2205 = vrot.lane.b32.xlu0 %v2161, 56
        %v2206 = vpop.permute.xlu0 %2205
        %2207 = vrot.lane.b32.xlu0 %v2162, 56
        %v2208 = vpop.permute.xlu0 %2207
        %2209 = vrot.lane.b32.xlu0 %v2163, 56
        %v2210 = vpop.permute.xlu0 %2209
        %2211 = vrot.lane.b32.xlu0 %v2164, 56
        %v2212 = vpop.permute.xlu0 %2211
        %vm2229 = vcmask 490944
        %2230 = vst.msk [vmem:[#allocation4] sm:$0xff] %vm2229, %v2182
        %2231 = vst.msk [vmem:[#allocation4 + $0x8] sm:$0xff] %vm2229, %v2184
        %2232 = vst.msk [vmem:[#allocation4 + $0x10] sm:$0xff] %vm2229, %v2186
        %2233 = vst.msk [vmem:[#allocation4 + $0x18] sm:$0xff] %vm2229, %v2188
        %2234 = vst.msk [vmem:[#allocation4 + $0x20] sm:$0xff] %vm2229, %v2190
        %2235 = vst.msk [vmem:[#allocation4 + $0x28] sm:$0xff] %vm2229, %v2192
        %2236 = vst.msk [vmem:[#allocation4 + $0x30] sm:$0xff] %vm2229, %v2194
        %2237 = vst.msk [vmem:[#allocation4 + $0x38] sm:$0xff] %vm2229, %v2196
        %2238 = vst.msk [vmem:[#allocation4 + $0x40] sm:$0xff] %vm2229, %v2198
        %2239 = vst.msk [vmem:[#allocation4 + $0x48] sm:$0xff] %vm2229, %v2200
        %2240 = vst.msk [vmem:[#allocation4 + $0x50] sm:$0xff] %vm2229, %v2202
        %2241 = vst.msk [vmem:[#allocation4 + $0x58] sm:$0xff] %vm2229, %v2204
        %2242 = vst.msk [vmem:[#allocation4 + $0x60] sm:$0xff] %vm2229, %v2206
        %2243 = vst.msk [vmem:[#allocation4 + $0x68] sm:$0xff] %vm2229, %v2208
        %2244 = vst.msk [vmem:[#allocation4 + $0x70] sm:$0xff] %vm2229, %v2210
        %2245 = vst.msk [vmem:[#allocation4 + $0x78] sm:$0xff] %vm2229, %v2212
        %s2246 = scalar_lea.vmem [#allocation2], 72
        %v2247 = vld [vmem:[%s2246] sm:$0xff]
        %v2248 = vld [vmem:[%s2246 + $0x8] sm:$0xff]
        %v2249 = vld [vmem:[%s2246 + $0x18] sm:$0xff]
        %v2250 = vld [vmem:[%s2246 + $0x20] sm:$0xff]
        %v2251 = vld [vmem:[%s2246 + $0x30] sm:$0xff]
        %v2252 = vld [vmem:[%s2246 + $0x38] sm:$0xff]
        %v2253 = vld [vmem:[%s2246 + $0x48] sm:$0xff]
        %v2254 = vld [vmem:[%s2246 + $0x50] sm:$0xff]
        %v2255 = vld [vmem:[%s2246 + $0x60] sm:$0xff]
        %v2256 = vld [vmem:[%s2246 + $0x68] sm:$0xff]
        %v2257 = vld [vmem:[%s2246 + $0x78] sm:$0xff]
        %v2258 = vld [vmem:[%s2246 + $0x80] sm:$0xff]
        %v2259 = vld [vmem:[%s2246 + $0x90] sm:$0xff]
        %v2260 = vld [vmem:[%s2246 + $0x98] sm:$0xff]
        %v2261 = vld [vmem:[%s2246 + $0xa8] sm:$0xff]
        %v2262 = vld [vmem:[%s2246 + $0xb0] sm:$0xff]
        %v2263 = vld [vmem:[%s2246 + $0xc0] sm:$0xff]
        %v2264 = vld [vmem:[%s2246 + $0xc8] sm:$0xff]
        %v2265 = vld [vmem:[%s2246 + $0xd8] sm:$0xff]
        %v2266 = vld [vmem:[%s2246 + $0xe0] sm:$0xff]
        %v2267 = vld [vmem:[%s2246 + $0xf0] sm:$0xff]
        %v2268 = vld [vmem:[%s2246 + $0xf8] sm:$0xff]
        %v2269 = vld [vmem:[%s2246 + $0x108] sm:$0xff]
        %v2270 = vld [vmem:[%s2246 + $0x110] sm:$0xff]
        %v2271 = vld [vmem:[%s2246 + $0x120] sm:$0xff]
        %v2272 = vld [vmem:[%s2246 + $0x128] sm:$0xff]
        %v2273 = vld [vmem:[%s2246 + $0x138] sm:$0xff]
        %v2274 = vld [vmem:[%s2246 + $0x140] sm:$0xff]
        %v2275 = vld [vmem:[%s2246 + $0x150] sm:$0xff]
        %v2276 = vld [vmem:[%s2246 + $0x158] sm:$0xff]
        %v2277 = vld [vmem:[%s2246 + $0x168] sm:$0xff]
        %v2278 = vld [vmem:[%s2246 + $0x170] sm:$0xff]
        %v2279 = vpack.c.bf16 %v2248, %v2247
        %v2280 = vpack.c.bf16 %v2250, %v2249
        %v2281 = vpack.c.bf16 %v2252, %v2251
        %v2282 = vpack.c.bf16 %v2254, %v2253
        %v2283 = vpack.c.bf16 %v2256, %v2255
        %v2284 = vpack.c.bf16 %v2258, %v2257
        %v2285 = vpack.c.bf16 %v2260, %v2259
        %v2286 = vpack.c.bf16 %v2262, %v2261
        %v2287 = vpack.c.bf16 %v2264, %v2263
        %v2288 = vpack.c.bf16 %v2266, %v2265
        %v2289 = vpack.c.bf16 %v2268, %v2267
        %v2290 = vpack.c.bf16 %v2270, %v2269
        %v2291 = vpack.c.bf16 %v2272, %v2271
        %v2292 = vpack.c.bf16 %v2274, %v2273
        %v2293 = vpack.c.bf16 %v2276, %v2275
        %v2294 = vpack.c.bf16 %v2278, %v2277
        %2311 = vrot.lane.b32.xlu0 %v2279, 60
        %v2312 = vpop.permute.xlu0 %2311
        %2313 = vrot.lane.b32.xlu0 %v2280, 60
        %v2314 = vpop.permute.xlu0 %2313
        %2315 = vrot.lane.b32.xlu0 %v2281, 60
        %v2316 = vpop.permute.xlu0 %2315
        %2317 = vrot.lane.b32.xlu0 %v2282, 60
        %v2318 = vpop.permute.xlu0 %2317
        %2319 = vrot.lane.b32.xlu0 %v2283, 60
        %v2320 = vpop.permute.xlu0 %2319
        %2321 = vrot.lane.b32.xlu0 %v2284, 60
        %v2322 = vpop.permute.xlu0 %2321
        %2323 = vrot.lane.b32.xlu0 %v2285, 60
        %v2324 = vpop.permute.xlu0 %2323
        %2325 = vrot.lane.b32.xlu0 %v2286, 60
        %v2326 = vpop.permute.xlu0 %2325
        %2327 = vrot.lane.b32.xlu0 %v2287, 60
        %v2328 = vpop.permute.xlu0 %2327
        %2329 = vrot.lane.b32.xlu0 %v2288, 60
        %v2330 = vpop.permute.xlu0 %2329
        %2331 = vrot.lane.b32.xlu0 %v2289, 60
        %v2332 = vpop.permute.xlu0 %2331
        %2333 = vrot.lane.b32.xlu0 %v2290, 60
        %v2334 = vpop.permute.xlu0 %2333
        %2335 = vrot.lane.b32.xlu0 %v2291, 60
        %v2336 = vpop.permute.xlu0 %2335
        %2337 = vrot.lane.b32.xlu0 %v2292, 60
        %v2338 = vpop.permute.xlu0 %2337
        %2339 = vrot.lane.b32.xlu0 %v2293, 60
        %v2340 = vpop.permute.xlu0 %2339
        %2341 = vrot.lane.b32.xlu0 %v2294, 60
        %v2342 = vpop.permute.xlu0 %2341
        %vm2359 = vcmask 523744
        %2360 = vst.msk [vmem:[#allocation4] sm:$0xff] %vm2359, %v2312
        %2361 = vst.msk [vmem:[#allocation4 + $0x8] sm:$0xff] %vm2359, %v2314
        %2362 = vst.msk [vmem:[#allocation4 + $0x10] sm:$0xff] %vm2359, %v2316
        %2363 = vst.msk [vmem:[#allocation4 + $0x18] sm:$0xff] %vm2359, %v2318
        %2364 = vst.msk [vmem:[#allocation4 + $0x20] sm:$0xff] %vm2359, %v2320
        %2365 = vst.msk [vmem:[#allocation4 + $0x28] sm:$0xff] %vm2359, %v2322
        %2366 = vst.msk [vmem:[#allocation4 + $0x30] sm:$0xff] %vm2359, %v2324
        %2367 = vst.msk [vmem:[#allocation4 + $0x38] sm:$0xff] %vm2359, %v2326
        %2368 = vst.msk [vmem:[#allocation4 + $0x40] sm:$0xff] %vm2359, %v2328
        %2369 = vst.msk [vmem:[#allocation4 + $0x48] sm:$0xff] %vm2359, %v2330
        %2370 = vst.msk [vmem:[#allocation4 + $0x50] sm:$0xff] %vm2359, %v2332
        %2371 = vst.msk [vmem:[#allocation4 + $0x58] sm:$0xff] %vm2359, %v2334
        %2372 = vst.msk [vmem:[#allocation4 + $0x60] sm:$0xff] %vm2359, %v2336
        %2373 = vst.msk [vmem:[#allocation4 + $0x68] sm:$0xff] %vm2359, %v2338
        %2374 = vst.msk [vmem:[#allocation4 + $0x70] sm:$0xff] %vm2359, %v2340
        %2375 = vst.msk [vmem:[#allocation4 + $0x78] sm:$0xff] %vm2359, %v2342
        %v2376 = vld [vmem:[%s2246 + $0x1] sm:$0xff]
        %v2377 = vld [vmem:[%s2246 + $0x9] sm:$0xff]
        %v2378 = vld [vmem:[%s2246 + $0x19] sm:$0xff]
        %v2379 = vld [vmem:[%s2246 + $0x21] sm:$0xff]
        %v2380 = vld [vmem:[%s2246 + $0x31] sm:$0xff]
        %v2381 = vld [vmem:[%s2246 + $0x39] sm:$0xff]
        %v2382 = vld [vmem:[%s2246 + $0x49] sm:$0xff]
        %v2383 = vld [vmem:[%s2246 + $0x51] sm:$0xff]
        %v2384 = vld [vmem:[%s2246 + $0x61] sm:$0xff]
        %v2385 = vld [vmem:[%s2246 + $0x69] sm:$0xff]
        %v2386 = vld [vmem:[%s2246 + $0x79] sm:$0xff]
        %v2387 = vld [vmem:[%s2246 + $0x81] sm:$0xff]
        %v2388 = vld [vmem:[%s2246 + $0x91] sm:$0xff]
        %v2389 = vld [vmem:[%s2246 + $0x99] sm:$0xff]
        %v2390 = vld [vmem:[%s2246 + $0xa9] sm:$0xff]
        %v2391 = vld [vmem:[%s2246 + $0xb1] sm:$0xff]
        %v2392 = vld [vmem:[%s2246 + $0xc1] sm:$0xff]
        %v2393 = vld [vmem:[%s2246 + $0xc9] sm:$0xff]
        %v2394 = vld [vmem:[%s2246 + $0xd9] sm:$0xff]
        %v2395 = vld [vmem:[%s2246 + $0xe1] sm:$0xff]
        %v2396 = vld [vmem:[%s2246 + $0xf1] sm:$0xff]
        %v2397 = vld [vmem:[%s2246 + $0xf9] sm:$0xff]
        %v2398 = vld [vmem:[%s2246 + $0x109] sm:$0xff]
        %v2399 = vld [vmem:[%s2246 + $0x111] sm:$0xff]
        %v2400 = vld [vmem:[%s2246 + $0x121] sm:$0xff]
        %v2401 = vld [vmem:[%s2246 + $0x129] sm:$0xff]
        %v2402 = vld [vmem:[%s2246 + $0x139] sm:$0xff]
        %v2403 = vld [vmem:[%s2246 + $0x141] sm:$0xff]
        %v2404 = vld [vmem:[%s2246 + $0x151] sm:$0xff]
        %v2405 = vld [vmem:[%s2246 + $0x159] sm:$0xff]
        %v2406 = vld [vmem:[%s2246 + $0x169] sm:$0xff]
        %v2407 = vld [vmem:[%s2246 + $0x171] sm:$0xff]
        %v2408 = vpack.c.bf16 %v2377, %v2376
        %v2409 = vpack.c.bf16 %v2379, %v2378
        %v2410 = vpack.c.bf16 %v2381, %v2380
        %v2411 = vpack.c.bf16 %v2383, %v2382
        %v2412 = vpack.c.bf16 %v2385, %v2384
        %v2413 = vpack.c.bf16 %v2387, %v2386
        %v2414 = vpack.c.bf16 %v2389, %v2388
        %v2415 = vpack.c.bf16 %v2391, %v2390
        %v2416 = vpack.c.bf16 %v2393, %v2392
        %v2417 = vpack.c.bf16 %v2395, %v2394
        %v2418 = vpack.c.bf16 %v2397, %v2396
        %v2419 = vpack.c.bf16 %v2399, %v2398
        %v2420 = vpack.c.bf16 %v2401, %v2400
        %v2421 = vpack.c.bf16 %v2403, %v2402
        %v2422 = vpack.c.bf16 %v2405, %v2404
        %v2423 = vpack.c.bf16 %v2407, %v2406
        %2440 = vrot.lane.b32.xlu0 %v2408, 64
        %v2441 = vpop.permute.xlu0 %2440
        %2442 = vrot.lane.b32.xlu0 %v2409, 64
        %v2443 = vpop.permute.xlu0 %2442
        %2444 = vrot.lane.b32.xlu0 %v2410, 64
        %v2445 = vpop.permute.xlu0 %2444
        %2446 = vrot.lane.b32.xlu0 %v2411, 64
        %v2447 = vpop.permute.xlu0 %2446
        %2448 = vrot.lane.b32.xlu0 %v2412, 64
        %v2449 = vpop.permute.xlu0 %2448
        %2450 = vrot.lane.b32.xlu0 %v2413, 64
        %v2451 = vpop.permute.xlu0 %2450
        %2452 = vrot.lane.b32.xlu0 %v2414, 64
        %v2453 = vpop.permute.xlu0 %2452
        %2454 = vrot.lane.b32.xlu0 %v2415, 64
        %v2455 = vpop.permute.xlu0 %2454
        %2456 = vrot.lane.b32.xlu0 %v2416, 64
        %v2457 = vpop.permute.xlu0 %2456
        %2458 = vrot.lane.b32.xlu0 %v2417, 64
        %v2459 = vpop.permute.xlu0 %2458
        %2460 = vrot.lane.b32.xlu0 %v2418, 64
        %v2461 = vpop.permute.xlu0 %2460
        %2462 = vrot.lane.b32.xlu0 %v2419, 64
        %v2463 = vpop.permute.xlu0 %2462
        %2464 = vrot.lane.b32.xlu0 %v2420, 64
        %v2465 = vpop.permute.xlu0 %2464
        %2466 = vrot.lane.b32.xlu0 %v2421, 64
        %v2467 = vpop.permute.xlu0 %2466
        %2468 = vrot.lane.b32.xlu0 %v2422, 64
        %v2469 = vpop.permute.xlu0 %2468
        %2470 = vrot.lane.b32.xlu0 %v2423, 64
        %v2471 = vpop.permute.xlu0 %2470
        %vm2488 = vcmask 556544
        %2489 = vst.msk [vmem:[#allocation4] sm:$0xff] %vm2488, %v2441
        %2490 = vst.msk [vmem:[#allocation4 + $0x8] sm:$0xff] %vm2488, %v2443
        %2491 = vst.msk [vmem:[#allocation4 + $0x10] sm:$0xff] %vm2488, %v2445
        %2492 = vst.msk [vmem:[#allocation4 + $0x18] sm:$0xff] %vm2488, %v2447
        %2493 = vst.msk [vmem:[#allocation4 + $0x20] sm:$0xff] %vm2488, %v2449
        %2494 = vst.msk [vmem:[#allocation4 + $0x28] sm:$0xff] %vm2488, %v2451
        %2495 = vst.msk [vmem:[#allocation4 + $0x30] sm:$0xff] %vm2488, %v2453
        %2496 = vst.msk [vmem:[#allocation4 + $0x38] sm:$0xff] %vm2488, %v2455
        %2497 = vst.msk [vmem:[#allocation4 + $0x40] sm:$0xff] %vm2488, %v2457
        %2498 = vst.msk [vmem:[#allocation4 + $0x48] sm:$0xff] %vm2488, %v2459
        %2499 = vst.msk [vmem:[#allocation4 + $0x50] sm:$0xff] %vm2488, %v2461
        %2500 = vst.msk [vmem:[#allocation4 + $0x58] sm:$0xff] %vm2488, %v2463
        %2501 = vst.msk [vmem:[#allocation4 + $0x60] sm:$0xff] %vm2488, %v2465
        %2502 = vst.msk [vmem:[#allocation4 + $0x68] sm:$0xff] %vm2488, %v2467
        %2503 = vst.msk [vmem:[#allocation4 + $0x70] sm:$0xff] %vm2488, %v2469
        %2504 = vst.msk [vmem:[#allocation4 + $0x78] sm:$0xff] %vm2488, %v2471
        %v2505 = vld [vmem:[%s2246 + $0x2] sm:$0xff]
        %v2506 = vld [vmem:[%s2246 + $0xa] sm:$0xff]
        %v2507 = vld [vmem:[%s2246 + $0x1a] sm:$0xff]
        %v2508 = vld [vmem:[%s2246 + $0x22] sm:$0xff]
        %v2509 = vld [vmem:[%s2246 + $0x32] sm:$0xff]
        %v2510 = vld [vmem:[%s2246 + $0x3a] sm:$0xff]
        %v2511 = vld [vmem:[%s2246 + $0x4a] sm:$0xff]
        %v2512 = vld [vmem:[%s2246 + $0x52] sm:$0xff]
        %v2513 = vld [vmem:[%s2246 + $0x62] sm:$0xff]
        %v2514 = vld [vmem:[%s2246 + $0x6a] sm:$0xff]
        %v2515 = vld [vmem:[%s2246 + $0x7a] sm:$0xff]
        %v2516 = vld [vmem:[%s2246 + $0x82] sm:$0xff]
        %v2517 = vld [vmem:[%s2246 + $0x92] sm:$0xff]
        %v2518 = vld [vmem:[%s2246 + $0x9a] sm:$0xff]
        %v2519 = vld [vmem:[%s2246 + $0xaa] sm:$0xff]
        %v2520 = vld [vmem:[%s2246 + $0xb2] sm:$0xff]
        %v2521 = vld [vmem:[%s2246 + $0xc2] sm:$0xff]
        %v2522 = vld [vmem:[%s2246 + $0xca] sm:$0xff]
        %v2523 = vld [vmem:[%s2246 + $0xda] sm:$0xff]
        %v2524 = vld [vmem:[%s2246 + $0xe2] sm:$0xff]
        %v2525 = vld [vmem:[%s2246 + $0xf2] sm:$0xff]
        %v2526 = vld [vmem:[%s2246 + $0xfa] sm:$0xff]
        %v2527 = vld [vmem:[%s2246 + $0x10a] sm:$0xff]
        %v2528 = vld [vmem:[%s2246 + $0x112] sm:$0xff]
        %v2529 = vld [vmem:[%s2246 + $0x122] sm:$0xff]
        %v2530 = vld [vmem:[%s2246 + $0x12a] sm:$0xff]
        %v2531 = vld [vmem:[%s2246 + $0x13a] sm:$0xff]
        %v2532 = vld [vmem:[%s2246 + $0x142] sm:$0xff]
        %v2533 = vld [vmem:[%s2246 + $0x152] sm:$0xff]
        %v2534 = vld [vmem:[%s2246 + $0x15a] sm:$0xff]
        %v2535 = vld [vmem:[%s2246 + $0x16a] sm:$0xff]
        %v2536 = vld [vmem:[%s2246 + $0x172] sm:$0xff]
        %v2537 = vpack.c.bf16 %v2506, %v2505
        %v2538 = vpack.c.bf16 %v2508, %v2507
        %v2539 = vpack.c.bf16 %v2510, %v2509
        %v2540 = vpack.c.bf16 %v2512, %v2511
        %v2541 = vpack.c.bf16 %v2514, %v2513
        %v2542 = vpack.c.bf16 %v2516, %v2515
        %v2543 = vpack.c.bf16 %v2518, %v2517
        %v2544 = vpack.c.bf16 %v2520, %v2519
        %v2545 = vpack.c.bf16 %v2522, %v2521
        %v2546 = vpack.c.bf16 %v2524, %v2523
        %v2547 = vpack.c.bf16 %v2526, %v2525
        %v2548 = vpack.c.bf16 %v2528, %v2527
        %v2549 = vpack.c.bf16 %v2530, %v2529
        %v2550 = vpack.c.bf16 %v2532, %v2531
        %v2551 = vpack.c.bf16 %v2534, %v2533
        %v2552 = vpack.c.bf16 %v2536, %v2535
        %2569 = vrot.lane.b32.xlu0 %v2537, 68
        %v2570 = vpop.permute.xlu0 %2569
        %2571 = vrot.lane.b32.xlu0 %v2538, 68
        %v2572 = vpop.permute.xlu0 %2571
        %2573 = vrot.lane.b32.xlu0 %v2539, 68
        %v2574 = vpop.permute.xlu0 %2573
        %2575 = vrot.lane.b32.xlu0 %v2540, 68
        %v2576 = vpop.permute.xlu0 %2575
        %2577 = vrot.lane.b32.xlu0 %v2541, 68
        %v2578 = vpop.permute.xlu0 %2577
        %2579 = vrot.lane.b32.xlu0 %v2542, 68
        %v2580 = vpop.permute.xlu0 %2579
        %2581 = vrot.lane.b32.xlu0 %v2543, 68
        %v2582 = vpop.permute.xlu0 %2581
        %2583 = vrot.lane.b32.xlu0 %v2544, 68
        %v2584 = vpop.permute.xlu0 %2583
        %2585 = vrot.lane.b32.xlu0 %v2545, 68
        %v2586 = vpop.permute.xlu0 %2585
        %2587 = vrot.lane.b32.xlu0 %v2546, 68
        %v2588 = vpop.permute.xlu0 %2587
        %2589 = vrot.lane.b32.xlu0 %v2547, 68
        %v2590 = vpop.permute.xlu0 %2589
        %2591 = vrot.lane.b32.xlu0 %v2548, 68
        %v2592 = vpop.permute.xlu0 %2591
        %2593 = vrot.lane.b32.xlu0 %v2549, 68
        %v2594 = vpop.permute.xlu0 %2593
        %2595 = vrot.lane.b32.xlu0 %v2550, 68
        %v2596 = vpop.permute.xlu0 %2595
        %2597 = vrot.lane.b32.xlu0 %v2551, 68
        %v2598 = vpop.permute.xlu0 %2597
        %2599 = vrot.lane.b32.xlu0 %v2552, 68
        %v2600 = vpop.permute.xlu0 %2599
        %vm2617 = vcmask 589344
        %2618 = vst.msk [vmem:[#allocation4] sm:$0xff] %vm2617, %v2570
        %2619 = vst.msk [vmem:[#allocation4 + $0x8] sm:$0xff] %vm2617, %v2572
        %2620 = vst.msk [vmem:[#allocation4 + $0x10] sm:$0xff] %vm2617, %v2574
        %2621 = vst.msk [vmem:[#allocation4 + $0x18] sm:$0xff] %vm2617, %v2576
        %2622 = vst.msk [vmem:[#allocation4 + $0x20] sm:$0xff] %vm2617, %v2578
        %2623 = vst.msk [vmem:[#allocation4 + $0x28] sm:$0xff] %vm2617, %v2580
        %2624 = vst.msk [vmem:[#allocation4 + $0x30] sm:$0xff] %vm2617, %v2582
        %2625 = vst.msk [vmem:[#allocation4 + $0x38] sm:$0xff] %vm2617, %v2584
        %2626 = vst.msk [vmem:[#allocation4 + $0x40] sm:$0xff] %vm2617, %v2586
        %2627 = vst.msk [vmem:[#allocation4 + $0x48] sm:$0xff] %vm2617, %v2588
        %2628 = vst.msk [vmem:[#allocation4 + $0x50] sm:$0xff] %vm2617, %v2590
        %2629 = vst.msk [vmem:[#allocation4 + $0x58] sm:$0xff] %vm2617, %v2592
        %2630 = vst.msk [vmem:[#allocation4 + $0x60] sm:$0xff] %vm2617, %v2594
        %2631 = vst.msk [vmem:[#allocation4 + $0x68] sm:$0xff] %vm2617, %v2596
        %2632 = vst.msk [vmem:[#allocation4 + $0x70] sm:$0xff] %vm2617, %v2598
        %2633 = vst.msk [vmem:[#allocation4 + $0x78] sm:$0xff] %vm2617, %v2600
        %v2634 = vld [vmem:[%s2246 + $0x3] sm:$0xff]
        %v2635 = vld [vmem:[%s2246 + $0xb] sm:$0xff]
        %v2636 = vld [vmem:[%s2246 + $0x1b] sm:$0xff]
        %v2637 = vld [vmem:[%s2246 + $0x23] sm:$0xff]
        %v2638 = vld [vmem:[%s2246 + $0x33] sm:$0xff]
        %v2639 = vld [vmem:[%s2246 + $0x3b] sm:$0xff]
        %v2640 = vld [vmem:[%s2246 + $0x4b] sm:$0xff]
        %v2641 = vld [vmem:[%s2246 + $0x53] sm:$0xff]
        %v2642 = vld [vmem:[%s2246 + $0x63] sm:$0xff]
        %v2643 = vld [vmem:[%s2246 + $0x6b] sm:$0xff]
        %v2644 = vld [vmem:[%s2246 + $0x7b] sm:$0xff]
        %v2645 = vld [vmem:[%s2246 + $0x83] sm:$0xff]
        %v2646 = vld [vmem:[%s2246 + $0x93] sm:$0xff]
        %v2647 = vld [vmem:[%s2246 + $0x9b] sm:$0xff]
        %v2648 = vld [vmem:[%s2246 + $0xab] sm:$0xff]
        %v2649 = vld [vmem:[%s2246 + $0xb3] sm:$0xff]
        %v2650 = vld [vmem:[%s2246 + $0xc3] sm:$0xff]
        %v2651 = vld [vmem:[%s2246 + $0xcb] sm:$0xff]
        %v2652 = vld [vmem:[%s2246 + $0xdb] sm:$0xff]
        %v2653 = vld [vmem:[%s2246 + $0xe3] sm:$0xff]
        %v2654 = vld [vmem:[%s2246 + $0xf3] sm:$0xff]
        %v2655 = vld [vmem:[%s2246 + $0xfb] sm:$0xff]
        %v2656 = vld [vmem:[%s2246 + $0x10b] sm:$0xff]
        %v2657 = vld [vmem:[%s2246 + $0x113] sm:$0xff]
        %v2658 = vld [vmem:[%s2246 + $0x123] sm:$0xff]
        %v2659 = vld [vmem:[%s2246 + $0x12b] sm:$0xff]
        %v2660 = vld [vmem:[%s2246 + $0x13b] sm:$0xff]
        %v2661 = vld [vmem:[%s2246 + $0x143] sm:$0xff]
        %v2662 = vld [vmem:[%s2246 + $0x153] sm:$0xff]
        %v2663 = vld [vmem:[%s2246 + $0x15b] sm:$0xff]
        %v2664 = vld [vmem:[%s2246 + $0x16b] sm:$0xff]
        %v2665 = vld [vmem:[%s2246 + $0x173] sm:$0xff]
        %v2666 = vpack.c.bf16 %v2635, %v2634
        %v2667 = vpack.c.bf16 %v2637, %v2636
        %v2668 = vpack.c.bf16 %v2639, %v2638
        %v2669 = vpack.c.bf16 %v2641, %v2640
        %v2670 = vpack.c.bf16 %v2643, %v2642
        %v2671 = vpack.c.bf16 %v2645, %v2644
        %v2672 = vpack.c.bf16 %v2647, %v2646
        %v2673 = vpack.c.bf16 %v2649, %v2648
        %v2674 = vpack.c.bf16 %v2651, %v2650
        %v2675 = vpack.c.bf16 %v2653, %v2652
        %v2676 = vpack.c.bf16 %v2655, %v2654
        %v2677 = vpack.c.bf16 %v2657, %v2656
        %v2678 = vpack.c.bf16 %v2659, %v2658
        %v2679 = vpack.c.bf16 %v2661, %v2660
        %v2680 = vpack.c.bf16 %v2663, %v2662
        %v2681 = vpack.c.bf16 %v2665, %v2664
        %2698 = vrot.lane.b32.xlu0 %v2666, 72
        %v2699 = vpop.permute.xlu0 %2698
        %2700 = vrot.lane.b32.xlu0 %v2667, 72
        %v2701 = vpop.permute.xlu0 %2700
        %2702 = vrot.lane.b32.xlu0 %v2668, 72
        %v2703 = vpop.permute.xlu0 %2702
        %2704 = vrot.lane.b32.xlu0 %v2669, 72
        %v2705 = vpop.permute.xlu0 %2704
        %2706 = vrot.lane.b32.xlu0 %v2670, 72
        %v2707 = vpop.permute.xlu0 %2706
        %2708 = vrot.lane.b32.xlu0 %v2671, 72
        %v2709 = vpop.permute.xlu0 %2708
        %2710 = vrot.lane.b32.xlu0 %v2672, 72
        %v2711 = vpop.permute.xlu0 %2710
        %2712 = vrot.lane.b32.xlu0 %v2673, 72
        %v2713 = vpop.permute.xlu0 %2712
        %2714 = vrot.lane.b32.xlu0 %v2674, 72
        %v2715 = vpop.permute.xlu0 %2714
        %2716 = vrot.lane.b32.xlu0 %v2675, 72
        %v2717 = vpop.permute.xlu0 %2716
        %2718 = vrot.lane.b32.xlu0 %v2676, 72
        %v2719 = vpop.permute.xlu0 %2718
        %2720 = vrot.lane.b32.xlu0 %v2677, 72
        %v2721 = vpop.permute.xlu0 %2720
        %2722 = vrot.lane.b32.xlu0 %v2678, 72
        %v2723 = vpop.permute.xlu0 %2722
        %2724 = vrot.lane.b32.xlu0 %v2679, 72
        %v2725 = vpop.permute.xlu0 %2724
        %2726 = vrot.lane.b32.xlu0 %v2680, 72
        %v2727 = vpop.permute.xlu0 %2726
        %2728 = vrot.lane.b32.xlu0 %v2681, 72
        %v2729 = vpop.permute.xlu0 %2728
        %vm2746 = vcmask 622144
        %2747 = vst.msk [vmem:[#allocation4] sm:$0xff] %vm2746, %v2699
        %2748 = vst.msk [vmem:[#allocation4 + $0x8] sm:$0xff] %vm2746, %v2701
        %2749 = vst.msk [vmem:[#allocation4 + $0x10] sm:$0xff] %vm2746, %v2703
        %2750 = vst.msk [vmem:[#allocation4 + $0x18] sm:$0xff] %vm2746, %v2705
        %2751 = vst.msk [vmem:[#allocation4 + $0x20] sm:$0xff] %vm2746, %v2707
        %2752 = vst.msk [vmem:[#allocation4 + $0x28] sm:$0xff] %vm2746, %v2709
        %2753 = vst.msk [vmem:[#allocation4 + $0x30] sm:$0xff] %vm2746, %v2711
        %2754 = vst.msk [vmem:[#allocation4 + $0x38] sm:$0xff] %vm2746, %v2713
        %2755 = vst.msk [vmem:[#allocation4 + $0x40] sm:$0xff] %vm2746, %v2715
        %2756 = vst.msk [vmem:[#allocation4 + $0x48] sm:$0xff] %vm2746, %v2717
        %2757 = vst.msk [vmem:[#allocation4 + $0x50] sm:$0xff] %vm2746, %v2719
        %2758 = vst.msk [vmem:[#allocation4 + $0x58] sm:$0xff] %vm2746, %v2721
        %2759 = vst.msk [vmem:[#allocation4 + $0x60] sm:$0xff] %vm2746, %v2723
        %2760 = vst.msk [vmem:[#allocation4 + $0x68] sm:$0xff] %vm2746, %v2725
        %2761 = vst.msk [vmem:[#allocation4 + $0x70] sm:$0xff] %vm2746, %v2727
        %2762 = vst.msk [vmem:[#allocation4 + $0x78] sm:$0xff] %vm2746, %v2729
        %v2763 = vld [vmem:[%s2246 + $0x4] sm:$0xff]
        %v2764 = vld [vmem:[%s2246 + $0xc] sm:$0xff]
        %v2765 = vld [vmem:[%s2246 + $0x1c] sm:$0xff]
        %v2766 = vld [vmem:[%s2246 + $0x24] sm:$0xff]
        %v2767 = vld [vmem:[%s2246 + $0x34] sm:$0xff]
        %v2768 = vld [vmem:[%s2246 + $0x3c] sm:$0xff]
        %v2769 = vld [vmem:[%s2246 + $0x4c] sm:$0xff]
        %v2770 = vld [vmem:[%s2246 + $0x54] sm:$0xff]
        %v2771 = vld [vmem:[%s2246 + $0x64] sm:$0xff]
        %v2772 = vld [vmem:[%s2246 + $0x6c] sm:$0xff]
        %v2773 = vld [vmem:[%s2246 + $0x7c] sm:$0xff]
        %v2774 = vld [vmem:[%s2246 + $0x84] sm:$0xff]
        %v2775 = vld [vmem:[%s2246 + $0x94] sm:$0xff]
        %v2776 = vld [vmem:[%s2246 + $0x9c] sm:$0xff]
        %v2777 = vld [vmem:[%s2246 + $0xac] sm:$0xff]
        %v2778 = vld [vmem:[%s2246 + $0xb4] sm:$0xff]
        %v2779 = vld [vmem:[%s2246 + $0xc4] sm:$0xff]
        %v2780 = vld [vmem:[%s2246 + $0xcc] sm:$0xff]
        %v2781 = vld [vmem:[%s2246 + $0xdc] sm:$0xff]
        %v2782 = vld [vmem:[%s2246 + $0xe4] sm:$0xff]
        %v2783 = vld [vmem:[%s2246 + $0xf4] sm:$0xff]
        %v2784 = vld [vmem:[%s2246 + $0xfc] sm:$0xff]
        %v2785 = vld [vmem:[%s2246 + $0x10c] sm:$0xff]
        %v2786 = vld [vmem:[%s2246 + $0x114] sm:$0xff]
        %v2787 = vld [vmem:[%s2246 + $0x124] sm:$0xff]
        %v2788 = vld [vmem:[%s2246 + $0x12c] sm:$0xff]
        %v2789 = vld [vmem:[%s2246 + $0x13c] sm:$0xff]
        %v2790 = vld [vmem:[%s2246 + $0x144] sm:$0xff]
        %v2791 = vld [vmem:[%s2246 + $0x154] sm:$0xff]
        %v2792 = vld [vmem:[%s2246 + $0x15c] sm:$0xff]
        %v2793 = vld [vmem:[%s2246 + $0x16c] sm:$0xff]
        %v2794 = vld [vmem:[%s2246 + $0x174] sm:$0xff]
        %v2795 = vpack.c.bf16 %v2764, %v2763
        %v2796 = vpack.c.bf16 %v2766, %v2765
        %v2797 = vpack.c.bf16 %v2768, %v2767
        %v2798 = vpack.c.bf16 %v2770, %v2769
        %v2799 = vpack.c.bf16 %v2772, %v2771
        %v2800 = vpack.c.bf16 %v2774, %v2773
        %v2801 = vpack.c.bf16 %v2776, %v2775
        %v2802 = vpack.c.bf16 %v2778, %v2777
        %v2803 = vpack.c.bf16 %v2780, %v2779
        %v2804 = vpack.c.bf16 %v2782, %v2781
        %v2805 = vpack.c.bf16 %v2784, %v2783
        %v2806 = vpack.c.bf16 %v2786, %v2785
        %v2807 = vpack.c.bf16 %v2788, %v2787
        %v2808 = vpack.c.bf16 %v2790, %v2789
        %v2809 = vpack.c.bf16 %v2792, %v2791
        %v2810 = vpack.c.bf16 %v2794, %v2793
        %2827 = vrot.lane.b32.xlu0 %v2795, 76
        %v2828 = vpop.permute.xlu0 %2827
        %2829 = vrot.lane.b32.xlu0 %v2796, 76
        %v2830 = vpop.permute.xlu0 %2829
        %2831 = vrot.lane.b32.xlu0 %v2797, 76
        %v2832 = vpop.permute.xlu0 %2831
        %2833 = vrot.lane.b32.xlu0 %v2798, 76
        %v2834 = vpop.permute.xlu0 %2833
        %2835 = vrot.lane.b32.xlu0 %v2799, 76
        %v2836 = vpop.permute.xlu0 %2835
        %2837 = vrot.lane.b32.xlu0 %v2800, 76
        %v2838 = vpop.permute.xlu0 %2837
        %2839 = vrot.lane.b32.xlu0 %v2801, 76
        %v2840 = vpop.permute.xlu0 %2839
        %2841 = vrot.lane.b32.xlu0 %v2802, 76
        %v2842 = vpop.permute.xlu0 %2841
        %2843 = vrot.lane.b32.xlu0 %v2803, 76
        %v2844 = vpop.permute.xlu0 %2843
        %2845 = vrot.lane.b32.xlu0 %v2804, 76
        %v2846 = vpop.permute.xlu0 %2845
        %2847 = vrot.lane.b32.xlu0 %v2805, 76
        %v2848 = vpop.permute.xlu0 %2847
        %2849 = vrot.lane.b32.xlu0 %v2806, 76
        %v2850 = vpop.permute.xlu0 %2849
        %2851 = vrot.lane.b32.xlu0 %v2807, 76
        %v2852 = vpop.permute.xlu0 %2851
        %2853 = vrot.lane.b32.xlu0 %v2808, 76
        %v2854 = vpop.permute.xlu0 %2853
        %2855 = vrot.lane.b32.xlu0 %v2809, 76
        %v2856 = vpop.permute.xlu0 %2855
        %2857 = vrot.lane.b32.xlu0 %v2810, 76
        %v2858 = vpop.permute.xlu0 %2857
        %vm2875 = vcmask 654944
        %2876 = vst.msk [vmem:[#allocation4] sm:$0xff] %vm2875, %v2828
        %2877 = vst.msk [vmem:[#allocation4 + $0x8] sm:$0xff] %vm2875, %v2830
        %2878 = vst.msk [vmem:[#allocation4 + $0x10] sm:$0xff] %vm2875, %v2832
        %2879 = vst.msk [vmem:[#allocation4 + $0x18] sm:$0xff] %vm2875, %v2834
        %2880 = vst.msk [vmem:[#allocation4 + $0x20] sm:$0xff] %vm2875, %v2836
        %2881 = vst.msk [vmem:[#allocation4 + $0x28] sm:$0xff] %vm2875, %v2838
        %2882 = vst.msk [vmem:[#allocation4 + $0x30] sm:$0xff] %vm2875, %v2840
        %2883 = vst.msk [vmem:[#allocation4 + $0x38] sm:$0xff] %vm2875, %v2842
        %2884 = vst.msk [vmem:[#allocation4 + $0x40] sm:$0xff] %vm2875, %v2844
        %2885 = vst.msk [vmem:[#allocation4 + $0x48] sm:$0xff] %vm2875, %v2846
        %2886 = vst.msk [vmem:[#allocation4 + $0x50] sm:$0xff] %vm2875, %v2848
        %2887 = vst.msk [vmem:[#allocation4 + $0x58] sm:$0xff] %vm2875, %v2850
        %2888 = vst.msk [vmem:[#allocation4 + $0x60] sm:$0xff] %vm2875, %v2852
        %2889 = vst.msk [vmem:[#allocation4 + $0x68] sm:$0xff] %vm2875, %v2854
        %2890 = vst.msk [vmem:[#allocation4 + $0x70] sm:$0xff] %vm2875, %v2856
        %2891 = vst.msk [vmem:[#allocation4 + $0x78] sm:$0xff] %vm2875, %v2858
        %s2892 = scalar_lea.vmem [#allocation2], 96
        %v2893 = vld [vmem:[%s2892] sm:$0xff]
        %v2894 = vld [vmem:[%s2892 + $0x8] sm:$0xff]
        %v2895 = vld [vmem:[%s2892 + $0x18] sm:$0xff]
        %v2896 = vld [vmem:[%s2892 + $0x20] sm:$0xff]
        %v2897 = vld [vmem:[%s2892 + $0x30] sm:$0xff]
        %v2898 = vld [vmem:[%s2892 + $0x38] sm:$0xff]
        %v2899 = vld [vmem:[%s2892 + $0x48] sm:$0xff]
        %v2900 = vld [vmem:[%s2892 + $0x50] sm:$0xff]
        %v2901 = vld [vmem:[%s2892 + $0x60] sm:$0xff]
        %v2902 = vld [vmem:[%s2892 + $0x68] sm:$0xff]
        %v2903 = vld [vmem:[%s2892 + $0x78] sm:$0xff]
        %v2904 = vld [vmem:[%s2892 + $0x80] sm:$0xff]
        %v2905 = vld [vmem:[%s2892 + $0x90] sm:$0xff]
        %v2906 = vld [vmem:[%s2892 + $0x98] sm:$0xff]
        %v2907 = vld [vmem:[%s2892 + $0xa8] sm:$0xff]
        %v2908 = vld [vmem:[%s2892 + $0xb0] sm:$0xff]
        %v2909 = vld [vmem:[%s2892 + $0xc0] sm:$0xff]
        %v2910 = vld [vmem:[%s2892 + $0xc8] sm:$0xff]
        %v2911 = vld [vmem:[%s2892 + $0xd8] sm:$0xff]
        %v2912 = vld [vmem:[%s2892 + $0xe0] sm:$0xff]
        %v2913 = vld [vmem:[%s2892 + $0xf0] sm:$0xff]
        %v2914 = vld [vmem:[%s2892 + $0xf8] sm:$0xff]
        %v2915 = vld [vmem:[%s2892 + $0x108] sm:$0xff]
        %v2916 = vld [vmem:[%s2892 + $0x110] sm:$0xff]
        %v2917 = vld [vmem:[%s2892 + $0x120] sm:$0xff]
        %v2918 = vld [vmem:[%s2892 + $0x128] sm:$0xff]
        %v2919 = vld [vmem:[%s2892 + $0x138] sm:$0xff]
        %v2920 = vld [vmem:[%s2892 + $0x140] sm:$0xff]
        %v2921 = vld [vmem:[%s2892 + $0x150] sm:$0xff]
        %v2922 = vld [vmem:[%s2892 + $0x158] sm:$0xff]
        %v2923 = vld [vmem:[%s2892 + $0x168] sm:$0xff]
        %v2924 = vld [vmem:[%s2892 + $0x170] sm:$0xff]
        %v2925 = vpack.c.bf16 %v2894, %v2893
        %v2926 = vpack.c.bf16 %v2896, %v2895
        %v2927 = vpack.c.bf16 %v2898, %v2897
        %v2928 = vpack.c.bf16 %v2900, %v2899
        %v2929 = vpack.c.bf16 %v2902, %v2901
        %v2930 = vpack.c.bf16 %v2904, %v2903
        %v2931 = vpack.c.bf16 %v2906, %v2905
        %v2932 = vpack.c.bf16 %v2908, %v2907
        %v2933 = vpack.c.bf16 %v2910, %v2909
        %v2934 = vpack.c.bf16 %v2912, %v2911
        %v2935 = vpack.c.bf16 %v2914, %v2913
        %v2936 = vpack.c.bf16 %v2916, %v2915
        %v2937 = vpack.c.bf16 %v2918, %v2917
        %v2938 = vpack.c.bf16 %v2920, %v2919
        %v2939 = vpack.c.bf16 %v2922, %v2921
        %v2940 = vpack.c.bf16 %v2924, %v2923
        %2957 = vrot.lane.b32.xlu0 %v2925, 80
        %v2958 = vpop.permute.xlu0 %2957
        %2959 = vrot.lane.b32.xlu0 %v2926, 80
        %v2960 = vpop.permute.xlu0 %2959
        %2961 = vrot.lane.b32.xlu0 %v2927, 80
        %v2962 = vpop.permute.xlu0 %2961
        %2963 = vrot.lane.b32.xlu0 %v2928, 80
        %v2964 = vpop.permute.xlu0 %2963
        %2965 = vrot.lane.b32.xlu0 %v2929, 80
        %v2966 = vpop.permute.xlu0 %2965
        %2967 = vrot.lane.b32.xlu0 %v2930, 80
        %v2968 = vpop.permute.xlu0 %2967
        %2969 = vrot.lane.b32.xlu0 %v2931, 80
        %v2970 = vpop.permute.xlu0 %2969
        %2971 = vrot.lane.b32.xlu0 %v2932, 80
        %v2972 = vpop.permute.xlu0 %2971
        %2973 = vrot.lane.b32.xlu0 %v2933, 80
        %v2974 = vpop.permute.xlu0 %2973
        %2975 = vrot.lane.b32.xlu0 %v2934, 80
        %v2976 = vpop.permute.xlu0 %2975
        %2977 = vrot.lane.b32.xlu0 %v2935, 80
        %v2978 = vpop.permute.xlu0 %2977
        %2979 = vrot.lane.b32.xlu0 %v2936, 80
        %v2980 = vpop.permute.xlu0 %2979
        %2981 = vrot.lane.b32.xlu0 %v2937, 80
        %v2982 = vpop.permute.xlu0 %2981
        %2983 = vrot.lane.b32.xlu0 %v2938, 80
        %v2984 = vpop.permute.xlu0 %2983
        %2985 = vrot.lane.b32.xlu0 %v2939, 80
        %v2986 = vpop.permute.xlu0 %2985
        %2987 = vrot.lane.b32.xlu0 %v2940, 80
        %v2988 = vpop.permute.xlu0 %2987
        %vm3005 = vcmask 687744
        %3006 = vst.msk [vmem:[#allocation4] sm:$0xff] %vm3005, %v2958
        %3007 = vst.msk [vmem:[#allocation4 + $0x8] sm:$0xff] %vm3005, %v2960
        %3008 = vst.msk [vmem:[#allocation4 + $0x10] sm:$0xff] %vm3005, %v2962
        %3009 = vst.msk [vmem:[#allocation4 + $0x18] sm:$0xff] %vm3005, %v2964
        %3010 = vst.msk [vmem:[#allocation4 + $0x20] sm:$0xff] %vm3005, %v2966
        %3011 = vst.msk [vmem:[#allocation4 + $0x28] sm:$0xff] %vm3005, %v2968
        %3012 = vst.msk [vmem:[#allocation4 + $0x30] sm:$0xff] %vm3005, %v2970
        %3013 = vst.msk [vmem:[#allocation4 + $0x38] sm:$0xff] %vm3005, %v2972
        %3014 = vst.msk [vmem:[#allocation4 + $0x40] sm:$0xff] %vm3005, %v2974
        %3015 = vst.msk [vmem:[#allocation4 + $0x48] sm:$0xff] %vm3005, %v2976
        %3016 = vst.msk [vmem:[#allocation4 + $0x50] sm:$0xff] %vm3005, %v2978
        %3017 = vst.msk [vmem:[#allocation4 + $0x58] sm:$0xff] %vm3005, %v2980
        %3018 = vst.msk [vmem:[#allocation4 + $0x60] sm:$0xff] %vm3005, %v2982
        %3019 = vst.msk [vmem:[#allocation4 + $0x68] sm:$0xff] %vm3005, %v2984
        %3020 = vst.msk [vmem:[#allocation4 + $0x70] sm:$0xff] %vm3005, %v2986
        %3021 = vst.msk [vmem:[#allocation4 + $0x78] sm:$0xff] %vm3005, %v2988
        %v3022 = vld [vmem:[%s2892 + $0x1] sm:$0xff]
        %v3023 = vld [vmem:[%s2892 + $0x9] sm:$0xff]
        %v3024 = vld [vmem:[%s2892 + $0x19] sm:$0xff]
        %v3025 = vld [vmem:[%s2892 + $0x21] sm:$0xff]
        %v3026 = vld [vmem:[%s2892 + $0x31] sm:$0xff]
        %v3027 = vld [vmem:[%s2892 + $0x39] sm:$0xff]
        %v3028 = vld [vmem:[%s2892 + $0x49] sm:$0xff]
        %v3029 = vld [vmem:[%s2892 + $0x51] sm:$0xff]
        %v3030 = vld [vmem:[%s2892 + $0x61] sm:$0xff]
        %v3031 = vld [vmem:[%s2892 + $0x69] sm:$0xff]
        %v3032 = vld [vmem:[%s2892 + $0x79] sm:$0xff]
        %v3033 = vld [vmem:[%s2892 + $0x81] sm:$0xff]
        %v3034 = vld [vmem:[%s2892 + $0x91] sm:$0xff]
        %v3035 = vld [vmem:[%s2892 + $0x99] sm:$0xff]
        %v3036 = vld [vmem:[%s2892 + $0xa9] sm:$0xff]
        %v3037 = vld [vmem:[%s2892 + $0xb1] sm:$0xff]
        %v3038 = vld [vmem:[%s2892 + $0xc1] sm:$0xff]
        %v3039 = vld [vmem:[%s2892 + $0xc9] sm:$0xff]
        %v3040 = vld [vmem:[%s2892 + $0xd9] sm:$0xff]
        %v3041 = vld [vmem:[%s2892 + $0xe1] sm:$0xff]
        %v3042 = vld [vmem:[%s2892 + $0xf1] sm:$0xff]
        %v3043 = vld [vmem:[%s2892 + $0xf9] sm:$0xff]
        %v3044 = vld [vmem:[%s2892 + $0x109] sm:$0xff]
        %v3045 = vld [vmem:[%s2892 + $0x111] sm:$0xff]
        %v3046 = vld [vmem:[%s2892 + $0x121] sm:$0xff]
        %v3047 = vld [vmem:[%s2892 + $0x129] sm:$0xff]
        %v3048 = vld [vmem:[%s2892 + $0x139] sm:$0xff]
        %v3049 = vld [vmem:[%s2892 + $0x141] sm:$0xff]
        %v3050 = vld [vmem:[%s2892 + $0x151] sm:$0xff]
        %v3051 = vld [vmem:[%s2892 + $0x159] sm:$0xff]
        %v3052 = vld [vmem:[%s2892 + $0x169] sm:$0xff]
        %v3053 = vld [vmem:[%s2892 + $0x171] sm:$0xff]
        %v3054 = vpack.c.bf16 %v3023, %v3022
        %v3055 = vpack.c.bf16 %v3025, %v3024
        %v3056 = vpack.c.bf16 %v3027, %v3026
        %v3057 = vpack.c.bf16 %v3029, %v3028
        %v3058 = vpack.c.bf16 %v3031, %v3030
        %v3059 = vpack.c.bf16 %v3033, %v3032
        %v3060 = vpack.c.bf16 %v3035, %v3034
        %v3061 = vpack.c.bf16 %v3037, %v3036
        %v3062 = vpack.c.bf16 %v3039, %v3038
        %v3063 = vpack.c.bf16 %v3041, %v3040
        %v3064 = vpack.c.bf16 %v3043, %v3042
        %v3065 = vpack.c.bf16 %v3045, %v3044
        %v3066 = vpack.c.bf16 %v3047, %v3046
        %v3067 = vpack.c.bf16 %v3049, %v3048
        %v3068 = vpack.c.bf16 %v3051, %v3050
        %v3069 = vpack.c.bf16 %v3053, %v3052
        %3086 = vrot.lane.b32.xlu0 %v3054, 84
        %v3087 = vpop.permute.xlu0 %3086
        %3088 = vrot.lane.b32.xlu0 %v3055, 84
        %v3089 = vpop.permute.xlu0 %3088
        %3090 = vrot.lane.b32.xlu0 %v3056, 84
        %v3091 = vpop.permute.xlu0 %3090
        %3092 = vrot.lane.b32.xlu0 %v3057, 84
        %v3093 = vpop.permute.xlu0 %3092
        %3094 = vrot.lane.b32.xlu0 %v3058, 84
        %v3095 = vpop.permute.xlu0 %3094
        %3096 = vrot.lane.b32.xlu0 %v3059, 84
        %v3097 = vpop.permute.xlu0 %3096
        %3098 = vrot.lane.b32.xlu0 %v3060, 84
        %v3099 = vpop.permute.xlu0 %3098
        %3100 = vrot.lane.b32.xlu0 %v3061, 84
        %v3101 = vpop.permute.xlu0 %3100
        %3102 = vrot.lane.b32.xlu0 %v3062, 84
        %v3103 = vpop.permute.xlu0 %3102
        %3104 = vrot.lane.b32.xlu0 %v3063, 84
        %v3105 = vpop.permute.xlu0 %3104
        %3106 = vrot.lane.b32.xlu0 %v3064, 84
        %v3107 = vpop.permute.xlu0 %3106
        %3108 = vrot.lane.b32.xlu0 %v3065, 84
        %v3109 = vpop.permute.xlu0 %3108
        %3110 = vrot.lane.b32.xlu0 %v3066, 84
        %v3111 = vpop.permute.xlu0 %3110
        %3112 = vrot.lane.b32.xlu0 %v3067, 84
        %v3113 = vpop.permute.xlu0 %3112
        %3114 = vrot.lane.b32.xlu0 %v3068, 84
        %v3115 = vpop.permute.xlu0 %3114
        %3116 = vrot.lane.b32.xlu0 %v3069, 84
        %v3117 = vpop.permute.xlu0 %3116
        %vm3134 = vcmask 720544
        %3135 = vst.msk [vmem:[#allocation4] sm:$0xff] %vm3134, %v3087
        %3136 = vst.msk [vmem:[#allocation4 + $0x8] sm:$0xff] %vm3134, %v3089
        %3137 = vst.msk [vmem:[#allocation4 + $0x10] sm:$0xff] %vm3134, %v3091
        %3138 = vst.msk [vmem:[#allocation4 + $0x18] sm:$0xff] %vm3134, %v3093
        %3139 = vst.msk [vmem:[#allocation4 + $0x20] sm:$0xff] %vm3134, %v3095
        %3140 = vst.msk [vmem:[#allocation4 + $0x28] sm:$0xff] %vm3134, %v3097
        %3141 = vst.msk [vmem:[#allocation4 + $0x30] sm:$0xff] %vm3134, %v3099
        %3142 = vst.msk [vmem:[#allocation4 + $0x38] sm:$0xff] %vm3134, %v3101
        %3143 = vst.msk [vmem:[#allocation4 + $0x40] sm:$0xff] %vm3134, %v3103
        %3144 = vst.msk [vmem:[#allocation4 + $0x48] sm:$0xff] %vm3134, %v3105
        %3145 = vst.msk [vmem:[#allocation4 + $0x50] sm:$0xff] %vm3134, %v3107
        %3146 = vst.msk [vmem:[#allocation4 + $0x58] sm:$0xff] %vm3134, %v3109
        %3147 = vst.msk [vmem:[#allocation4 + $0x60] sm:$0xff] %vm3134, %v3111
        %3148 = vst.msk [vmem:[#allocation4 + $0x68] sm:$0xff] %vm3134, %v3113
        %3149 = vst.msk [vmem:[#allocation4 + $0x70] sm:$0xff] %vm3134, %v3115
        %3150 = vst.msk [vmem:[#allocation4 + $0x78] sm:$0xff] %vm3134, %v3117
        %v3151 = vld [vmem:[%s2892 + $0x2] sm:$0xff]
        %v3152 = vld [vmem:[%s2892 + $0xa] sm:$0xff]
        %v3153 = vld [vmem:[%s2892 + $0x1a] sm:$0xff]
        %v3154 = vld [vmem:[%s2892 + $0x22] sm:$0xff]
        %v3155 = vld [vmem:[%s2892 + $0x32] sm:$0xff]
        %v3156 = vld [vmem:[%s2892 + $0x3a] sm:$0xff]
        %v3157 = vld [vmem:[%s2892 + $0x4a] sm:$0xff]
        %v3158 = vld [vmem:[%s2892 + $0x52] sm:$0xff]
        %v3159 = vld [vmem:[%s2892 + $0x62] sm:$0xff]
        %v3160 = vld [vmem:[%s2892 + $0x6a] sm:$0xff]
        %v3161 = vld [vmem:[%s2892 + $0x7a] sm:$0xff]
        %v3162 = vld [vmem:[%s2892 + $0x82] sm:$0xff]
        %v3163 = vld [vmem:[%s2892 + $0x92] sm:$0xff]
        %v3164 = vld [vmem:[%s2892 + $0x9a] sm:$0xff]
        %v3165 = vld [vmem:[%s2892 + $0xaa] sm:$0xff]
        %v3166 = vld [vmem:[%s2892 + $0xb2] sm:$0xff]
        %v3167 = vld [vmem:[%s2892 + $0xc2] sm:$0xff]
        %v3168 = vld [vmem:[%s2892 + $0xca] sm:$0xff]
        %v3169 = vld [vmem:[%s2892 + $0xda] sm:$0xff]
        %v3170 = vld [vmem:[%s2892 + $0xe2] sm:$0xff]
        %v3171 = vld [vmem:[%s2892 + $0xf2] sm:$0xff]
        %v3172 = vld [vmem:[%s2892 + $0xfa] sm:$0xff]
        %v3173 = vld [vmem:[%s2892 + $0x10a] sm:$0xff]
        %v3174 = vld [vmem:[%s2892 + $0x112] sm:$0xff]
        %v3175 = vld [vmem:[%s2892 + $0x122] sm:$0xff]
        %v3176 = vld [vmem:[%s2892 + $0x12a] sm:$0xff]
        %v3177 = vld [vmem:[%s2892 + $0x13a] sm:$0xff]
        %v3178 = vld [vmem:[%s2892 + $0x142] sm:$0xff]
        %v3179 = vld [vmem:[%s2892 + $0x152] sm:$0xff]
        %v3180 = vld [vmem:[%s2892 + $0x15a] sm:$0xff]
        %v3181 = vld [vmem:[%s2892 + $0x16a] sm:$0xff]
        %v3182 = vld [vmem:[%s2892 + $0x172] sm:$0xff]
        %v3183 = vpack.c.bf16 %v3152, %v3151
        %v3184 = vpack.c.bf16 %v3154, %v3153
        %v3185 = vpack.c.bf16 %v3156, %v3155
        %v3186 = vpack.c.bf16 %v3158, %v3157
        %v3187 = vpack.c.bf16 %v3160, %v3159
        %v3188 = vpack.c.bf16 %v3162, %v3161
        %v3189 = vpack.c.bf16 %v3164, %v3163
        %v3190 = vpack.c.bf16 %v3166, %v3165
        %v3191 = vpack.c.bf16 %v3168, %v3167
        %v3192 = vpack.c.bf16 %v3170, %v3169
        %v3193 = vpack.c.bf16 %v3172, %v3171
        %v3194 = vpack.c.bf16 %v3174, %v3173
        %v3195 = vpack.c.bf16 %v3176, %v3175
        %v3196 = vpack.c.bf16 %v3178, %v3177
        %v3197 = vpack.c.bf16 %v3180, %v3179
        %v3198 = vpack.c.bf16 %v3182, %v3181
        %3215 = vrot.lane.b32.xlu0 %v3183, 88
        %v3216 = vpop.permute.xlu0 %3215
        %3217 = vrot.lane.b32.xlu0 %v3184, 88
        %v3218 = vpop.permute.xlu0 %3217
        %3219 = vrot.lane.b32.xlu0 %v3185, 88
        %v3220 = vpop.permute.xlu0 %3219
        %3221 = vrot.lane.b32.xlu0 %v3186, 88
        %v3222 = vpop.permute.xlu0 %3221
        %3223 = vrot.lane.b32.xlu0 %v3187, 88
        %v3224 = vpop.permute.xlu0 %3223
        %3225 = vrot.lane.b32.xlu0 %v3188, 88
        %v3226 = vpop.permute.xlu0 %3225
        %3227 = vrot.lane.b32.xlu0 %v3189, 88
        %v3228 = vpop.permute.xlu0 %3227
        %3229 = vrot.lane.b32.xlu0 %v3190, 88
        %v3230 = vpop.permute.xlu0 %3229
        %3231 = vrot.lane.b32.xlu0 %v3191, 88
        %v3232 = vpop.permute.xlu0 %3231
        %3233 = vrot.lane.b32.xlu0 %v3192, 88
        %v3234 = vpop.permute.xlu0 %3233
        %3235 = vrot.lane.b32.xlu0 %v3193, 88
        %v3236 = vpop.permute.xlu0 %3235
        %3237 = vrot.lane.b32.xlu0 %v3194, 88
        %v3238 = vpop.permute.xlu0 %3237
        %3239 = vrot.lane.b32.xlu0 %v3195, 88
        %v3240 = vpop.permute.xlu0 %3239
        %3241 = vrot.lane.b32.xlu0 %v3196, 88
        %v3242 = vpop.permute.xlu0 %3241
        %3243 = vrot.lane.b32.xlu0 %v3197, 88
        %v3244 = vpop.permute.xlu0 %3243
        %3245 = vrot.lane.b32.xlu0 %v3198, 88
        %v3246 = vpop.permute.xlu0 %3245
        %vm3263 = vcmask 753344
        %3264 = vst.msk [vmem:[#allocation4] sm:$0xff] %vm3263, %v3216
        %3265 = vst.msk [vmem:[#allocation4 + $0x8] sm:$0xff] %vm3263, %v3218
        %3266 = vst.msk [vmem:[#allocation4 + $0x10] sm:$0xff] %vm3263, %v3220
        %3267 = vst.msk [vmem:[#allocation4 + $0x18] sm:$0xff] %vm3263, %v3222
        %3268 = vst.msk [vmem:[#allocation4 + $0x20] sm:$0xff] %vm3263, %v3224
        %3269 = vst.msk [vmem:[#allocation4 + $0x28] sm:$0xff] %vm3263, %v3226
        %3270 = vst.msk [vmem:[#allocation4 + $0x30] sm:$0xff] %vm3263, %v3228
        %3271 = vst.msk [vmem:[#allocation4 + $0x38] sm:$0xff] %vm3263, %v3230
        %3272 = vst.msk [vmem:[#allocation4 + $0x40] sm:$0xff] %vm3263, %v3232
        %3273 = vst.msk [vmem:[#allocation4 + $0x48] sm:$0xff] %vm3263, %v3234
        %3274 = vst.msk [vmem:[#allocation4 + $0x50] sm:$0xff] %vm3263, %v3236
        %3275 = vst.msk [vmem:[#allocation4 + $0x58] sm:$0xff] %vm3263, %v3238
        %3276 = vst.msk [vmem:[#allocation4 + $0x60] sm:$0xff] %vm3263, %v3240
        %3277 = vst.msk [vmem:[#allocation4 + $0x68] sm:$0xff] %vm3263, %v3242
        %3278 = vst.msk [vmem:[#allocation4 + $0x70] sm:$0xff] %vm3263, %v3244
        %3279 = vst.msk [vmem:[#allocation4 + $0x78] sm:$0xff] %vm3263, %v3246
        %v3280 = vld [vmem:[%s2892 + $0x3] sm:$0xff]
        %v3281 = vld [vmem:[%s2892 + $0xb] sm:$0xff]
        %v3282 = vld [vmem:[%s2892 + $0x1b] sm:$0xff]
        %v3283 = vld [vmem:[%s2892 + $0x23] sm:$0xff]
        %v3284 = vld [vmem:[%s2892 + $0x33] sm:$0xff]
        %v3285 = vld [vmem:[%s2892 + $0x3b] sm:$0xff]
        %v3286 = vld [vmem:[%s2892 + $0x4b] sm:$0xff]
        %v3287 = vld [vmem:[%s2892 + $0x53] sm:$0xff]
        %v3288 = vld [vmem:[%s2892 + $0x63] sm:$0xff]
        %v3289 = vld [vmem:[%s2892 + $0x6b] sm:$0xff]
        %v3290 = vld [vmem:[%s2892 + $0x7b] sm:$0xff]
        %v3291 = vld [vmem:[%s2892 + $0x83] sm:$0xff]
        %v3292 = vld [vmem:[%s2892 + $0x93] sm:$0xff]
        %v3293 = vld [vmem:[%s2892 + $0x9b] sm:$0xff]
        %v3294 = vld [vmem:[%s2892 + $0xab] sm:$0xff]
        %v3295 = vld [vmem:[%s2892 + $0xb3] sm:$0xff]
        %v3296 = vld [vmem:[%s2892 + $0xc3] sm:$0xff]
        %v3297 = vld [vmem:[%s2892 + $0xcb] sm:$0xff]
        %v3298 = vld [vmem:[%s2892 + $0xdb] sm:$0xff]
        %v3299 = vld [vmem:[%s2892 + $0xe3] sm:$0xff]
        %v3300 = vld [vmem:[%s2892 + $0xf3] sm:$0xff]
        %v3301 = vld [vmem:[%s2892 + $0xfb] sm:$0xff]
        %v3302 = vld [vmem:[%s2892 + $0x10b] sm:$0xff]
        %v3303 = vld [vmem:[%s2892 + $0x113] sm:$0xff]
        %v3304 = vld [vmem:[%s2892 + $0x123] sm:$0xff]
        %v3305 = vld [vmem:[%s2892 + $0x12b] sm:$0xff]
        %v3306 = vld [vmem:[%s2892 + $0x13b] sm:$0xff]
        %v3307 = vld [vmem:[%s2892 + $0x143] sm:$0xff]
        %v3308 = vld [vmem:[%s2892 + $0x153] sm:$0xff]
        %v3309 = vld [vmem:[%s2892 + $0x15b] sm:$0xff]
        %v3310 = vld [vmem:[%s2892 + $0x16b] sm:$0xff]
        %v3311 = vld [vmem:[%s2892 + $0x173] sm:$0xff]
        %v3312 = vpack.c.bf16 %v3281, %v3280
        %v3313 = vpack.c.bf16 %v3283, %v3282
        %v3314 = vpack.c.bf16 %v3285, %v3284
        %v3315 = vpack.c.bf16 %v3287, %v3286
        %v3316 = vpack.c.bf16 %v3289, %v3288
        %v3317 = vpack.c.bf16 %v3291, %v3290
        %v3318 = vpack.c.bf16 %v3293, %v3292
        %v3319 = vpack.c.bf16 %v3295, %v3294
        %v3320 = vpack.c.bf16 %v3297, %v3296
        %v3321 = vpack.c.bf16 %v3299, %v3298
        %v3322 = vpack.c.bf16 %v3301, %v3300
        %v3323 = vpack.c.bf16 %v3303, %v3302
        %v3324 = vpack.c.bf16 %v3305, %v3304
        %v3325 = vpack.c.bf16 %v3307, %v3306
        %v3326 = vpack.c.bf16 %v3309, %v3308
        %v3327 = vpack.c.bf16 %v3311, %v3310
        %3344 = vrot.lane.b32.xlu0 %v3312, 92
        %v3345 = vpop.permute.xlu0 %3344
        %3346 = vrot.lane.b32.xlu0 %v3313, 92
        %v3347 = vpop.permute.xlu0 %3346
        %3348 = vrot.lane.b32.xlu0 %v3314, 92
        %v3349 = vpop.permute.xlu0 %3348
        %3350 = vrot.lane.b32.xlu0 %v3315, 92
        %v3351 = vpop.permute.xlu0 %3350
        %3352 = vrot.lane.b32.xlu0 %v3316, 92
        %v3353 = vpop.permute.xlu0 %3352
        %3354 = vrot.lane.b32.xlu0 %v3317, 92
        %v3355 = vpop.permute.xlu0 %3354
        %3356 = vrot.lane.b32.xlu0 %v3318, 92
        %v3357 = vpop.permute.xlu0 %3356
        %3358 = vrot.lane.b32.xlu0 %v3319, 92
        %v3359 = vpop.permute.xlu0 %3358
        %3360 = vrot.lane.b32.xlu0 %v3320, 92
        %v3361 = vpop.permute.xlu0 %3360
        %3362 = vrot.lane.b32.xlu0 %v3321, 92
        %v3363 = vpop.permute.xlu0 %3362
        %3364 = vrot.lane.b32.xlu0 %v3322, 92
        %v3365 = vpop.permute.xlu0 %3364
        %3366 = vrot.lane.b32.xlu0 %v3323, 92
        %v3367 = vpop.permute.xlu0 %3366
        %3368 = vrot.lane.b32.xlu0 %v3324, 92
        %v3369 = vpop.permute.xlu0 %3368
        %3370 = vrot.lane.b32.xlu0 %v3325, 92
        %v3371 = vpop.permute.xlu0 %3370
        %3372 = vrot.lane.b32.xlu0 %v3326, 92
        %v3373 = vpop.permute.xlu0 %3372
        %3374 = vrot.lane.b32.xlu0 %v3327, 92
        %v3375 = vpop.permute.xlu0 %3374
        %vm3392 = vcmask 786144
        %3393 = vst.msk [vmem:[#allocation4] sm:$0xff] %vm3392, %v3345
        %3394 = vst.msk [vmem:[#allocation4 + $0x8] sm:$0xff] %vm3392, %v3347
        %3395 = vst.msk [vmem:[#allocation4 + $0x10] sm:$0xff] %vm3392, %v3349
        %3396 = vst.msk [vmem:[#allocation4 + $0x18] sm:$0xff] %vm3392, %v3351
        %3397 = vst.msk [vmem:[#allocation4 + $0x20] sm:$0xff] %vm3392, %v3353
        %3398 = vst.msk [vmem:[#allocation4 + $0x28] sm:$0xff] %vm3392, %v3355
        %3399 = vst.msk [vmem:[#allocation4 + $0x30] sm:$0xff] %vm3392, %v3357
        %3400 = vst.msk [vmem:[#allocation4 + $0x38] sm:$0xff] %vm3392, %v3359
        %3401 = vst.msk [vmem:[#allocation4 + $0x40] sm:$0xff] %vm3392, %v3361
        %3402 = vst.msk [vmem:[#allocation4 + $0x48] sm:$0xff] %vm3392, %v3363
        %3403 = vst.msk [vmem:[#allocation4 + $0x50] sm:$0xff] %vm3392, %v3365
        %3404 = vst.msk [vmem:[#allocation4 + $0x58] sm:$0xff] %vm3392, %v3367
        %3405 = vst.msk [vmem:[#allocation4 + $0x60] sm:$0xff] %vm3392, %v3369
        %3406 = vst.msk [vmem:[#allocation4 + $0x68] sm:$0xff] %vm3392, %v3371
        %3407 = vst.msk [vmem:[#allocation4 + $0x70] sm:$0xff] %vm3392, %v3373
        %3408 = vst.msk [vmem:[#allocation4 + $0x78] sm:$0xff] %vm3392, %v3375
        %v3409 = vld [vmem:[%s2892 + $0x4] sm:$0xff]
        %v3410 = vld [vmem:[%s2892 + $0xc] sm:$0xff]
        %v3411 = vld [vmem:[%s2892 + $0x1c] sm:$0xff]
        %v3412 = vld [vmem:[%s2892 + $0x24] sm:$0xff]
        %v3413 = vld [vmem:[%s2892 + $0x34] sm:$0xff]
        %v3414 = vld [vmem:[%s2892 + $0x3c] sm:$0xff]
        %v3415 = vld [vmem:[%s2892 + $0x4c] sm:$0xff]
        %v3416 = vld [vmem:[%s2892 + $0x54] sm:$0xff]
        %v3417 = vld [vmem:[%s2892 + $0x64] sm:$0xff]
        %v3418 = vld [vmem:[%s2892 + $0x6c] sm:$0xff]
        %v3419 = vld [vmem:[%s2892 + $0x7c] sm:$0xff]
        %v3420 = vld [vmem:[%s2892 + $0x84] sm:$0xff]
        %v3421 = vld [vmem:[%s2892 + $0x94] sm:$0xff]
        %v3422 = vld [vmem:[%s2892 + $0x9c] sm:$0xff]
        %v3423 = vld [vmem:[%s2892 + $0xac] sm:$0xff]
        %v3424 = vld [vmem:[%s2892 + $0xb4] sm:$0xff]
        %v3425 = vld [vmem:[%s2892 + $0xc4] sm:$0xff]
        %v3426 = vld [vmem:[%s2892 + $0xcc] sm:$0xff]
        %v3427 = vld [vmem:[%s2892 + $0xdc] sm:$0xff]
        %v3428 = vld [vmem:[%s2892 + $0xe4] sm:$0xff]
        %v3429 = vld [vmem:[%s2892 + $0xf4] sm:$0xff]
        %v3430 = vld [vmem:[%s2892 + $0xfc] sm:$0xff]
        %v3431 = vld [vmem:[%s2892 + $0x10c] sm:$0xff]
        %v3432 = vld [vmem:[%s2892 + $0x114] sm:$0xff]
        %v3433 = vld [vmem:[%s2892 + $0x124] sm:$0xff]
        %v3434 = vld [vmem:[%s2892 + $0x12c] sm:$0xff]
        %v3435 = vld [vmem:[%s2892 + $0x13c] sm:$0xff]
        %v3436 = vld [vmem:[%s2892 + $0x144] sm:$0xff]
        %v3437 = vld [vmem:[%s2892 + $0x154] sm:$0xff]
        %v3438 = vld [vmem:[%s2892 + $0x15c] sm:$0xff]
        %v3439 = vld [vmem:[%s2892 + $0x16c] sm:$0xff]
        %v3440 = vld [vmem:[%s2892 + $0x174] sm:$0xff]
        %v3441 = vpack.c.bf16 %v3410, %v3409
        %v3442 = vpack.c.bf16 %v3412, %v3411
        %v3443 = vpack.c.bf16 %v3414, %v3413
        %v3444 = vpack.c.bf16 %v3416, %v3415
        %v3445 = vpack.c.bf16 %v3418, %v3417
        %v3446 = vpack.c.bf16 %v3420, %v3419
        %v3447 = vpack.c.bf16 %v3422, %v3421
        %v3448 = vpack.c.bf16 %v3424, %v3423
        %v3449 = vpack.c.bf16 %v3426, %v3425
        %v3450 = vpack.c.bf16 %v3428, %v3427
        %v3451 = vpack.c.bf16 %v3430, %v3429
        %v3452 = vpack.c.bf16 %v3432, %v3431
        %v3453 = vpack.c.bf16 %v3434, %v3433
        %v3454 = vpack.c.bf16 %v3436, %v3435
        %v3455 = vpack.c.bf16 %v3438, %v3437
        %v3456 = vpack.c.bf16 %v3440, %v3439
        %3473 = vrot.lane.b32.xlu0 %v3441, 96
        %v3474 = vpop.permute.xlu0 %3473
        %3475 = vrot.lane.b32.xlu0 %v3442, 96
        %v3476 = vpop.permute.xlu0 %3475
        %3477 = vrot.lane.b32.xlu0 %v3443, 96
        %v3478 = vpop.permute.xlu0 %3477
        %3479 = vrot.lane.b32.xlu0 %v3444, 96
        %v3480 = vpop.permute.xlu0 %3479
        %3481 = vrot.lane.b32.xlu0 %v3445, 96
        %v3482 = vpop.permute.xlu0 %3481
        %3483 = vrot.lane.b32.xlu0 %v3446, 96
        %v3484 = vpop.permute.xlu0 %3483
        %3485 = vrot.lane.b32.xlu0 %v3447, 96
        %v3486 = vpop.permute.xlu0 %3485
        %3487 = vrot.lane.b32.xlu0 %v3448, 96
        %v3488 = vpop.permute.xlu0 %3487
        %3489 = vrot.lane.b32.xlu0 %v3449, 96
        %v3490 = vpop.permute.xlu0 %3489
        %3491 = vrot.lane.b32.xlu0 %v3450, 96
        %v3492 = vpop.permute.xlu0 %3491
        %3493 = vrot.lane.b32.xlu0 %v3451, 96
        %v3494 = vpop.permute.xlu0 %3493
        %3495 = vrot.lane.b32.xlu0 %v3452, 96
        %v3496 = vpop.permute.xlu0 %3495
        %3497 = vrot.lane.b32.xlu0 %v3453, 96
        %v3498 = vpop.permute.xlu0 %3497
        %3499 = vrot.lane.b32.xlu0 %v3454, 96
        %v3500 = vpop.permute.xlu0 %3499
        %3501 = vrot.lane.b32.xlu0 %v3455, 96
        %v3502 = vpop.permute.xlu0 %3501
        %3503 = vrot.lane.b32.xlu0 %v3456, 96
        %v3504 = vpop.permute.xlu0 %3503
        %vm3521 = vcmask 818944
        %3522 = vst.msk [vmem:[#allocation4] sm:$0xff] %vm3521, %v3474
        %3523 = vst.msk [vmem:[#allocation4 + $0x8] sm:$0xff] %vm3521, %v3476
        %3524 = vst.msk [vmem:[#allocation4 + $0x10] sm:$0xff] %vm3521, %v3478
        %3525 = vst.msk [vmem:[#allocation4 + $0x18] sm:$0xff] %vm3521, %v3480
        %3526 = vst.msk [vmem:[#allocation4 + $0x20] sm:$0xff] %vm3521, %v3482
        %3527 = vst.msk [vmem:[#allocation4 + $0x28] sm:$0xff] %vm3521, %v3484
        %3528 = vst.msk [vmem:[#allocation4 + $0x30] sm:$0xff] %vm3521, %v3486
        %3529 = vst.msk [vmem:[#allocation4 + $0x38] sm:$0xff] %vm3521, %v3488
        %3530 = vst.msk [vmem:[#allocation4 + $0x40] sm:$0xff] %vm3521, %v3490
        %3531 = vst.msk [vmem:[#allocation4 + $0x48] sm:$0xff] %vm3521, %v3492
        %3532 = vst.msk [vmem:[#allocation4 + $0x50] sm:$0xff] %vm3521, %v3494
        %3533 = vst.msk [vmem:[#allocation4 + $0x58] sm:$0xff] %vm3521, %v3496
        %3534 = vst.msk [vmem:[#allocation4 + $0x60] sm:$0xff] %vm3521, %v3498
        %3535 = vst.msk [vmem:[#allocation4 + $0x68] sm:$0xff] %vm3521, %v3500
        %3536 = vst.msk [vmem:[#allocation4 + $0x70] sm:$0xff] %vm3521, %v3502
        %3537 = vst.msk [vmem:[#allocation4 + $0x78] sm:$0xff] %vm3521, %v3504
        %v3538 = vld [vmem:[#allocation4] sm:$0xff]
        %v3539 = vld [vmem:[#allocation4 + $0x8] sm:$0xff]
        %v3540 = vld [vmem:[#allocation4 + $0x10] sm:$0xff]
        %v3541 = vld [vmem:[#allocation4 + $0x18] sm:$0xff]
        %v3542 = vld [vmem:[#allocation4 + $0x20] sm:$0xff]
        %v3543 = vld [vmem:[#allocation4 + $0x28] sm:$0xff]
        %v3544 = vld [vmem:[#allocation4 + $0x30] sm:$0xff]
        %v3545 = vld [vmem:[#allocation4 + $0x38] sm:$0xff]
        %v3546 = vld [vmem:[#allocation4 + $0x40] sm:$0xff]
        %v3547 = vld [vmem:[#allocation4 + $0x48] sm:$0xff]
        %v3548 = vld [vmem:[#allocation4 + $0x50] sm:$0xff]
        %v3549 = vld [vmem:[#allocation4 + $0x58] sm:$0xff]
        %v3550 = vld [vmem:[#allocation4 + $0x60] sm:$0xff]
        %v3551 = vld [vmem:[#allocation4 + $0x68] sm:$0xff]
        %v3552 = vld [vmem:[#allocation4 + $0x70] sm:$0xff]
        %v3553 = vld [vmem:[#allocation4 + $0x78] sm:$0xff]
        %v3554 = vld [vmem:[%s1] sm:$0xf]
        %v3555 = vld [vmem:[%s1 + $0x4] sm:$0xf]
        %v3556 = vld [vmem:[%s1 + $0x8] sm:$0xf]
        %v3557 = vld [vmem:[%s1 + $0xc] sm:$0xf]
        %v3558 = vld [vmem:[%s1 + $0x10] sm:$0xf]
        %v3559 = vld [vmem:[%s1 + $0x14] sm:$0xf]
        %v3560 = vld [vmem:[%s1 + $0x18] sm:$0xf]
        %v3561 = vld [vmem:[%s1 + $0x1c] sm:$0xf]
        %v3562 = vld [vmem:[%s1 + $0x20] sm:$0xf]
        %v3563 = vld [vmem:[%s1 + $0x24] sm:$0xf]
        %v3564 = vld [vmem:[%s1 + $0x28] sm:$0xf]
        %v3565 = vld [vmem:[%s1 + $0x2c] sm:$0xf]
        %v3566 = vld [vmem:[%s1 + $0x30] sm:$0x3]
        %v3580 = vunpack.c.l.b16 %v3554
        %v3581 = vunpack.c.l.b16 %v3555
        %v3582 = vunpack.c.l.b16 %v3556
        %v3583 = vunpack.c.l.b16 %v3557
        %v3584 = vunpack.c.l.b16 %v3558
        %v3585 = vunpack.c.l.b16 %v3559
        %v3586 = vunpack.c.l.b16 %v3560
        %v3587 = vunpack.c.l.b16 %v3561
        %v3588 = vunpack.c.l.b16 %v3562
        %v3589 = vunpack.c.l.b16 %v3563
        %v3590 = vunpack.c.l.b16 %v3564
        %v3591 = vunpack.c.l.b16 %v3565
        %v3592 = vunpack.c.l.b16 %v3566
        %v3593 = vpack.c.b16 %v3581, %v3580
        %v3594 = vpack.c.b16 %v3583, %v3582
        %v3595 = vpack.c.b16 %v3585, %v3584
        %v3596 = vpack.c.b16 %v3587, %v3586
        %v3597 = vpack.c.b16 %v3589, %v3588
        %v3598 = vpack.c.b16 %v3591, %v3590
        %v3599 = vpack.c.b16 %v3592, %v3592
        %vm3606 = vcmask 818176
        %v3608 = vsel %vm3606, %v3538, 0
        %v3611 = vsel %vm3606, %v3539, 0
        %v3614 = vsel %vm3606, %v3540, 0
        %v3617 = vsel %vm3606, %v3541, 0
        %v3620 = vsel %vm3606, %v3542, 0
        %v3623 = vsel %vm3606, %v3543, 0
        %v3626 = vsel %vm3606, %v3544, 0
        %v3629 = vsel %vm3606, %v3545, 0
        %v3632 = vsel %vm3606, %v3546, 0
        %v3635 = vsel %vm3606, %v3547, 0
        %v3638 = vsel %vm3606, %v3548, 0
        %v3641 = vsel %vm3606, %v3549, 0
        %v3644 = vsel %vm3606, %v3550, 0
        %v3647 = vsel %vm3606, %v3551, 0
        %v3650 = vsel %vm3606, %v3552, 0
        %v3653 = vsel %vm3606, %v3553, 0
        %vm3655 = vcmask 1041408
        %v3657 = vsel %vm3655, %v3599, 0
        %3659 = vmatprep.subr.bf16.mxu0 0
        %3660 = vmatpush1.bf16.msra.mxu0 %v3593
        %3661 = vmatprep.subr.bf16.mxu0 0
        %3662 = vmatpush1.bf16.msra.mxu0 %v3594
        %3663 = vmatprep.subr.bf16.mxu0 0
        %3664 = vmatpush1.bf16.msra.mxu0 %v3595
        %3665 = vmatprep.subr.bf16.mxu0 0
        %3666 = vmatpush1.bf16.msra.mxu0 %v3596
        %3667 = vmatprep.subr.bf16.mxu0 0
        %3668 = vmatpush1.bf16.msra.mxu0 %v3597
        %3669 = vmatprep.subr.bf16.mxu0 0
        %3670 = vmatpush1.bf16.msra.mxu0 %v3598
        %3671 = vmatprep.subr.bf16.mxu0 0
        %3672 = vmatpush1.bf16.msra.mxu0 %v3657
        %3673 = vmatprep.subr.bf16.mxu0 0
        %3674 = vmatpush1.bf16.msra.mxu0 0
        %3675 = vmatprep.subr.bf16.mxu0 0
        %3676 = vmatpush1.bf16.msra.mxu0 0
        %3677 = vmatprep.subr.bf16.mxu0 0
        %3678 = vmatpush1.bf16.msra.mxu0 0
        %3679 = vmatprep.subr.bf16.mxu0 0
        %3680 = vmatpush1.bf16.msra.mxu0 0
        %3681 = vmatprep.subr.bf16.mxu0 0
        %3682 = vmatpush1.bf16.msra.mxu0 0
        %3683 = vmatprep.subr.bf16.mxu0 0
        %3684 = vmatpush1.bf16.msra.mxu0 0
        %3685 = vmatprep.subr.bf16.mxu0 0
        %3686 = vmatpush1.bf16.msra.mxu0 0
        %3687 = vmatprep.subr.bf16.mxu0 0
        %3688 = vmatpush1.bf16.msra.mxu0 0
        %3689 = vmatprep.subr.bf16.mxu0 0
        %3690 = vmatpush1.bf16.msra.mxu0 0
        %3691 = vmatprep.mubr.bf16.mxu0 0
        %3692 = vmatmul.mubr.bf16.gmra.mrb[0].mxu0 %v3608
        %v3693 = vpop.f32.mrb[0].mxu0
        %v3694 = vadd.f32 0.0, %v3693
        %v3695 = vpop.f32.mrb[0].mxu0
        %v3696 = vpop.f32.mrb[0].mxu0
        %v3697 = vadd.f32 0.0, %v3696
        %v3698 = vpop.f32.mrb[0].mxu0
        %3699 = vmatprep.mubr.bf16.mxu0 0
        %3700 = vmatmul.mubr.bf16.gmra.mrb[0].mxu0 %v3611
        %v3701 = vpop.f32.mrb[0].mxu0
        %v3702 = vadd.f32 0.0, %v3701
        %v3703 = vpop.f32.mrb[0].mxu0
        %v3704 = vpop.f32.mrb[0].mxu0
        %v3705 = vadd.f32 0.0, %v3704
        %v3706 = vpop.f32.mrb[0].mxu0
        %3707 = vmatprep.mubr.bf16.mxu0 0
        %3708 = vmatmul.mubr.bf16.gmra.mrb[0].mxu0 %v3614
        %v3709 = vpop.f32.mrb[0].mxu0
        %v3710 = vadd.f32 0.0, %v3709
        %v3711 = vpop.f32.mrb[0].mxu0
        %v3712 = vpop.f32.mrb[0].mxu0
        %v3713 = vadd.f32 0.0, %v3712
        %v3714 = vpop.f32.mrb[0].mxu0
        %3715 = vmatprep.mubr.bf16.mxu0 0
        %3716 = vmatmul.mubr.bf16.gmra.mrb[0].mxu0 %v3617
        %v3717 = vpop.f32.mrb[0].mxu0
        %v3718 = vadd.f32 0.0, %v3717
        %v3719 = vpop.f32.mrb[0].mxu0
        %v3720 = vpop.f32.mrb[0].mxu0
        %v3721 = vadd.f32 0.0, %v3720
        %v3722 = vpop.f32.mrb[0].mxu0
        %3723 = vmatprep.mubr.bf16.mxu0 0
        %3724 = vmatmul.mubr.bf16.gmra.mrb[0].mxu0 %v3620
        %v3725 = vpop.f32.mrb[0].mxu0
        %v3726 = vadd.f32 0.0, %v3725
        %v3727 = vpop.f32.mrb[0].mxu0
        %v3728 = vpop.f32.mrb[0].mxu0
        %v3729 = vadd.f32 0.0, %v3728
        %v3730 = vpop.f32.mrb[0].mxu0
        %3731 = vmatprep.mubr.bf16.mxu0 0
        %3732 = vmatmul.mubr.bf16.gmra.mrb[0].mxu0 %v3623
        %v3733 = vpop.f32.mrb[0].mxu0
        %v3734 = vadd.f32 0.0, %v3733
        %v3735 = vpop.f32.mrb[0].mxu0
        %v3736 = vpop.f32.mrb[0].mxu0
        %v3737 = vadd.f32 0.0, %v3736
        %v3738 = vpop.f32.mrb[0].mxu0
        %3739 = vmatprep.mubr.bf16.mxu0 0
        %3740 = vmatmul.mubr.bf16.gmra.mrb[0].mxu0 %v3626
        %v3741 = vpop.f32.mrb[0].mxu0
        %v3742 = vadd.f32 0.0, %v3741
        %v3743 = vpop.f32.mrb[0].mxu0
        %v3744 = vpop.f32.mrb[0].mxu0
        %v3745 = vadd.f32 0.0, %v3744
        %v3746 = vpop.f32.mrb[0].mxu0
        %3747 = vmatprep.mubr.bf16.mxu0 0
        %3748 = vmatmul.mubr.bf16.gmra.mrb[0].mxu0 %v3629
        %v3749 = vpop.f32.mrb[0].mxu0
        %v3750 = vadd.f32 0.0, %v3749
        %v3751 = vpop.f32.mrb[0].mxu0
        %v3752 = vpop.f32.mrb[0].mxu0
        %v3753 = vadd.f32 0.0, %v3752
        %v3754 = vpop.f32.mrb[0].mxu0
        %3755 = vmatprep.mubr.bf16.mxu0 0
        %3756 = vmatmul.mubr.bf16.gmra.mrb[0].mxu0 %v3632
        %v3757 = vpop.f32.mrb[0].mxu0
        %v3758 = vadd.f32 0.0, %v3757
        %v3759 = vpop.f32.mrb[0].mxu0
        %v3760 = vpop.f32.mrb[0].mxu0
        %v3761 = vadd.f32 0.0, %v3760
        %v3762 = vpop.f32.mrb[0].mxu0
        %3763 = vmatprep.mubr.bf16.mxu0 0
        %3764 = vmatmul.mubr.bf16.gmra.mrb[0].mxu0 %v3635
        %v3765 = vpop.f32.mrb[0].mxu0
        %v3766 = vadd.f32 0.0, %v3765
        %v3767 = vpop.f32.mrb[0].mxu0
        %v3768 = vpop.f32.mrb[0].mxu0
        %v3769 = vadd.f32 0.0, %v3768
        %v3770 = vpop.f32.mrb[0].mxu0
        %3771 = vmatprep.mubr.bf16.mxu0 0
        %3772 = vmatmul.mubr.bf16.gmra.mrb[0].mxu0 %v3638
        %v3773 = vpop.f32.mrb[0].mxu0
        %v3774 = vadd.f32 0.0, %v3773
        %v3775 = vpop.f32.mrb[0].mxu0
        %v3776 = vpop.f32.mrb[0].mxu0
        %v3777 = vadd.f32 0.0, %v3776
        %v3778 = vpop.f32.mrb[0].mxu0
        %3779 = vmatprep.mubr.bf16.mxu0 0
        %3780 = vmatmul.mubr.bf16.gmra.mrb[0].mxu0 %v3641
        %v3781 = vpop.f32.mrb[0].mxu0
        %v3782 = vadd.f32 0.0, %v3781
        %v3783 = vpop.f32.mrb[0].mxu0
        %v3784 = vpop.f32.mrb[0].mxu0
        %v3785 = vadd.f32 0.0, %v3784
        %v3786 = vpop.f32.mrb[0].mxu0
        %3787 = vmatprep.mubr.bf16.mxu0 0
        %3788 = vmatmul.mubr.bf16.gmra.mrb[0].mxu0 %v3644
        %v3789 = vpop.f32.mrb[0].mxu0
        %v3790 = vadd.f32 0.0, %v3789
        %v3791 = vpop.f32.mrb[0].mxu0
        %v3792 = vpop.f32.mrb[0].mxu0
        %v3793 = vadd.f32 0.0, %v3792
        %v3794 = vpop.f32.mrb[0].mxu0
        %3795 = vmatprep.mubr.bf16.mxu0 0
        %3796 = vmatmul.mubr.bf16.gmra.mrb[0].mxu0 %v3647
        %v3797 = vpop.f32.mrb[0].mxu0
        %v3798 = vadd.f32 0.0, %v3797
        %v3799 = vpop.f32.mrb[0].mxu0
        %v3800 = vpop.f32.mrb[0].mxu0
        %v3801 = vadd.f32 0.0, %v3800
        %v3802 = vpop.f32.mrb[0].mxu0
        %3803 = vmatprep.mubr.bf16.mxu0 0
        %3804 = vmatmul.mubr.bf16.gmra.mrb[0].mxu0 %v3650
        %v3805 = vpop.f32.mrb[0].mxu0
        %v3806 = vadd.f32 0.0, %v3805
        %v3807 = vpop.f32.mrb[0].mxu0
        %v3808 = vpop.f32.mrb[0].mxu0
        %v3809 = vadd.f32 0.0, %v3808
        %v3810 = vpop.f32.mrb[0].mxu0
        %3811 = vmatprep.mubr.bf16.mxu0 0
        %3812 = vmatmul.mubr.bf16.gmra.mrb[0].mxu0 %v3653
        %v3813 = vpop.f32.mrb[0].mxu0
        %v3814 = vadd.f32 0.0, %v3813
        %v3815 = vpop.f32.mrb[0].mxu0
        %v3816 = vpop.f32.mrb[0].mxu0
        %v3817 = vadd.f32 0.0, %v3816
        %v3818 = vpop.f32.mrb[0].mxu0
        %3819 = vdwg.mxu0
        %s3820 = scalar_lea.vmem [#allocation3], 24
        %3821 = vst.msk [vmem:[%s3820 + $0x1] sm:$0xff] %vm342, %v3694
        %3822 = vst.msk [vmem:[%s3820 + $0x9] sm:$0xff] %vm342, %v3697
        %3823 = vst.msk [vmem:[%s3820 + $0x19] sm:$0xff] %vm342, %v3702
        %3824 = vst.msk [vmem:[%s3820 + $0x21] sm:$0xff] %vm342, %v3705
        %3825 = vst.msk [vmem:[%s3820 + $0x31] sm:$0xff] %vm342, %v3710
        %3826 = vst.msk [vmem:[%s3820 + $0x39] sm:$0xff] %vm342, %v3713
        %3827 = vst.msk [vmem:[%s3820 + $0x49] sm:$0xff] %vm342, %v3718
        %3828 = vst.msk [vmem:[%s3820 + $0x51] sm:$0xff] %vm342, %v3721
        %3829 = vst.msk [vmem:[%s3820 + $0x61] sm:$0xff] %vm342, %v3726
        %3830 = vst.msk [vmem:[%s3820 + $0x69] sm:$0xff] %vm342, %v3729
        %3831 = vst.msk [vmem:[%s3820 + $0x79] sm:$0xff] %vm342, %v3734
        %3832 = vst.msk [vmem:[%s3820 + $0x81] sm:$0xff] %vm342, %v3737
        %3833 = vst.msk [vmem:[%s3820 + $0x91] sm:$0xff] %vm342, %v3742
        %3834 = vst.msk [vmem:[%s3820 + $0x99] sm:$0xff] %vm342, %v3745
        %3835 = vst.msk [vmem:[%s3820 + $0xa9] sm:$0xff] %vm342, %v3750
        %3836 = vst.msk [vmem:[%s3820 + $0xb1] sm:$0xff] %vm342, %v3753
        %3837 = vst.msk [vmem:[%s3820 + $0xc1] sm:$0xff] %vm342, %v3758
        %3838 = vst.msk [vmem:[%s3820 + $0xc9] sm:$0xff] %vm342, %v3761
        %3839 = vst.msk [vmem:[%s3820 + $0xd9] sm:$0xff] %vm342, %v3766
        %3840 = vst.msk [vmem:[%s3820 + $0xe1] sm:$0xff] %vm342, %v3769
        %3841 = vst.msk [vmem:[%s3820 + $0xf1] sm:$0xff] %vm342, %v3774
        %3842 = vst.msk [vmem:[%s3820 + $0xf9] sm:$0xff] %vm342, %v3777
        %3843 = vst.msk [vmem:[%s3820 + $0x109] sm:$0xff] %vm342, %v3782
        %3844 = vst.msk [vmem:[%s3820 + $0x111] sm:$0xff] %vm342, %v3785
        %3845 = vst.msk [vmem:[%s3820 + $0x121] sm:$0xff] %vm342, %v3790
        %3846 = vst.msk [vmem:[%s3820 + $0x129] sm:$0xff] %vm342, %v3793
        %3847 = vst.msk [vmem:[%s3820 + $0x139] sm:$0xff] %vm342, %v3798
        %3848 = vst.msk [vmem:[%s3820 + $0x141] sm:$0xff] %vm342, %v3801
        %3849 = vst.msk [vmem:[%s3820 + $0x151] sm:$0xff] %vm342, %v3806
        %3850 = vst.msk [vmem:[%s3820 + $0x159] sm:$0xff] %vm342, %v3809
        %3851 = vst.msk [vmem:[%s3820 + $0x169] sm:$0xff] %vm342, %v3814
        %3852 = vst.msk [vmem:[%s3820 + $0x171] sm:$0xff] %vm342, %v3817
        %v3853 = vld [vmem:[#allocation3] sm:$0xff]
        %v3854 = vld [vmem:[#allocation3 + $0x8] sm:$0xff]
        %v3855 = vld [vmem:[#allocation3 + $0x18] sm:$0xff]
        %v3856 = vld [vmem:[#allocation3 + $0x20] sm:$0xff]
        %v3857 = vld [vmem:[#allocation3 + $0x30] sm:$0xff]
        %v3858 = vld [vmem:[#allocation3 + $0x38] sm:$0xff]
        %v3859 = vld [vmem:[#allocation3 + $0x48] sm:$0xff]
        %v3860 = vld [vmem:[#allocation3 + $0x50] sm:$0xff]
        %v3861 = vld [vmem:[#allocation3 + $0x60] sm:$0xff]
        %v3862 = vld [vmem:[#allocation3 + $0x68] sm:$0xff]
        %v3863 = vld [vmem:[#allocation3 + $0x78] sm:$0xff]
        %v3864 = vld [vmem:[#allocation3 + $0x80] sm:$0xff]
        %v3865 = vld [vmem:[#allocation3 + $0x90] sm:$0xff]
        %v3866 = vld [vmem:[#allocation3 + $0x98] sm:$0xff]
        %v3867 = vld [vmem:[#allocation3 + $0xa8] sm:$0xff]
        %v3868 = vld [vmem:[#allocation3 + $0xb0] sm:$0xff]
        %v3869 = vld [vmem:[#allocation3 + $0xc0] sm:$0xff]
        %v3870 = vld [vmem:[#allocation3 + $0xc8] sm:$0xff]
        %v3871 = vld [vmem:[#allocation3 + $0xd8] sm:$0xff]
        %v3872 = vld [vmem:[#allocation3 + $0xe0] sm:$0xff]
        %v3873 = vld [vmem:[#allocation3 + $0xf0] sm:$0xff]
        %v3874 = vld [vmem:[#allocation3 + $0xf8] sm:$0xff]
        %v3875 = vld [vmem:[#allocation3 + $0x108] sm:$0xff]
        %v3876 = vld [vmem:[#allocation3 + $0x110] sm:$0xff]
        %v3877 = vld [vmem:[#allocation3 + $0x120] sm:$0xff]
        %v3878 = vld [vmem:[#allocation3 + $0x128] sm:$0xff]
        %v3879 = vld [vmem:[#allocation3 + $0x138] sm:$0xff]
        %v3880 = vld [vmem:[#allocation3 + $0x140] sm:$0xff]
        %v3881 = vld [vmem:[#allocation3 + $0x150] sm:$0xff]
        %v3882 = vld [vmem:[#allocation3 + $0x158] sm:$0xff]
        %v3883 = vld [vmem:[#allocation3 + $0x168] sm:$0xff]
        %v3884 = vld [vmem:[#allocation3 + $0x170] sm:$0xff]
        %v3885 = vpack.c.bf16 %v3854, %v3853
        %v3886 = vpack.c.bf16 %v3856, %v3855
        %v3887 = vpack.c.bf16 %v3858, %v3857
        %v3888 = vpack.c.bf16 %v3860, %v3859
        %v3889 = vpack.c.bf16 %v3862, %v3861
        %v3890 = vpack.c.bf16 %v3864, %v3863
        %v3891 = vpack.c.bf16 %v3866, %v3865
        %v3892 = vpack.c.bf16 %v3868, %v3867
        %v3893 = vpack.c.bf16 %v3870, %v3869
        %v3894 = vpack.c.bf16 %v3872, %v3871
        %v3895 = vpack.c.bf16 %v3874, %v3873
        %v3896 = vpack.c.bf16 %v3876, %v3875
        %v3897 = vpack.c.bf16 %v3878, %v3877
        %v3898 = vpack.c.bf16 %v3880, %v3879
        %v3899 = vpack.c.bf16 %v3882, %v3881
        %v3900 = vpack.c.bf16 %v3884, %v3883
        %3901 = vst.msk [vmem:[#allocation5] sm:$0xff] %vm342, %v3885
        %3902 = vst.msk [vmem:[#allocation5 + $0x8] sm:$0xff] %vm342, %v3886
        %3903 = vst.msk [vmem:[#allocation5 + $0x10] sm:$0xff] %vm342, %v3887
        %3904 = vst.msk [vmem:[#allocation5 + $0x18] sm:$0xff] %vm342, %v3888
        %3905 = vst.msk [vmem:[#allocation5 + $0x20] sm:$0xff] %vm342, %v3889
        %3906 = vst.msk [vmem:[#allocation5 + $0x28] sm:$0xff] %vm342, %v3890
        %3907 = vst.msk [vmem:[#allocation5 + $0x30] sm:$0xff] %vm342, %v3891
        %3908 = vst.msk [vmem:[#allocation5 + $0x38] sm:$0xff] %vm342, %v3892
        %3909 = vst.msk [vmem:[#allocation5 + $0x40] sm:$0xff] %vm342, %v3893
        %3910 = vst.msk [vmem:[#allocation5 + $0x48] sm:$0xff] %vm342, %v3894
        %3911 = vst.msk [vmem:[#allocation5 + $0x50] sm:$0xff] %vm342, %v3895
        %3912 = vst.msk [vmem:[#allocation5 + $0x58] sm:$0xff] %vm342, %v3896
        %3913 = vst.msk [vmem:[#allocation5 + $0x60] sm:$0xff] %vm342, %v3897
        %3914 = vst.msk [vmem:[#allocation5 + $0x68] sm:$0xff] %vm342, %v3898
        %3915 = vst.msk [vmem:[#allocation5 + $0x70] sm:$0xff] %vm342, %v3899
        %3916 = vst.msk [vmem:[#allocation5 + $0x78] sm:$0xff] %vm342, %v3900
        %v3917 = vld [vmem:[#allocation3 + $0x1] sm:$0xff]
        %v3918 = vld [vmem:[#allocation3 + $0x9] sm:$0xff]
        %v3919 = vld [vmem:[#allocation3 + $0x19] sm:$0xff]
        %v3920 = vld [vmem:[#allocation3 + $0x21] sm:$0xff]
        %v3921 = vld [vmem:[#allocation3 + $0x31] sm:$0xff]
        %v3922 = vld [vmem:[#allocation3 + $0x39] sm:$0xff]
        %v3923 = vld [vmem:[#allocation3 + $0x49] sm:$0xff]
        %v3924 = vld [vmem:[#allocation3 + $0x51] sm:$0xff]
        %v3925 = vld [vmem:[#allocation3 + $0x61] sm:$0xff]
        %v3926 = vld [vmem:[#allocation3 + $0x69] sm:$0xff]
        %v3927 = vld [vmem:[#allocation3 + $0x79] sm:$0xff]
        %v3928 = vld [vmem:[#allocation3 + $0x81] sm:$0xff]
        %v3929 = vld [vmem:[#allocation3 + $0x91] sm:$0xff]
        %v3930 = vld [vmem:[#allocation3 + $0x99] sm:$0xff]
        %v3931 = vld [vmem:[#allocation3 + $0xa9] sm:$0xff]
        %v3932 = vld [vmem:[#allocation3 + $0xb1] sm:$0xff]
        %v3933 = vld [vmem:[#allocation3 + $0xc1] sm:$0xff]
        %v3934 = vld [vmem:[#allocation3 + $0xc9] sm:$0xff]
        %v3935 = vld [vmem:[#allocation3 + $0xd9] sm:$0xff]
        %v3936 = vld [vmem:[#allocation3 + $0xe1] sm:$0xff]
        %v3937 = vld [vmem:[#allocation3 + $0xf1] sm:$0xff]
        %v3938 = vld [vmem:[#allocation3 + $0xf9] sm:$0xff]
        %v3939 = vld [vmem:[#allocation3 + $0x109] sm:$0xff]
        %v3940 = vld [vmem:[#allocation3 + $0x111] sm:$0xff]
        %v3941 = vld [vmem:[#allocation3 + $0x121] sm:$0xff]
        %v3942 = vld [vmem:[#allocation3 + $0x129] sm:$0xff]
        %v3943 = vld [vmem:[#allocation3 + $0x139] sm:$0xff]
        %v3944 = vld [vmem:[#allocation3 + $0x141] sm:$0xff]
        %v3945 = vld [vmem:[#allocation3 + $0x151] sm:$0xff]
        %v3946 = vld [vmem:[#allocation3 + $0x159] sm:$0xff]
        %v3947 = vld [vmem:[#allocation3 + $0x169] sm:$0xff]
        %v3948 = vld [vmem:[#allocation3 + $0x171] sm:$0xff]
        %v3949 = vpack.c.bf16 %v3918, %v3917
        %v3950 = vpack.c.bf16 %v3920, %v3919
        %v3951 = vpack.c.bf16 %v3922, %v3921
        %v3952 = vpack.c.bf16 %v3924, %v3923
        %v3953 = vpack.c.bf16 %v3926, %v3925
        %v3954 = vpack.c.bf16 %v3928, %v3927
        %v3955 = vpack.c.bf16 %v3930, %v3929
        %v3956 = vpack.c.bf16 %v3932, %v3931
        %v3957 = vpack.c.bf16 %v3934, %v3933
        %v3958 = vpack.c.bf16 %v3936, %v3935
        %v3959 = vpack.c.bf16 %v3938, %v3937
        %v3960 = vpack.c.bf16 %v3940, %v3939
        %v3961 = vpack.c.bf16 %v3942, %v3941
        %v3962 = vpack.c.bf16 %v3944, %v3943
        %v3963 = vpack.c.bf16 %v3946, %v3945
        %v3964 = vpack.c.bf16 %v3948, %v3947
        %3981 = vrot.lane.b32.xlu0 %v3949, 4
        %v3982 = vpop.permute.xlu0 %3981
        %3983 = vrot.lane.b32.xlu0 %v3950, 4
        %v3984 = vpop.permute.xlu0 %3983
        %3985 = vrot.lane.b32.xlu0 %v3951, 4
        %v3986 = vpop.permute.xlu0 %3985
        %3987 = vrot.lane.b32.xlu0 %v3952, 4
        %v3988 = vpop.permute.xlu0 %3987
        %3989 = vrot.lane.b32.xlu0 %v3953, 4
        %v3990 = vpop.permute.xlu0 %3989
        %3991 = vrot.lane.b32.xlu0 %v3954, 4
        %v3992 = vpop.permute.xlu0 %3991
        %3993 = vrot.lane.b32.xlu0 %v3955, 4
        %v3994 = vpop.permute.xlu0 %3993
        %3995 = vrot.lane.b32.xlu0 %v3956, 4
        %v3996 = vpop.permute.xlu0 %3995
        %3997 = vrot.lane.b32.xlu0 %v3957, 4
        %v3998 = vpop.permute.xlu0 %3997
        %3999 = vrot.lane.b32.xlu0 %v3958, 4
        %v4000 = vpop.permute.xlu0 %3999
        %4001 = vrot.lane.b32.xlu0 %v3959, 4
        %v4002 = vpop.permute.xlu0 %4001
        %4003 = vrot.lane.b32.xlu0 %v3960, 4
        %v4004 = vpop.permute.xlu0 %4003
        %4005 = vrot.lane.b32.xlu0 %v3961, 4
        %v4006 = vpop.permute.xlu0 %4005
        %4007 = vrot.lane.b32.xlu0 %v3962, 4
        %v4008 = vpop.permute.xlu0 %4007
        %4009 = vrot.lane.b32.xlu0 %v3963, 4
        %v4010 = vpop.permute.xlu0 %4009
        %4011 = vrot.lane.b32.xlu0 %v3964, 4
        %v4012 = vpop.permute.xlu0 %4011
        %4029 = vst.msk [vmem:[#allocation5] sm:$0xff] %vm551, %v3982
        %4030 = vst.msk [vmem:[#allocation5 + $0x8] sm:$0xff] %vm551, %v3984
        %4031 = vst.msk [vmem:[#allocation5 + $0x10] sm:$0xff] %vm551, %v3986
        %4032 = vst.msk [vmem:[#allocation5 + $0x18] sm:$0xff] %vm551, %v3988
        %4033 = vst.msk [vmem:[#allocation5 + $0x20] sm:$0xff] %vm551, %v3990
        %4034 = vst.msk [vmem:[#allocation5 + $0x28] sm:$0xff] %vm551, %v3992
        %4035 = vst.msk [vmem:[#allocation5 + $0x30] sm:$0xff] %vm551, %v3994
        %4036 = vst.msk [vmem:[#allocation5 + $0x38] sm:$0xff] %vm551, %v3996
        %4037 = vst.msk [vmem:[#allocation5 + $0x40] sm:$0xff] %vm551, %v3998
        %4038 = vst.msk [vmem:[#allocation5 + $0x48] sm:$0xff] %vm551, %v4000
        %4039 = vst.msk [vmem:[#allocation5 + $0x50] sm:$0xff] %vm551, %v4002
        %4040 = vst.msk [vmem:[#allocation5 + $0x58] sm:$0xff] %vm551, %v4004
        %4041 = vst.msk [vmem:[#allocation5 + $0x60] sm:$0xff] %vm551, %v4006
        %4042 = vst.msk [vmem:[#allocation5 + $0x68] sm:$0xff] %vm551, %v4008
        %4043 = vst.msk [vmem:[#allocation5 + $0x70] sm:$0xff] %vm551, %v4010
        %4044 = vst.msk [vmem:[#allocation5 + $0x78] sm:$0xff] %vm551, %v4012
        %v4045 = vld [vmem:[#allocation3 + $0x2] sm:$0xff]
        %v4046 = vld [vmem:[#allocation3 + $0xa] sm:$0xff]
        %v4047 = vld [vmem:[#allocation3 + $0x1a] sm:$0xff]
        %v4048 = vld [vmem:[#allocation3 + $0x22] sm:$0xff]
        %v4049 = vld [vmem:[#allocation3 + $0x32] sm:$0xff]
        %v4050 = vld [vmem:[#allocation3 + $0x3a] sm:$0xff]
        %v4051 = vld [vmem:[#allocation3 + $0x4a] sm:$0xff]
        %v4052 = vld [vmem:[#allocation3 + $0x52] sm:$0xff]
        %v4053 = vld [vmem:[#allocation3 + $0x62] sm:$0xff]
        %v4054 = vld [vmem:[#allocation3 + $0x6a] sm:$0xff]
        %v4055 = vld [vmem:[#allocation3 + $0x7a] sm:$0xff]
        %v4056 = vld [vmem:[#allocation3 + $0x82] sm:$0xff]
        %v4057 = vld [vmem:[#allocation3 + $0x92] sm:$0xff]
        %v4058 = vld [vmem:[#allocation3 + $0x9a] sm:$0xff]
        %v4059 = vld [vmem:[#allocation3 + $0xaa] sm:$0xff]
        %v4060 = vld [vmem:[#allocation3 + $0xb2] sm:$0xff]
        %v4061 = vld [vmem:[#allocation3 + $0xc2] sm:$0xff]
        %v4062 = vld [vmem:[#allocation3 + $0xca] sm:$0xff]
        %v4063 = vld [vmem:[#allocation3 + $0xda] sm:$0xff]
        %v4064 = vld [vmem:[#allocation3 + $0xe2] sm:$0xff]
        %v4065 = vld [vmem:[#allocation3 + $0xf2] sm:$0xff]
        %v4066 = vld [vmem:[#allocation3 + $0xfa] sm:$0xff]
        %v4067 = vld [vmem:[#allocation3 + $0x10a] sm:$0xff]
        %v4068 = vld [vmem:[#allocation3 + $0x112] sm:$0xff]
        %v4069 = vld [vmem:[#allocation3 + $0x122] sm:$0xff]
        %v4070 = vld [vmem:[#allocation3 + $0x12a] sm:$0xff]
        %v4071 = vld [vmem:[#allocation3 + $0x13a] sm:$0xff]
        %v4072 = vld [vmem:[#allocation3 + $0x142] sm:$0xff]
        %v4073 = vld [vmem:[#allocation3 + $0x152] sm:$0xff]
        %v4074 = vld [vmem:[#allocation3 + $0x15a] sm:$0xff]
        %v4075 = vld [vmem:[#allocation3 + $0x16a] sm:$0xff]
        %v4076 = vld [vmem:[#allocation3 + $0x172] sm:$0xff]
        %v4077 = vpack.c.bf16 %v4046, %v4045
        %v4078 = vpack.c.bf16 %v4048, %v4047
        %v4079 = vpack.c.bf16 %v4050, %v4049
        %v4080 = vpack.c.bf16 %v4052, %v4051
        %v4081 = vpack.c.bf16 %v4054, %v4053
        %v4082 = vpack.c.bf16 %v4056, %v4055
        %v4083 = vpack.c.bf16 %v4058, %v4057
        %v4084 = vpack.c.bf16 %v4060, %v4059
        %v4085 = vpack.c.bf16 %v4062, %v4061
        %v4086 = vpack.c.bf16 %v4064, %v4063
        %v4087 = vpack.c.bf16 %v4066, %v4065
        %v4088 = vpack.c.bf16 %v4068, %v4067
        %v4089 = vpack.c.bf16 %v4070, %v4069
        %v4090 = vpack.c.bf16 %v4072, %v4071
        %v4091 = vpack.c.bf16 %v4074, %v4073
        %v4092 = vpack.c.bf16 %v4076, %v4075
        %4109 = vrot.lane.b32.xlu0 %v4077, 8
        %v4110 = vpop.permute.xlu0 %4109
        %4111 = vrot.lane.b32.xlu0 %v4078, 8
        %v4112 = vpop.permute.xlu0 %4111
        %4113 = vrot.lane.b32.xlu0 %v4079, 8
        %v4114 = vpop.permute.xlu0 %4113
        %4115 = vrot.lane.b32.xlu0 %v4080, 8
        %v4116 = vpop.permute.xlu0 %4115
        %4117 = vrot.lane.b32.xlu0 %v4081, 8
        %v4118 = vpop.permute.xlu0 %4117
        %4119 = vrot.lane.b32.xlu0 %v4082, 8
        %v4120 = vpop.permute.xlu0 %4119
        %4121 = vrot.lane.b32.xlu0 %v4083, 8
        %v4122 = vpop.permute.xlu0 %4121
        %4123 = vrot.lane.b32.xlu0 %v4084, 8
        %v4124 = vpop.permute.xlu0 %4123
        %4125 = vrot.lane.b32.xlu0 %v4085, 8
        %v4126 = vpop.permute.xlu0 %4125
        %4127 = vrot.lane.b32.xlu0 %v4086, 8
        %v4128 = vpop.permute.xlu0 %4127
        %4129 = vrot.lane.b32.xlu0 %v4087, 8
        %v4130 = vpop.permute.xlu0 %4129
        %4131 = vrot.lane.b32.xlu0 %v4088, 8
        %v4132 = vpop.permute.xlu0 %4131
        %4133 = vrot.lane.b32.xlu0 %v4089, 8
        %v4134 = vpop.permute.xlu0 %4133
        %4135 = vrot.lane.b32.xlu0 %v4090, 8
        %v4136 = vpop.permute.xlu0 %4135
        %4137 = vrot.lane.b32.xlu0 %v4091, 8
        %v4138 = vpop.permute.xlu0 %4137
        %4139 = vrot.lane.b32.xlu0 %v4092, 8
        %v4140 = vpop.permute.xlu0 %4139
        %4157 = vst.msk [vmem:[#allocation5] sm:$0xff] %vm680, %v4110
        %4158 = vst.msk [vmem:[#allocation5 + $0x8] sm:$0xff] %vm680, %v4112
        %4159 = vst.msk [vmem:[#allocation5 + $0x10] sm:$0xff] %vm680, %v4114
        %4160 = vst.msk [vmem:[#allocation5 + $0x18] sm:$0xff] %vm680, %v4116
        %4161 = vst.msk [vmem:[#allocation5 + $0x20] sm:$0xff] %vm680, %v4118
        %4162 = vst.msk [vmem:[#allocation5 + $0x28] sm:$0xff] %vm680, %v4120
        %4163 = vst.msk [vmem:[#allocation5 + $0x30] sm:$0xff] %vm680, %v4122
        %4164 = vst.msk [vmem:[#allocation5 + $0x38] sm:$0xff] %vm680, %v4124
        %4165 = vst.msk [vmem:[#allocation5 + $0x40] sm:$0xff] %vm680, %v4126
        %4166 = vst.msk [vmem:[#allocation5 + $0x48] sm:$0xff] %vm680, %v4128
        %4167 = vst.msk [vmem:[#allocation5 + $0x50] sm:$0xff] %vm680, %v4130
        %4168 = vst.msk [vmem:[#allocation5 + $0x58] sm:$0xff] %vm680, %v4132
        %4169 = vst.msk [vmem:[#allocation5 + $0x60] sm:$0xff] %vm680, %v4134
        %4170 = vst.msk [vmem:[#allocation5 + $0x68] sm:$0xff] %vm680, %v4136
        %4171 = vst.msk [vmem:[#allocation5 + $0x70] sm:$0xff] %vm680, %v4138
        %4172 = vst.msk [vmem:[#allocation5 + $0x78] sm:$0xff] %vm680, %v4140
        %v4173 = vld [vmem:[%s3820] sm:$0xff]
        %v4174 = vld [vmem:[%s3820 + $0x8] sm:$0xff]
        %v4175 = vld [vmem:[%s3820 + $0x18] sm:$0xff]
        %v4176 = vld [vmem:[%s3820 + $0x20] sm:$0xff]
        %v4177 = vld [vmem:[%s3820 + $0x30] sm:$0xff]
        %v4178 = vld [vmem:[%s3820 + $0x38] sm:$0xff]
        %v4179 = vld [vmem:[%s3820 + $0x48] sm:$0xff]
        %v4180 = vld [vmem:[%s3820 + $0x50] sm:$0xff]
        %v4181 = vld [vmem:[%s3820 + $0x60] sm:$0xff]
        %v4182 = vld [vmem:[%s3820 + $0x68] sm:$0xff]
        %v4183 = vld [vmem:[%s3820 + $0x78] sm:$0xff]
        %v4184 = vld [vmem:[%s3820 + $0x80] sm:$0xff]
        %v4185 = vld [vmem:[%s3820 + $0x90] sm:$0xff]
        %v4186 = vld [vmem:[%s3820 + $0x98] sm:$0xff]
        %v4187 = vld [vmem:[%s3820 + $0xa8] sm:$0xff]
        %v4188 = vld [vmem:[%s3820 + $0xb0] sm:$0xff]
        %v4189 = vld [vmem:[%s3820 + $0xc0] sm:$0xff]
        %v4190 = vld [vmem:[%s3820 + $0xc8] sm:$0xff]
        %v4191 = vld [vmem:[%s3820 + $0xd8] sm:$0xff]
        %v4192 = vld [vmem:[%s3820 + $0xe0] sm:$0xff]
        %v4193 = vld [vmem:[%s3820 + $0xf0] sm:$0xff]
        %v4194 = vld [vmem:[%s3820 + $0xf8] sm:$0xff]
        %v4195 = vld [vmem:[%s3820 + $0x108] sm:$0xff]
        %v4196 = vld [vmem:[%s3820 + $0x110] sm:$0xff]
        %v4197 = vld [vmem:[%s3820 + $0x120] sm:$0xff]
        %v4198 = vld [vmem:[%s3820 + $0x128] sm:$0xff]
        %v4199 = vld [vmem:[%s3820 + $0x138] sm:$0xff]
        %v4200 = vld [vmem:[%s3820 + $0x140] sm:$0xff]
        %v4201 = vld [vmem:[%s3820 + $0x150] sm:$0xff]
        %v4202 = vld [vmem:[%s3820 + $0x158] sm:$0xff]
        %v4203 = vld [vmem:[%s3820 + $0x168] sm:$0xff]
        %v4204 = vld [vmem:[%s3820 + $0x170] sm:$0xff]
        %v4205 = vpack.c.bf16 %v4174, %v4173
        %v4206 = vpack.c.bf16 %v4176, %v4175
        %v4207 = vpack.c.bf16 %v4178, %v4177
        %v4208 = vpack.c.bf16 %v4180, %v4179
        %v4209 = vpack.c.bf16 %v4182, %v4181
        %v4210 = vpack.c.bf16 %v4184, %v4183
        %v4211 = vpack.c.bf16 %v4186, %v4185
        %v4212 = vpack.c.bf16 %v4188, %v4187
        %v4213 = vpack.c.bf16 %v4190, %v4189
        %v4214 = vpack.c.bf16 %v4192, %v4191
        %v4215 = vpack.c.bf16 %v4194, %v4193
        %v4216 = vpack.c.bf16 %v4196, %v4195
        %v4217 = vpack.c.bf16 %v4198, %v4197
        %v4218 = vpack.c.bf16 %v4200, %v4199
        %v4219 = vpack.c.bf16 %v4202, %v4201
        %v4220 = vpack.c.bf16 %v4204, %v4203
        %4237 = vrot.lane.b32.xlu0 %v4205, 12
        %v4238 = vpop.permute.xlu0 %4237
        %4239 = vrot.lane.b32.xlu0 %v4206, 12
        %v4240 = vpop.permute.xlu0 %4239
        %4241 = vrot.lane.b32.xlu0 %v4207, 12
        %v4242 = vpop.permute.xlu0 %4241
        %4243 = vrot.lane.b32.xlu0 %v4208, 12
        %v4244 = vpop.permute.xlu0 %4243
        %4245 = vrot.lane.b32.xlu0 %v4209, 12
        %v4246 = vpop.permute.xlu0 %4245
        %4247 = vrot.lane.b32.xlu0 %v4210, 12
        %v4248 = vpop.permute.xlu0 %4247
        %4249 = vrot.lane.b32.xlu0 %v4211, 12
        %v4250 = vpop.permute.xlu0 %4249
        %4251 = vrot.lane.b32.xlu0 %v4212, 12
        %v4252 = vpop.permute.xlu0 %4251
        %4253 = vrot.lane.b32.xlu0 %v4213, 12
        %v4254 = vpop.permute.xlu0 %4253
        %4255 = vrot.lane.b32.xlu0 %v4214, 12
        %v4256 = vpop.permute.xlu0 %4255
        %4257 = vrot.lane.b32.xlu0 %v4215, 12
        %v4258 = vpop.permute.xlu0 %4257
        %4259 = vrot.lane.b32.xlu0 %v4216, 12
        %v4260 = vpop.permute.xlu0 %4259
        %4261 = vrot.lane.b32.xlu0 %v4217, 12
        %v4262 = vpop.permute.xlu0 %4261
        %4263 = vrot.lane.b32.xlu0 %v4218, 12
        %v4264 = vpop.permute.xlu0 %4263
        %4265 = vrot.lane.b32.xlu0 %v4219, 12
        %v4266 = vpop.permute.xlu0 %4265
        %4267 = vrot.lane.b32.xlu0 %v4220, 12
        %v4268 = vpop.permute.xlu0 %4267
        %4285 = vst.msk [vmem:[#allocation5] sm:$0xff] %vm809, %v4238
        %4286 = vst.msk [vmem:[#allocation5 + $0x8] sm:$0xff] %vm809, %v4240
        %4287 = vst.msk [vmem:[#allocation5 + $0x10] sm:$0xff] %vm809, %v4242
        %4288 = vst.msk [vmem:[#allocation5 + $0x18] sm:$0xff] %vm809, %v4244
        %4289 = vst.msk [vmem:[#allocation5 + $0x20] sm:$0xff] %vm809, %v4246
        %4290 = vst.msk [vmem:[#allocation5 + $0x28] sm:$0xff] %vm809, %v4248
        %4291 = vst.msk [vmem:[#allocation5 + $0x30] sm:$0xff] %vm809, %v4250
        %4292 = vst.msk [vmem:[#allocation5 + $0x38] sm:$0xff] %vm809, %v4252
        %4293 = vst.msk [vmem:[#allocation5 + $0x40] sm:$0xff] %vm809, %v4254
        %4294 = vst.msk [vmem:[#allocation5 + $0x48] sm:$0xff] %vm809, %v4256
        %4295 = vst.msk [vmem:[#allocation5 + $0x50] sm:$0xff] %vm809, %v4258
        %4296 = vst.msk [vmem:[#allocation5 + $0x58] sm:$0xff] %vm809, %v4260
        %4297 = vst.msk [vmem:[#allocation5 + $0x60] sm:$0xff] %vm809, %v4262
        %4298 = vst.msk [vmem:[#allocation5 + $0x68] sm:$0xff] %vm809, %v4264
        %4299 = vst.msk [vmem:[#allocation5 + $0x70] sm:$0xff] %vm809, %v4266
        %4300 = vst.msk [vmem:[#allocation5 + $0x78] sm:$0xff] %vm809, %v4268
        %v4301 = vld [vmem:[%s3820 + $0x1] sm:$0xff]
        %v4302 = vld [vmem:[%s3820 + $0x9] sm:$0xff]
        %v4303 = vld [vmem:[%s3820 + $0x19] sm:$0xff]
        %v4304 = vld [vmem:[%s3820 + $0x21] sm:$0xff]
        %v4305 = vld [vmem:[%s3820 + $0x31] sm:$0xff]
        %v4306 = vld [vmem:[%s3820 + $0x39] sm:$0xff]
        %v4307 = vld [vmem:[%s3820 + $0x49] sm:$0xff]
        %v4308 = vld [vmem:[%s3820 + $0x51] sm:$0xff]
        %v4309 = vld [vmem:[%s3820 + $0x61] sm:$0xff]
        %v4310 = vld [vmem:[%s3820 + $0x69] sm:$0xff]
        %v4311 = vld [vmem:[%s3820 + $0x79] sm:$0xff]
        %v4312 = vld [vmem:[%s3820 + $0x81] sm:$0xff]
        %v4313 = vld [vmem:[%s3820 + $0x91] sm:$0xff]
        %v4314 = vld [vmem:[%s3820 + $0x99] sm:$0xff]
        %v4315 = vld [vmem:[%s3820 + $0xa9] sm:$0xff]
        %v4316 = vld [vmem:[%s3820 + $0xb1] sm:$0xff]
        %v4317 = vld [vmem:[%s3820 + $0xc1] sm:$0xff]
        %v4318 = vld [vmem:[%s3820 + $0xc9] sm:$0xff]
        %v4319 = vld [vmem:[%s3820 + $0xd9] sm:$0xff]
        %v4320 = vld [vmem:[%s3820 + $0xe1] sm:$0xff]
        %v4321 = vld [vmem:[%s3820 + $0xf1] sm:$0xff]
        %v4322 = vld [vmem:[%s3820 + $0xf9] sm:$0xff]
        %v4323 = vld [vmem:[%s3820 + $0x109] sm:$0xff]
        %v4324 = vld [vmem:[%s3820 + $0x111] sm:$0xff]
        %v4325 = vld [vmem:[%s3820 + $0x121] sm:$0xff]
        %v4326 = vld [vmem:[%s3820 + $0x129] sm:$0xff]
        %v4327 = vld [vmem:[%s3820 + $0x139] sm:$0xff]
        %v4328 = vld [vmem:[%s3820 + $0x141] sm:$0xff]
        %v4329 = vld [vmem:[%s3820 + $0x151] sm:$0xff]
        %v4330 = vld [vmem:[%s3820 + $0x159] sm:$0xff]
        %v4331 = vld [vmem:[%s3820 + $0x169] sm:$0xff]
        %v4332 = vld [vmem:[%s3820 + $0x171] sm:$0xff]
        %v4333 = vpack.c.bf16 %v4302, %v4301
        %v4334 = vpack.c.bf16 %v4304, %v4303
        %v4335 = vpack.c.bf16 %v4306, %v4305
        %v4336 = vpack.c.bf16 %v4308, %v4307
        %v4337 = vpack.c.bf16 %v4310, %v4309
        %v4338 = vpack.c.bf16 %v4312, %v4311
        %v4339 = vpack.c.bf16 %v4314, %v4313
        %v4340 = vpack.c.bf16 %v4316, %v4315
        %v4341 = vpack.c.bf16 %v4318, %v4317
        %v4342 = vpack.c.bf16 %v4320, %v4319
        %v4343 = vpack.c.bf16 %v4322, %v4321
        %v4344 = vpack.c.bf16 %v4324, %v4323
        %v4345 = vpack.c.bf16 %v4326, %v4325
        %v4346 = vpack.c.bf16 %v4328, %v4327
        %v4347 = vpack.c.bf16 %v4330, %v4329
        %v4348 = vpack.c.bf16 %v4332, %v4331
        %4365 = vrot.lane.b32.xlu0 %v4333, 16
        %v4366 = vpop.permute.xlu0 %4365
        %4367 = vrot.lane.b32.xlu0 %v4334, 16
        %v4368 = vpop.permute.xlu0 %4367
        %4369 = vrot.lane.b32.xlu0 %v4335, 16
        %v4370 = vpop.permute.xlu0 %4369
        %4371 = vrot.lane.b32.xlu0 %v4336, 16
        %v4372 = vpop.permute.xlu0 %4371
        %4373 = vrot.lane.b32.xlu0 %v4337, 16
        %v4374 = vpop.permute.xlu0 %4373
        %4375 = vrot.lane.b32.xlu0 %v4338, 16
        %v4376 = vpop.permute.xlu0 %4375
        %4377 = vrot.lane.b32.xlu0 %v4339, 16
        %v4378 = vpop.permute.xlu0 %4377
        %4379 = vrot.lane.b32.xlu0 %v4340, 16
        %v4380 = vpop.permute.xlu0 %4379
        %4381 = vrot.lane.b32.xlu0 %v4341, 16
        %v4382 = vpop.permute.xlu0 %4381
        %4383 = vrot.lane.b32.xlu0 %v4342, 16
        %v4384 = vpop.permute.xlu0 %4383
        %4385 = vrot.lane.b32.xlu0 %v4343, 16
        %v4386 = vpop.permute.xlu0 %4385
        %4387 = vrot.lane.b32.xlu0 %v4344, 16
        %v4388 = vpop.permute.xlu0 %4387
        %4389 = vrot.lane.b32.xlu0 %v4345, 16
        %v4390 = vpop.permute.xlu0 %4389
        %4391 = vrot.lane.b32.xlu0 %v4346, 16
        %v4392 = vpop.permute.xlu0 %4391
        %4393 = vrot.lane.b32.xlu0 %v4347, 16
        %v4394 = vpop.permute.xlu0 %4393
        %4395 = vrot.lane.b32.xlu0 %v4348, 16
        %v4396 = vpop.permute.xlu0 %4395
        %4413 = vst.msk [vmem:[#allocation5] sm:$0xff] %vm938, %v4366
        %4414 = vst.msk [vmem:[#allocation5 + $0x8] sm:$0xff] %vm938, %v4368
        %4415 = vst.msk [vmem:[#allocation5 + $0x10] sm:$0xff] %vm938, %v4370
        %4416 = vst.msk [vmem:[#allocation5 + $0x18] sm:$0xff] %vm938, %v4372
        %4417 = vst.msk [vmem:[#allocation5 + $0x20] sm:$0xff] %vm938, %v4374
        %4418 = vst.msk [vmem:[#allocation5 + $0x28] sm:$0xff] %vm938, %v4376
        %4419 = vst.msk [vmem:[#allocation5 + $0x30] sm:$0xff] %vm938, %v4378
        %4420 = vst.msk [vmem:[#allocation5 + $0x38] sm:$0xff] %vm938, %v4380
        %4421 = vst.msk [vmem:[#allocation5 + $0x40] sm:$0xff] %vm938, %v4382
        %4422 = vst.msk [vmem:[#allocation5 + $0x48] sm:$0xff] %vm938, %v4384
        %4423 = vst.msk [vmem:[#allocation5 + $0x50] sm:$0xff] %vm938, %v4386
        %4424 = vst.msk [vmem:[#allocation5 + $0x58] sm:$0xff] %vm938, %v4388
        %4425 = vst.msk [vmem:[#allocation5 + $0x60] sm:$0xff] %vm938, %v4390
        %4426 = vst.msk [vmem:[#allocation5 + $0x68] sm:$0xff] %vm938, %v4392
        %4427 = vst.msk [vmem:[#allocation5 + $0x70] sm:$0xff] %vm938, %v4394
        %4428 = vst.msk [vmem:[#allocation5 + $0x78] sm:$0xff] %vm938, %v4396
        %v4429 = vld [vmem:[%s3820 + $0x2] sm:$0xff]
        %v4430 = vld [vmem:[%s3820 + $0xa] sm:$0xff]
        %v4431 = vld [vmem:[%s3820 + $0x1a] sm:$0xff]
        %v4432 = vld [vmem:[%s3820 + $0x22] sm:$0xff]
        %v4433 = vld [vmem:[%s3820 + $0x32] sm:$0xff]
        %v4434 = vld [vmem:[%s3820 + $0x3a] sm:$0xff]
        %v4435 = vld [vmem:[%s3820 + $0x4a] sm:$0xff]
        %v4436 = vld [vmem:[%s3820 + $0x52] sm:$0xff]
        %v4437 = vld [vmem:[%s3820 + $0x62] sm:$0xff]
        %v4438 = vld [vmem:[%s3820 + $0x6a] sm:$0xff]
        %v4439 = vld [vmem:[%s3820 + $0x7a] sm:$0xff]
        %v4440 = vld [vmem:[%s3820 + $0x82] sm:$0xff]
        %v4441 = vld [vmem:[%s3820 + $0x92] sm:$0xff]
        %v4442 = vld [vmem:[%s3820 + $0x9a] sm:$0xff]
        %v4443 = vld [vmem:[%s3820 + $0xaa] sm:$0xff]
        %v4444 = vld [vmem:[%s3820 + $0xb2] sm:$0xff]
        %v4445 = vld [vmem:[%s3820 + $0xc2] sm:$0xff]
        %v4446 = vld [vmem:[%s3820 + $0xca] sm:$0xff]
        %v4447 = vld [vmem:[%s3820 + $0xda] sm:$0xff]
        %v4448 = vld [vmem:[%s3820 + $0xe2] sm:$0xff]
        %v4449 = vld [vmem:[%s3820 + $0xf2] sm:$0xff]
        %v4450 = vld [vmem:[%s3820 + $0xfa] sm:$0xff]
        %v4451 = vld [vmem:[%s3820 + $0x10a] sm:$0xff]
        %v4452 = vld [vmem:[%s3820 + $0x112] sm:$0xff]
        %v4453 = vld [vmem:[%s3820 + $0x122] sm:$0xff]
        %v4454 = vld [vmem:[%s3820 + $0x12a] sm:$0xff]
        %v4455 = vld [vmem:[%s3820 + $0x13a] sm:$0xff]
        %v4456 = vld [vmem:[%s3820 + $0x142] sm:$0xff]
        %v4457 = vld [vmem:[%s3820 + $0x152] sm:$0xff]
        %v4458 = vld [vmem:[%s3820 + $0x15a] sm:$0xff]
        %v4459 = vld [vmem:[%s3820 + $0x16a] sm:$0xff]
        %v4460 = vld [vmem:[%s3820 + $0x172] sm:$0xff]
        %v4461 = vpack.c.bf16 %v4430, %v4429
        %v4462 = vpack.c.bf16 %v4432, %v4431
        %v4463 = vpack.c.bf16 %v4434, %v4433
        %v4464 = vpack.c.bf16 %v4436, %v4435
        %v4465 = vpack.c.bf16 %v4438, %v4437
        %v4466 = vpack.c.bf16 %v4440, %v4439
        %v4467 = vpack.c.bf16 %v4442, %v4441
        %v4468 = vpack.c.bf16 %v4444, %v4443
        %v4469 = vpack.c.bf16 %v4446, %v4445
        %v4470 = vpack.c.bf16 %v4448, %v4447
        %v4471 = vpack.c.bf16 %v4450, %v4449
        %v4472 = vpack.c.bf16 %v4452, %v4451
        %v4473 = vpack.c.bf16 %v4454, %v4453
        %v4474 = vpack.c.bf16 %v4456, %v4455
        %v4475 = vpack.c.bf16 %v4458, %v4457
        %v4476 = vpack.c.bf16 %v4460, %v4459
        %4493 = vrot.lane.b32.xlu0 %v4461, 20
        %v4494 = vpop.permute.xlu0 %4493
        %4495 = vrot.lane.b32.xlu0 %v4462, 20
        %v4496 = vpop.permute.xlu0 %4495
        %4497 = vrot.lane.b32.xlu0 %v4463, 20
        %v4498 = vpop.permute.xlu0 %4497
        %4499 = vrot.lane.b32.xlu0 %v4464, 20
        %v4500 = vpop.permute.xlu0 %4499
        %4501 = vrot.lane.b32.xlu0 %v4465, 20
        %v4502 = vpop.permute.xlu0 %4501
        %4503 = vrot.lane.b32.xlu0 %v4466, 20
        %v4504 = vpop.permute.xlu0 %4503
        %4505 = vrot.lane.b32.xlu0 %v4467, 20
        %v4506 = vpop.permute.xlu0 %4505
        %4507 = vrot.lane.b32.xlu0 %v4468, 20
        %v4508 = vpop.permute.xlu0 %4507
        %4509 = vrot.lane.b32.xlu0 %v4469, 20
        %v4510 = vpop.permute.xlu0 %4509
        %4511 = vrot.lane.b32.xlu0 %v4470, 20
        %v4512 = vpop.permute.xlu0 %4511
        %4513 = vrot.lane.b32.xlu0 %v4471, 20
        %v4514 = vpop.permute.xlu0 %4513
        %4515 = vrot.lane.b32.xlu0 %v4472, 20
        %v4516 = vpop.permute.xlu0 %4515
        %4517 = vrot.lane.b32.xlu0 %v4473, 20
        %v4518 = vpop.permute.xlu0 %4517
        %4519 = vrot.lane.b32.xlu0 %v4474, 20
        %v4520 = vpop.permute.xlu0 %4519
        %4521 = vrot.lane.b32.xlu0 %v4475, 20
        %v4522 = vpop.permute.xlu0 %4521
        %4523 = vrot.lane.b32.xlu0 %v4476, 20
        %v4524 = vpop.permute.xlu0 %4523
        %4541 = vst.msk [vmem:[#allocation5] sm:$0xff] %vm1068, %v4494
        %4542 = vst.msk [vmem:[#allocation5 + $0x8] sm:$0xff] %vm1068, %v4496
        %4543 = vst.msk [vmem:[#allocation5 + $0x10] sm:$0xff] %vm1068, %v4498
        %4544 = vst.msk [vmem:[#allocation5 + $0x18] sm:$0xff] %vm1068, %v4500
        %4545 = vst.msk [vmem:[#allocation5 + $0x20] sm:$0xff] %vm1068, %v4502
        %4546 = vst.msk [vmem:[#allocation5 + $0x28] sm:$0xff] %vm1068, %v4504
        %4547 = vst.msk [vmem:[#allocation5 + $0x30] sm:$0xff] %vm1068, %v4506
        %4548 = vst.msk [vmem:[#allocation5 + $0x38] sm:$0xff] %vm1068, %v4508
        %4549 = vst.msk [vmem:[#allocation5 + $0x40] sm:$0xff] %vm1068, %v4510
        %4550 = vst.msk [vmem:[#allocation5 + $0x48] sm:$0xff] %vm1068, %v4512
        %4551 = vst.msk [vmem:[#allocation5 + $0x50] sm:$0xff] %vm1068, %v4514
        %4552 = vst.msk [vmem:[#allocation5 + $0x58] sm:$0xff] %vm1068, %v4516
        %4553 = vst.msk [vmem:[#allocation5 + $0x60] sm:$0xff] %vm1068, %v4518
        %4554 = vst.msk [vmem:[#allocation5 + $0x68] sm:$0xff] %vm1068, %v4520
        %4555 = vst.msk [vmem:[#allocation5 + $0x70] sm:$0xff] %vm1068, %v4522
        %4556 = vst.msk [vmem:[#allocation5 + $0x78] sm:$0xff] %vm1068, %v4524
        %s4557 = scalar_lea.vmem [#allocation3], 48
        %v4558 = vld [vmem:[%s4557] sm:$0xff]
        %v4559 = vld [vmem:[%s4557 + $0x8] sm:$0xff]
        %v4560 = vld [vmem:[%s4557 + $0x18] sm:$0xff]
        %v4561 = vld [vmem:[%s4557 + $0x20] sm:$0xff]
        %v4562 = vld [vmem:[%s4557 + $0x30] sm:$0xff]
        %v4563 = vld [vmem:[%s4557 + $0x38] sm:$0xff]
        %v4564 = vld [vmem:[%s4557 + $0x48] sm:$0xff]
        %v4565 = vld [vmem:[%s4557 + $0x50] sm:$0xff]
        %v4566 = vld [vmem:[%s4557 + $0x60] sm:$0xff]
        %v4567 = vld [vmem:[%s4557 + $0x68] sm:$0xff]
        %v4568 = vld [vmem:[%s4557 + $0x78] sm:$0xff]
        %v4569 = vld [vmem:[%s4557 + $0x80] sm:$0xff]
        %v4570 = vld [vmem:[%s4557 + $0x90] sm:$0xff]
        %v4571 = vld [vmem:[%s4557 + $0x98] sm:$0xff]
        %v4572 = vld [vmem:[%s4557 + $0xa8] sm:$0xff]
        %v4573 = vld [vmem:[%s4557 + $0xb0] sm:$0xff]
        %v4574 = vld [vmem:[%s4557 + $0xc0] sm:$0xff]
        %v4575 = vld [vmem:[%s4557 + $0xc8] sm:$0xff]
        %v4576 = vld [vmem:[%s4557 + $0xd8] sm:$0xff]
        %v4577 = vld [vmem:[%s4557 + $0xe0] sm:$0xff]
        %v4578 = vld [vmem:[%s4557 + $0xf0] sm:$0xff]
        %v4579 = vld [vmem:[%s4557 + $0xf8] sm:$0xff]
        %v4580 = vld [vmem:[%s4557 + $0x108] sm:$0xff]
        %v4581 = vld [vmem:[%s4557 + $0x110] sm:$0xff]
        %v4582 = vld [vmem:[%s4557 + $0x120] sm:$0xff]
        %v4583 = vld [vmem:[%s4557 + $0x128] sm:$0xff]
        %v4584 = vld [vmem:[%s4557 + $0x138] sm:$0xff]
        %v4585 = vld [vmem:[%s4557 + $0x140] sm:$0xff]
        %v4586 = vld [vmem:[%s4557 + $0x150] sm:$0xff]
        %v4587 = vld [vmem:[%s4557 + $0x158] sm:$0xff]
        %v4588 = vld [vmem:[%s4557 + $0x168] sm:$0xff]
        %v4589 = vld [vmem:[%s4557 + $0x170] sm:$0xff]
        %v4590 = vpack.c.bf16 %v4559, %v4558
        %v4591 = vpack.c.bf16 %v4561, %v4560
        %v4592 = vpack.c.bf16 %v4563, %v4562
        %v4593 = vpack.c.bf16 %v4565, %v4564
        %v4594 = vpack.c.bf16 %v4567, %v4566
        %v4595 = vpack.c.bf16 %v4569, %v4568
        %v4596 = vpack.c.bf16 %v4571, %v4570
        %v4597 = vpack.c.bf16 %v4573, %v4572
        %v4598 = vpack.c.bf16 %v4575, %v4574
        %v4599 = vpack.c.bf16 %v4577, %v4576
        %v4600 = vpack.c.bf16 %v4579, %v4578
        %v4601 = vpack.c.bf16 %v4581, %v4580
        %v4602 = vpack.c.bf16 %v4583, %v4582
        %v4603 = vpack.c.bf16 %v4585, %v4584
        %v4604 = vpack.c.bf16 %v4587, %v4586
        %v4605 = vpack.c.bf16 %v4589, %v4588
        %4622 = vrot.lane.b32.xlu0 %v4590, 24
        %v4623 = vpop.permute.xlu0 %4622
        %4624 = vrot.lane.b32.xlu0 %v4591, 24
        %v4625 = vpop.permute.xlu0 %4624
        %4626 = vrot.lane.b32.xlu0 %v4592, 24
        %v4627 = vpop.permute.xlu0 %4626
        %4628 = vrot.lane.b32.xlu0 %v4593, 24
        %v4629 = vpop.permute.xlu0 %4628
        %4630 = vrot.lane.b32.xlu0 %v4594, 24
        %v4631 = vpop.permute.xlu0 %4630
        %4632 = vrot.lane.b32.xlu0 %v4595, 24
        %v4633 = vpop.permute.xlu0 %4632
        %4634 = vrot.lane.b32.xlu0 %v4596, 24
        %v4635 = vpop.permute.xlu0 %4634
        %4636 = vrot.lane.b32.xlu0 %v4597, 24
        %v4637 = vpop.permute.xlu0 %4636
        %4638 = vrot.lane.b32.xlu0 %v4598, 24
        %v4639 = vpop.permute.xlu0 %4638
        %4640 = vrot.lane.b32.xlu0 %v4599, 24
        %v4641 = vpop.permute.xlu0 %4640
        %4642 = vrot.lane.b32.xlu0 %v4600, 24
        %v4643 = vpop.permute.xlu0 %4642
        %4644 = vrot.lane.b32.xlu0 %v4601, 24
        %v4645 = vpop.permute.xlu0 %4644
        %4646 = vrot.lane.b32.xlu0 %v4602, 24
        %v4647 = vpop.permute.xlu0 %4646
        %4648 = vrot.lane.b32.xlu0 %v4603, 24
        %v4649 = vpop.permute.xlu0 %4648
        %4650 = vrot.lane.b32.xlu0 %v4604, 24
        %v4651 = vpop.permute.xlu0 %4650
        %4652 = vrot.lane.b32.xlu0 %v4605, 24
        %v4653 = vpop.permute.xlu0 %4652
        %4670 = vst.msk [vmem:[#allocation5] sm:$0xff] %vm1197, %v4623
        %4671 = vst.msk [vmem:[#allocation5 + $0x8] sm:$0xff] %vm1197, %v4625
        %4672 = vst.msk [vmem:[#allocation5 + $0x10] sm:$0xff] %vm1197, %v4627
        %4673 = vst.msk [vmem:[#allocation5 + $0x18] sm:$0xff] %vm1197, %v4629
        %4674 = vst.msk [vmem:[#allocation5 + $0x20] sm:$0xff] %vm1197, %v4631
        %4675 = vst.msk [vmem:[#allocation5 + $0x28] sm:$0xff] %vm1197, %v4633
        %4676 = vst.msk [vmem:[#allocation5 + $0x30] sm:$0xff] %vm1197, %v4635
        %4677 = vst.msk [vmem:[#allocation5 + $0x38] sm:$0xff] %vm1197, %v4637
        %4678 = vst.msk [vmem:[#allocation5 + $0x40] sm:$0xff] %vm1197, %v4639
        %4679 = vst.msk [vmem:[#allocation5 + $0x48] sm:$0xff] %vm1197, %v4641
        %4680 = vst.msk [vmem:[#allocation5 + $0x50] sm:$0xff] %vm1197, %v4643
        %4681 = vst.msk [vmem:[#allocation5 + $0x58] sm:$0xff] %vm1197, %v4645
        %4682 = vst.msk [vmem:[#allocation5 + $0x60] sm:$0xff] %vm1197, %v4647
        %4683 = vst.msk [vmem:[#allocation5 + $0x68] sm:$0xff] %vm1197, %v4649
        %4684 = vst.msk [vmem:[#allocation5 + $0x70] sm:$0xff] %vm1197, %v4651
        %4685 = vst.msk [vmem:[#allocation5 + $0x78] sm:$0xff] %vm1197, %v4653
        %v4686 = vld [vmem:[%s4557 + $0x1] sm:$0xff]
        %v4687 = vld [vmem:[%s4557 + $0x9] sm:$0xff]
        %v4688 = vld [vmem:[%s4557 + $0x19] sm:$0xff]
        %v4689 = vld [vmem:[%s4557 + $0x21] sm:$0xff]
        %v4690 = vld [vmem:[%s4557 + $0x31] sm:$0xff]
        %v4691 = vld [vmem:[%s4557 + $0x39] sm:$0xff]
        %v4692 = vld [vmem:[%s4557 + $0x49] sm:$0xff]
        %v4693 = vld [vmem:[%s4557 + $0x51] sm:$0xff]
        %v4694 = vld [vmem:[%s4557 + $0x61] sm:$0xff]
        %v4695 = vld [vmem:[%s4557 + $0x69] sm:$0xff]
        %v4696 = vld [vmem:[%s4557 + $0x79] sm:$0xff]
        %v4697 = vld [vmem:[%s4557 + $0x81] sm:$0xff]
        %v4698 = vld [vmem:[%s4557 + $0x91] sm:$0xff]
        %v4699 = vld [vmem:[%s4557 + $0x99] sm:$0xff]
        %v4700 = vld [vmem:[%s4557 + $0xa9] sm:$0xff]
        %v4701 = vld [vmem:[%s4557 + $0xb1] sm:$0xff]
        %v4702 = vld [vmem:[%s4557 + $0xc1] sm:$0xff]
        %v4703 = vld [vmem:[%s4557 + $0xc9] sm:$0xff]
        %v4704 = vld [vmem:[%s4557 + $0xd9] sm:$0xff]
        %v4705 = vld [vmem:[%s4557 + $0xe1] sm:$0xff]
        %v4706 = vld [vmem:[%s4557 + $0xf1] sm:$0xff]
        %v4707 = vld [vmem:[%s4557 + $0xf9] sm:$0xff]
        %v4708 = vld [vmem:[%s4557 + $0x109] sm:$0xff]
        %v4709 = vld [vmem:[%s4557 + $0x111] sm:$0xff]
        %v4710 = vld [vmem:[%s4557 + $0x121] sm:$0xff]
        %v4711 = vld [vmem:[%s4557 + $0x129] sm:$0xff]
        %v4712 = vld [vmem:[%s4557 + $0x139] sm:$0xff]
        %v4713 = vld [vmem:[%s4557 + $0x141] sm:$0xff]
        %v4714 = vld [vmem:[%s4557 + $0x151] sm:$0xff]
        %v4715 = vld [vmem:[%s4557 + $0x159] sm:$0xff]
        %v4716 = vld [vmem:[%s4557 + $0x169] sm:$0xff]
        %v4717 = vld [vmem:[%s4557 + $0x171] sm:$0xff]
        %v4718 = vpack.c.bf16 %v4687, %v4686
        %v4719 = vpack.c.bf16 %v4689, %v4688
        %v4720 = vpack.c.bf16 %v4691, %v4690
        %v4721 = vpack.c.bf16 %v4693, %v4692
        %v4722 = vpack.c.bf16 %v4695, %v4694
        %v4723 = vpack.c.bf16 %v4697, %v4696
        %v4724 = vpack.c.bf16 %v4699, %v4698
        %v4725 = vpack.c.bf16 %v4701, %v4700
        %v4726 = vpack.c.bf16 %v4703, %v4702
        %v4727 = vpack.c.bf16 %v4705, %v4704
        %v4728 = vpack.c.bf16 %v4707, %v4706
        %v4729 = vpack.c.bf16 %v4709, %v4708
        %v4730 = vpack.c.bf16 %v4711, %v4710
        %v4731 = vpack.c.bf16 %v4713, %v4712
        %v4732 = vpack.c.bf16 %v4715, %v4714
        %v4733 = vpack.c.bf16 %v4717, %v4716
        %4750 = vrot.lane.b32.xlu0 %v4718, 28
        %v4751 = vpop.permute.xlu0 %4750
        %4752 = vrot.lane.b32.xlu0 %v4719, 28
        %v4753 = vpop.permute.xlu0 %4752
        %4754 = vrot.lane.b32.xlu0 %v4720, 28
        %v4755 = vpop.permute.xlu0 %4754
        %4756 = vrot.lane.b32.xlu0 %v4721, 28
        %v4757 = vpop.permute.xlu0 %4756
        %4758 = vrot.lane.b32.xlu0 %v4722, 28
        %v4759 = vpop.permute.xlu0 %4758
        %4760 = vrot.lane.b32.xlu0 %v4723, 28
        %v4761 = vpop.permute.xlu0 %4760
        %4762 = vrot.lane.b32.xlu0 %v4724, 28
        %v4763 = vpop.permute.xlu0 %4762
        %4764 = vrot.lane.b32.xlu0 %v4725, 28
        %v4765 = vpop.permute.xlu0 %4764
        %4766 = vrot.lane.b32.xlu0 %v4726, 28
        %v4767 = vpop.permute.xlu0 %4766
        %4768 = vrot.lane.b32.xlu0 %v4727, 28
        %v4769 = vpop.permute.xlu0 %4768
        %4770 = vrot.lane.b32.xlu0 %v4728, 28
        %v4771 = vpop.permute.xlu0 %4770
        %4772 = vrot.lane.b32.xlu0 %v4729, 28
        %v4773 = vpop.permute.xlu0 %4772
        %4774 = vrot.lane.b32.xlu0 %v4730, 28
        %v4775 = vpop.permute.xlu0 %4774
        %4776 = vrot.lane.b32.xlu0 %v4731, 28
        %v4777 = vpop.permute.xlu0 %4776
        %4778 = vrot.lane.b32.xlu0 %v4732, 28
        %v4779 = vpop.permute.xlu0 %4778
        %4780 = vrot.lane.b32.xlu0 %v4733, 28
        %v4781 = vpop.permute.xlu0 %4780
        %4798 = vst.msk [vmem:[#allocation5] sm:$0xff] %vm1326, %v4751
        %4799 = vst.msk [vmem:[#allocation5 + $0x8] sm:$0xff] %vm1326, %v4753
        %4800 = vst.msk [vmem:[#allocation5 + $0x10] sm:$0xff] %vm1326, %v4755
        %4801 = vst.msk [vmem:[#allocation5 + $0x18] sm:$0xff] %vm1326, %v4757
        %4802 = vst.msk [vmem:[#allocation5 + $0x20] sm:$0xff] %vm1326, %v4759
        %4803 = vst.msk [vmem:[#allocation5 + $0x28] sm:$0xff] %vm1326, %v4761
        %4804 = vst.msk [vmem:[#allocation5 + $0x30] sm:$0xff] %vm1326, %v4763
        %4805 = vst.msk [vmem:[#allocation5 + $0x38] sm:$0xff] %vm1326, %v4765
        %4806 = vst.msk [vmem:[#allocation5 + $0x40] sm:$0xff] %vm1326, %v4767
        %4807 = vst.msk [vmem:[#allocation5 + $0x48] sm:$0xff] %vm1326, %v4769
        %4808 = vst.msk [vmem:[#allocation5 + $0x50] sm:$0xff] %vm1326, %v4771
        %4809 = vst.msk [vmem:[#allocation5 + $0x58] sm:$0xff] %vm1326, %v4773
        %4810 = vst.msk [vmem:[#allocation5 + $0x60] sm:$0xff] %vm1326, %v4775
        %4811 = vst.msk [vmem:[#allocation5 + $0x68] sm:$0xff] %vm1326, %v4777
        %4812 = vst.msk [vmem:[#allocation5 + $0x70] sm:$0xff] %vm1326, %v4779
        %4813 = vst.msk [vmem:[#allocation5 + $0x78] sm:$0xff] %vm1326, %v4781
        %v4814 = vld [vmem:[%s4557 + $0x2] sm:$0xff]
        %v4815 = vld [vmem:[%s4557 + $0xa] sm:$0xff]
        %v4816 = vld [vmem:[%s4557 + $0x1a] sm:$0xff]
        %v4817 = vld [vmem:[%s4557 + $0x22] sm:$0xff]
        %v4818 = vld [vmem:[%s4557 + $0x32] sm:$0xff]
        %v4819 = vld [vmem:[%s4557 + $0x3a] sm:$0xff]
        %v4820 = vld [vmem:[%s4557 + $0x4a] sm:$0xff]
        %v4821 = vld [vmem:[%s4557 + $0x52] sm:$0xff]
        %v4822 = vld [vmem:[%s4557 + $0x62] sm:$0xff]
        %v4823 = vld [vmem:[%s4557 + $0x6a] sm:$0xff]
        %v4824 = vld [vmem:[%s4557 + $0x7a] sm:$0xff]
        %v4825 = vld [vmem:[%s4557 + $0x82] sm:$0xff]
        %v4826 = vld [vmem:[%s4557 + $0x92] sm:$0xff]
        %v4827 = vld [vmem:[%s4557 + $0x9a] sm:$0xff]
        %v4828 = vld [vmem:[%s4557 + $0xaa] sm:$0xff]
        %v4829 = vld [vmem:[%s4557 + $0xb2] sm:$0xff]
        %v4830 = vld [vmem:[%s4557 + $0xc2] sm:$0xff]
        %v4831 = vld [vmem:[%s4557 + $0xca] sm:$0xff]
        %v4832 = vld [vmem:[%s4557 + $0xda] sm:$0xff]
        %v4833 = vld [vmem:[%s4557 + $0xe2] sm:$0xff]
        %v4834 = vld [vmem:[%s4557 + $0xf2] sm:$0xff]
        %v4835 = vld [vmem:[%s4557 + $0xfa] sm:$0xff]
        %v4836 = vld [vmem:[%s4557 + $0x10a] sm:$0xff]
        %v4837 = vld [vmem:[%s4557 + $0x112] sm:$0xff]
        %v4838 = vld [vmem:[%s4557 + $0x122] sm:$0xff]
        %v4839 = vld [vmem:[%s4557 + $0x12a] sm:$0xff]
        %v4840 = vld [vmem:[%s4557 + $0x13a] sm:$0xff]
        %v4841 = vld [vmem:[%s4557 + $0x142] sm:$0xff]
        %v4842 = vld [vmem:[%s4557 + $0x152] sm:$0xff]
        %v4843 = vld [vmem:[%s4557 + $0x15a] sm:$0xff]
        %v4844 = vld [vmem:[%s4557 + $0x16a] sm:$0xff]
        %v4845 = vld [vmem:[%s4557 + $0x172] sm:$0xff]
        %v4846 = vpack.c.bf16 %v4815, %v4814
        %v4847 = vpack.c.bf16 %v4817, %v4816
        %v4848 = vpack.c.bf16 %v4819, %v4818
        %v4849 = vpack.c.bf16 %v4821, %v4820
        %v4850 = vpack.c.bf16 %v4823, %v4822
        %v4851 = vpack.c.bf16 %v4825, %v4824
        %v4852 = vpack.c.bf16 %v4827, %v4826
        %v4853 = vpack.c.bf16 %v4829, %v4828
        %v4854 = vpack.c.bf16 %v4831, %v4830
        %v4855 = vpack.c.bf16 %v4833, %v4832
        %v4856 = vpack.c.bf16 %v4835, %v4834
        %v4857 = vpack.c.bf16 %v4837, %v4836
        %v4858 = vpack.c.bf16 %v4839, %v4838
        %v4859 = vpack.c.bf16 %v4841, %v4840
        %v4860 = vpack.c.bf16 %v4843, %v4842
        %v4861 = vpack.c.bf16 %v4845, %v4844
        %4878 = vrot.lane.b32.xlu0 %v4846, 32
        %v4879 = vpop.permute.xlu0 %4878
        %4880 = vrot.lane.b32.xlu0 %v4847, 32
        %v4881 = vpop.permute.xlu0 %4880
        %4882 = vrot.lane.b32.xlu0 %v4848, 32
        %v4883 = vpop.permute.xlu0 %4882
        %4884 = vrot.lane.b32.xlu0 %v4849, 32
        %v4885 = vpop.permute.xlu0 %4884
        %4886 = vrot.lane.b32.xlu0 %v4850, 32
        %v4887 = vpop.permute.xlu0 %4886
        %4888 = vrot.lane.b32.xlu0 %v4851, 32
        %v4889 = vpop.permute.xlu0 %4888
        %4890 = vrot.lane.b32.xlu0 %v4852, 32
        %v4891 = vpop.permute.xlu0 %4890
        %4892 = vrot.lane.b32.xlu0 %v4853, 32
        %v4893 = vpop.permute.xlu0 %4892
        %4894 = vrot.lane.b32.xlu0 %v4854, 32
        %v4895 = vpop.permute.xlu0 %4894
        %4896 = vrot.lane.b32.xlu0 %v4855, 32
        %v4897 = vpop.permute.xlu0 %4896
        %4898 = vrot.lane.b32.xlu0 %v4856, 32
        %v4899 = vpop.permute.xlu0 %4898
        %4900 = vrot.lane.b32.xlu0 %v4857, 32
        %v4901 = vpop.permute.xlu0 %4900
        %4902 = vrot.lane.b32.xlu0 %v4858, 32
        %v4903 = vpop.permute.xlu0 %4902
        %4904 = vrot.lane.b32.xlu0 %v4859, 32
        %v4905 = vpop.permute.xlu0 %4904
        %4906 = vrot.lane.b32.xlu0 %v4860, 32
        %v4907 = vpop.permute.xlu0 %4906
        %4908 = vrot.lane.b32.xlu0 %v4861, 32
        %v4909 = vpop.permute.xlu0 %4908
        %4926 = vst.msk [vmem:[#allocation5] sm:$0xff] %vm1455, %v4879
        %4927 = vst.msk [vmem:[#allocation5 + $0x8] sm:$0xff] %vm1455, %v4881
        %4928 = vst.msk [vmem:[#allocation5 + $0x10] sm:$0xff] %vm1455, %v4883
        %4929 = vst.msk [vmem:[#allocation5 + $0x18] sm:$0xff] %vm1455, %v4885
        %4930 = vst.msk [vmem:[#allocation5 + $0x20] sm:$0xff] %vm1455, %v4887
        %4931 = vst.msk [vmem:[#allocation5 + $0x28] sm:$0xff] %vm1455, %v4889
        %4932 = vst.msk [vmem:[#allocation5 + $0x30] sm:$0xff] %vm1455, %v4891
        %4933 = vst.msk [vmem:[#allocation5 + $0x38] sm:$0xff] %vm1455, %v4893
        %4934 = vst.msk [vmem:[#allocation5 + $0x40] sm:$0xff] %vm1455, %v4895
        %4935 = vst.msk [vmem:[#allocation5 + $0x48] sm:$0xff] %vm1455, %v4897
        %4936 = vst.msk [vmem:[#allocation5 + $0x50] sm:$0xff] %vm1455, %v4899
        %4937 = vst.msk [vmem:[#allocation5 + $0x58] sm:$0xff] %vm1455, %v4901
        %4938 = vst.msk [vmem:[#allocation5 + $0x60] sm:$0xff] %vm1455, %v4903
        %4939 = vst.msk [vmem:[#allocation5 + $0x68] sm:$0xff] %vm1455, %v4905
        %4940 = vst.msk [vmem:[#allocation5 + $0x70] sm:$0xff] %vm1455, %v4907
        %4941 = vst.msk [vmem:[#allocation5 + $0x78] sm:$0xff] %vm1455, %v4909
        %v4942 = vld [vmem:[#allocation5] sm:$0xff]
        %v4943 = vld [vmem:[#allocation5 + $0x8] sm:$0xff]
        %v4944 = vld [vmem:[#allocation5 + $0x10] sm:$0xff]
        %v4945 = vld [vmem:[#allocation5 + $0x18] sm:$0xff]
        %v4946 = vld [vmem:[#allocation5 + $0x20] sm:$0xff]
        %v4947 = vld [vmem:[#allocation5 + $0x28] sm:$0xff]
        %v4948 = vld [vmem:[#allocation5 + $0x30] sm:$0xff]
        %v4949 = vld [vmem:[#allocation5 + $0x38] sm:$0xff]
        %v4950 = vld [vmem:[#allocation5 + $0x40] sm:$0xff]
        %v4951 = vld [vmem:[#allocation5 + $0x48] sm:$0xff]
        %v4952 = vld [vmem:[#allocation5 + $0x50] sm:$0xff]
        %v4953 = vld [vmem:[#allocation5 + $0x58] sm:$0xff]
        %v4954 = vld [vmem:[#allocation5 + $0x60] sm:$0xff]
        %v4955 = vld [vmem:[#allocation5 + $0x68] sm:$0xff]
        %v4956 = vld [vmem:[#allocation5 + $0x70] sm:$0xff]
        %v4957 = vld [vmem:[#allocation5 + $0x78] sm:$0xff]
        %v4958 = vld [vmem:[%s2] sm:$0xf]
        %v4959 = vld [vmem:[%s2 + $0x4] sm:$0xf]
        %v4960 = vld [vmem:[%s2 + $0x8] sm:$0xf]
        %v4961 = vld [vmem:[%s2 + $0xc] sm:$0xf]
        %v4962 = vld [vmem:[%s2 + $0x10] sm:$0x3]
        %v4968 = vunpack.c.l.b16 %v4958
        %v4969 = vunpack.c.l.b16 %v4959
        %v4970 = vunpack.c.l.b16 %v4960
        %v4971 = vunpack.c.l.b16 %v4961
        %v4972 = vunpack.c.l.b16 %v4962
        %v4973 = vpack.c.b16 %v4969, %v4968
        %v4974 = vpack.c.b16 %v4971, %v4970
        %v4975 = vpack.c.b16 %v4972, %v4972
        %vm4978 = vcmask 293888
        %v4980 = vsel %vm4978, %v4942, 0
        %v4983 = vsel %vm4978, %v4943, 0
        %v4986 = vsel %vm4978, %v4944, 0
        %v4989 = vsel %vm4978, %v4945, 0
        %v4992 = vsel %vm4978, %v4946, 0
        %v4995 = vsel %vm4978, %v4947, 0
        %v4998 = vsel %vm4978, %v4948, 0
        %v5001 = vsel %vm4978, %v4949, 0
        %v5004 = vsel %vm4978, %v4950, 0
        %v5007 = vsel %vm4978, %v4951, 0
        %v5010 = vsel %vm4978, %v4952, 0
        %v5013 = vsel %vm4978, %v4953, 0
        %v5016 = vsel %vm4978, %v4954, 0
        %v5019 = vsel %vm4978, %v4955, 0
        %v5022 = vsel %vm4978, %v4956, 0
        %v5025 = vsel %vm4978, %v4957, 0
        %v5028 = vsel %vm3655, %v4975, 0
        %5030 = vmatprep.subr.bf16.mxu0 0
        %5031 = vmatpush1.bf16.msra.mxu0 %v4973
        %5032 = vmatprep.subr.bf16.mxu0 0
        %5033 = vmatpush1.bf16.msra.mxu0 %v4974
        %5034 = vmatprep.subr.bf16.mxu0 0
        %5035 = vmatpush1.bf16.msra.mxu0 %v5028
        %5036 = vmatprep.subr.bf16.mxu0 0
        %5037 = vmatpush1.bf16.msra.mxu0 0
        %5038 = vmatprep.subr.bf16.mxu0 0
        %5039 = vmatpush1.bf16.msra.mxu0 0
        %5040 = vmatprep.subr.bf16.mxu0 0
        %5041 = vmatpush1.bf16.msra.mxu0 0
        %5042 = vmatprep.subr.bf16.mxu0 0
        %5043 = vmatpush1.bf16.msra.mxu0 0
        %5044 = vmatprep.subr.bf16.mxu0 0
        %5045 = vmatpush1.bf16.msra.mxu0 0
        %5046 = vmatprep.subr.bf16.mxu0 0
        %5047 = vmatpush1.bf16.msra.mxu0 0
        %5048 = vmatprep.subr.bf16.mxu0 0
        %5049 = vmatpush1.bf16.msra.mxu0 0
        %5050 = vmatprep.subr.bf16.mxu0 0
        %5051 = vmatpush1.bf16.msra.mxu0 0
        %5052 = vmatprep.subr.bf16.mxu0 0
        %5053 = vmatpush1.bf16.msra.mxu0 0
        %5054 = vmatprep.subr.bf16.mxu0 0
        %5055 = vmatpush1.bf16.msra.mxu0 0
        %5056 = vmatprep.subr.bf16.mxu0 0
        %5057 = vmatpush1.bf16.msra.mxu0 0
        %5058 = vmatprep.subr.bf16.mxu0 0
        %5059 = vmatpush1.bf16.msra.mxu0 0
        %5060 = vmatprep.subr.bf16.mxu0 0
        %5061 = vmatpush1.bf16.msra.mxu0 0
        %5062 = vmatprep.mubr.bf16.mxu0 0
        %5063 = vmatmul.mubr.bf16.gmra.mrb[0].mxu0 %v4980
        %v5064 = vpop.f32.mrb[0].mxu0
        %v5065 = vadd.f32 0.0, %v5064
        %v5066 = vpop.f32.mrb[0].mxu0
        %v5067 = vpop.f32.mrb[0].mxu0
        %v5068 = vadd.f32 0.0, %v5067
        %v5069 = vpop.f32.mrb[0].mxu0
        %5070 = vmatprep.mubr.bf16.mxu0 0
        %5071 = vmatmul.mubr.bf16.gmra.mrb[0].mxu0 %v4983
        %v5072 = vpop.f32.mrb[0].mxu0
        %v5073 = vadd.f32 0.0, %v5072
        %v5074 = vpop.f32.mrb[0].mxu0
        %v5075 = vpop.f32.mrb[0].mxu0
        %v5076 = vadd.f32 0.0, %v5075
        %v5077 = vpop.f32.mrb[0].mxu0
        %5078 = vmatprep.mubr.bf16.mxu0 0
        %5079 = vmatmul.mubr.bf16.gmra.mrb[0].mxu0 %v4986
        %v5080 = vpop.f32.mrb[0].mxu0
        %v5081 = vadd.f32 0.0, %v5080
        %v5082 = vpop.f32.mrb[0].mxu0
        %v5083 = vpop.f32.mrb[0].mxu0
        %v5084 = vadd.f32 0.0, %v5083
        %v5085 = vpop.f32.mrb[0].mxu0
        %5086 = vmatprep.mubr.bf16.mxu0 0
        %5087 = vmatmul.mubr.bf16.gmra.mrb[0].mxu0 %v4989
        %v5088 = vpop.f32.mrb[0].mxu0
        %v5089 = vadd.f32 0.0, %v5088
        %v5090 = vpop.f32.mrb[0].mxu0
        %v5091 = vpop.f32.mrb[0].mxu0
        %v5092 = vadd.f32 0.0, %v5091
        %v5093 = vpop.f32.mrb[0].mxu0
        %5094 = vmatprep.mubr.bf16.mxu0 0
        %5095 = vmatmul.mubr.bf16.gmra.mrb[0].mxu0 %v4992
        %v5096 = vpop.f32.mrb[0].mxu0
        %v5097 = vadd.f32 0.0, %v5096
        %v5098 = vpop.f32.mrb[0].mxu0
        %v5099 = vpop.f32.mrb[0].mxu0
        %v5100 = vadd.f32 0.0, %v5099
        %v5101 = vpop.f32.mrb[0].mxu0
        %5102 = vmatprep.mubr.bf16.mxu0 0
        %5103 = vmatmul.mubr.bf16.gmra.mrb[0].mxu0 %v4995
        %v5104 = vpop.f32.mrb[0].mxu0
        %v5105 = vadd.f32 0.0, %v5104
        %v5106 = vpop.f32.mrb[0].mxu0
        %v5107 = vpop.f32.mrb[0].mxu0
        %v5108 = vadd.f32 0.0, %v5107
        %v5109 = vpop.f32.mrb[0].mxu0
        %5110 = vmatprep.mubr.bf16.mxu0 0
        %5111 = vmatmul.mubr.bf16.gmra.mrb[0].mxu0 %v4998
        %v5112 = vpop.f32.mrb[0].mxu0
        %v5113 = vadd.f32 0.0, %v5112
        %v5114 = vpop.f32.mrb[0].mxu0
        %v5115 = vpop.f32.mrb[0].mxu0
        %v5116 = vadd.f32 0.0, %v5115
        %v5117 = vpop.f32.mrb[0].mxu0
        %5118 = vmatprep.mubr.bf16.mxu0 0
        %5119 = vmatmul.mubr.bf16.gmra.mrb[0].mxu0 %v5001
        %v5120 = vpop.f32.mrb[0].mxu0
        %v5121 = vadd.f32 0.0, %v5120
        %v5122 = vpop.f32.mrb[0].mxu0
        %v5123 = vpop.f32.mrb[0].mxu0
        %v5124 = vadd.f32 0.0, %v5123
        %v5125 = vpop.f32.mrb[0].mxu0
        %5126 = vmatprep.mubr.bf16.mxu0 0
        %5127 = vmatmul.mubr.bf16.gmra.mrb[0].mxu0 %v5004
        %v5128 = vpop.f32.mrb[0].mxu0
        %v5129 = vadd.f32 0.0, %v5128
        %v5130 = vpop.f32.mrb[0].mxu0
        %v5131 = vpop.f32.mrb[0].mxu0
        %v5132 = vadd.f32 0.0, %v5131
        %v5133 = vpop.f32.mrb[0].mxu0
        %5134 = vmatprep.mubr.bf16.mxu0 0
        %5135 = vmatmul.mubr.bf16.gmra.mrb[0].mxu0 %v5007
        %v5136 = vpop.f32.mrb[0].mxu0
        %v5137 = vadd.f32 0.0, %v5136
        %v5138 = vpop.f32.mrb[0].mxu0
        %v5139 = vpop.f32.mrb[0].mxu0
        %v5140 = vadd.f32 0.0, %v5139
        %v5141 = vpop.f32.mrb[0].mxu0
        %5142 = vmatprep.mubr.bf16.mxu0 0
        %5143 = vmatmul.mubr.bf16.gmra.mrb[0].mxu0 %v5010
        %v5144 = vpop.f32.mrb[0].mxu0
        %v5145 = vadd.f32 0.0, %v5144
        %v5146 = vpop.f32.mrb[0].mxu0
        %v5147 = vpop.f32.mrb[0].mxu0
        %v5148 = vadd.f32 0.0, %v5147
        %v5149 = vpop.f32.mrb[0].mxu0
        %5150 = vmatprep.mubr.bf16.mxu0 0
        %5151 = vmatmul.mubr.bf16.gmra.mrb[0].mxu0 %v5013
        %v5152 = vpop.f32.mrb[0].mxu0
        %v5153 = vadd.f32 0.0, %v5152
        %v5154 = vpop.f32.mrb[0].mxu0
        %v5155 = vpop.f32.mrb[0].mxu0
        %v5156 = vadd.f32 0.0, %v5155
        %v5157 = vpop.f32.mrb[0].mxu0
        %5158 = vmatprep.mubr.bf16.mxu0 0
        %5159 = vmatmul.mubr.bf16.gmra.mrb[0].mxu0 %v5016
        %v5160 = vpop.f32.mrb[0].mxu0
        %v5161 = vadd.f32 0.0, %v5160
        %v5162 = vpop.f32.mrb[0].mxu0
        %v5163 = vpop.f32.mrb[0].mxu0
        %v5164 = vadd.f32 0.0, %v5163
        %v5165 = vpop.f32.mrb[0].mxu0
        %5166 = vmatprep.mubr.bf16.mxu0 0
        %5167 = vmatmul.mubr.bf16.gmra.mrb[0].mxu0 %v5019
        %v5168 = vpop.f32.mrb[0].mxu0
        %v5169 = vadd.f32 0.0, %v5168
        %v5170 = vpop.f32.mrb[0].mxu0
        %v5171 = vpop.f32.mrb[0].mxu0
        %v5172 = vadd.f32 0.0, %v5171
        %v5173 = vpop.f32.mrb[0].mxu0
        %5174 = vmatprep.mubr.bf16.mxu0 0
        %5175 = vmatmul.mubr.bf16.gmra.mrb[0].mxu0 %v5022
        %v5176 = vpop.f32.mrb[0].mxu0
        %v5177 = vadd.f32 0.0, %v5176
        %v5178 = vpop.f32.mrb[0].mxu0
        %v5179 = vpop.f32.mrb[0].mxu0
        %v5180 = vadd.f32 0.0, %v5179
        %v5181 = vpop.f32.mrb[0].mxu0
        %5182 = vmatprep.mubr.bf16.mxu0 0
        %5183 = vmatmul.mubr.bf16.gmra.mrb[0].mxu0 %v5025
        %v5184 = vpop.f32.mrb[0].mxu0
        %v5185 = vadd.f32 0.0, %v5184
        %v5186 = vpop.f32.mrb[0].mxu0
        %v5187 = vpop.f32.mrb[0].mxu0
        %v5188 = vadd.f32 0.0, %v5187
        %v5189 = vpop.f32.mrb[0].mxu0
        %5190 = vdwg.mxu0
        %5223 = vrot.lane.b32.xlu0 %v3694, 124
        %v5224 = vpop.permute.xlu0 %5223
        %5225 = vrot.lane.b32.xlu0 %v3697, 124
        %v5226 = vpop.permute.xlu0 %5225
        %5227 = vrot.lane.b32.xlu0 %v3702, 124
        %v5228 = vpop.permute.xlu0 %5227
        %5229 = vrot.lane.b32.xlu0 %v3705, 124
        %v5230 = vpop.permute.xlu0 %5229
        %5231 = vrot.lane.b32.xlu0 %v3710, 124
        %v5232 = vpop.permute.xlu0 %5231
        %5233 = vrot.lane.b32.xlu0 %v3713, 124
        %v5234 = vpop.permute.xlu0 %5233
        %5235 = vrot.lane.b32.xlu0 %v3718, 124
        %v5236 = vpop.permute.xlu0 %5235
        %5237 = vrot.lane.b32.xlu0 %v3721, 124
        %v5238 = vpop.permute.xlu0 %5237
        %5239 = vrot.lane.b32.xlu0 %v3726, 124
        %v5240 = vpop.permute.xlu0 %5239
        %5241 = vrot.lane.b32.xlu0 %v3729, 124
        %v5242 = vpop.permute.xlu0 %5241
        %5243 = vrot.lane.b32.xlu0 %v3734, 124
        %v5244 = vpop.permute.xlu0 %5243
        %5245 = vrot.lane.b32.xlu0 %v3737, 124
        %v5246 = vpop.permute.xlu0 %5245
        %5247 = vrot.lane.b32.xlu0 %v3742, 124
        %v5248 = vpop.permute.xlu0 %5247
        %5249 = vrot.lane.b32.xlu0 %v3745, 124
        %v5250 = vpop.permute.xlu0 %5249
        %5251 = vrot.lane.b32.xlu0 %v3750, 124
        %v5252 = vpop.permute.xlu0 %5251
        %5253 = vrot.lane.b32.xlu0 %v3753, 124
        %v5254 = vpop.permute.xlu0 %5253
        %5255 = vrot.lane.b32.xlu0 %v3758, 124
        %v5256 = vpop.permute.xlu0 %5255
        %5257 = vrot.lane.b32.xlu0 %v3761, 124
        %v5258 = vpop.permute.xlu0 %5257
        %5259 = vrot.lane.b32.xlu0 %v3766, 124
        %v5260 = vpop.permute.xlu0 %5259
        %5261 = vrot.lane.b32.xlu0 %v3769, 124
        %v5262 = vpop.permute.xlu0 %5261
        %5263 = vrot.lane.b32.xlu0 %v3774, 124
        %v5264 = vpop.permute.xlu0 %5263
        %5265 = vrot.lane.b32.xlu0 %v3777, 124
        %v5266 = vpop.permute.xlu0 %5265
        %5267 = vrot.lane.b32.xlu0 %v3782, 124
        %v5268 = vpop.permute.xlu0 %5267
        %5269 = vrot.lane.b32.xlu0 %v3785, 124
        %v5270 = vpop.permute.xlu0 %5269
        %5271 = vrot.lane.b32.xlu0 %v3790, 124
        %v5272 = vpop.permute.xlu0 %5271
        %5273 = vrot.lane.b32.xlu0 %v3793, 124
        %v5274 = vpop.permute.xlu0 %5273
        %5275 = vrot.lane.b32.xlu0 %v3798, 124
        %v5276 = vpop.permute.xlu0 %5275
        %5277 = vrot.lane.b32.xlu0 %v3801, 124
        %v5278 = vpop.permute.xlu0 %5277
        %5279 = vrot.lane.b32.xlu0 %v3806, 124
        %v5280 = vpop.permute.xlu0 %5279
        %5281 = vrot.lane.b32.xlu0 %v3809, 124
        %v5282 = vpop.permute.xlu0 %5281
        %5283 = vrot.lane.b32.xlu0 %v3814, 124
        %v5284 = vpop.permute.xlu0 %5283
        %5285 = vrot.lane.b32.xlu0 %v3817, 124
        %v5286 = vpop.permute.xlu0 %5285
        %5351 = vrot.lane.b32.xlu0 %v5065, 4
        %v5352 = vpop.permute.xlu0 %5351
        %5353 = vrot.lane.b32.xlu0 %v5068, 4
        %v5354 = vpop.permute.xlu0 %5353
        %5355 = vrot.lane.b32.xlu0 %v5073, 4
        %v5356 = vpop.permute.xlu0 %5355
        %5357 = vrot.lane.b32.xlu0 %v5076, 4
        %v5358 = vpop.permute.xlu0 %5357
        %5359 = vrot.lane.b32.xlu0 %v5081, 4
        %v5360 = vpop.permute.xlu0 %5359
        %5361 = vrot.lane.b32.xlu0 %v5084, 4
        %v5362 = vpop.permute.xlu0 %5361
        %5363 = vrot.lane.b32.xlu0 %v5089, 4
        %v5364 = vpop.permute.xlu0 %5363
        %5365 = vrot.lane.b32.xlu0 %v5092, 4
        %v5366 = vpop.permute.xlu0 %5365
        %5367 = vrot.lane.b32.xlu0 %v5097, 4
        %v5368 = vpop.permute.xlu0 %5367
        %5369 = vrot.lane.b32.xlu0 %v5100, 4
        %v5370 = vpop.permute.xlu0 %5369
        %5371 = vrot.lane.b32.xlu0 %v5105, 4
        %v5372 = vpop.permute.xlu0 %5371
        %5373 = vrot.lane.b32.xlu0 %v5108, 4
        %v5374 = vpop.permute.xlu0 %5373
        %5375 = vrot.lane.b32.xlu0 %v5113, 4
        %v5376 = vpop.permute.xlu0 %5375
        %5377 = vrot.lane.b32.xlu0 %v5116, 4
        %v5378 = vpop.permute.xlu0 %5377
        %5379 = vrot.lane.b32.xlu0 %v5121, 4
        %v5380 = vpop.permute.xlu0 %5379
        %5381 = vrot.lane.b32.xlu0 %v5124, 4
        %v5382 = vpop.permute.xlu0 %5381
        %5383 = vrot.lane.b32.xlu0 %v5129, 4
        %v5384 = vpop.permute.xlu0 %5383
        %5385 = vrot.lane.b32.xlu0 %v5132, 4
        %v5386 = vpop.permute.xlu0 %5385
        %5387 = vrot.lane.b32.xlu0 %v5137, 4
        %v5388 = vpop.permute.xlu0 %5387
        %5389 = vrot.lane.b32.xlu0 %v5140, 4
        %v5390 = vpop.permute.xlu0 %5389
        %5391 = vrot.lane.b32.xlu0 %v5145, 4
        %v5392 = vpop.permute.xlu0 %5391
        %5393 = vrot.lane.b32.xlu0 %v5148, 4
        %v5394 = vpop.permute.xlu0 %5393
        %5395 = vrot.lane.b32.xlu0 %v5153, 4
        %v5396 = vpop.permute.xlu0 %5395
        %5397 = vrot.lane.b32.xlu0 %v5156, 4
        %v5398 = vpop.permute.xlu0 %5397
        %5399 = vrot.lane.b32.xlu0 %v5161, 4
        %v5400 = vpop.permute.xlu0 %5399
        %5401 = vrot.lane.b32.xlu0 %v5164, 4
        %v5402 = vpop.permute.xlu0 %5401
        %5403 = vrot.lane.b32.xlu0 %v5169, 4
        %v5404 = vpop.permute.xlu0 %5403
        %5405 = vrot.lane.b32.xlu0 %v5172, 4
        %v5406 = vpop.permute.xlu0 %5405
        %5407 = vrot.lane.b32.xlu0 %v5177, 4
        %v5408 = vpop.permute.xlu0 %5407
        %5409 = vrot.lane.b32.xlu0 %v5180, 4
        %v5410 = vpop.permute.xlu0 %5409
        %5411 = vrot.lane.b32.xlu0 %v5185, 4
        %v5412 = vpop.permute.xlu0 %5411
        %5413 = vrot.lane.b32.xlu0 %v5188, 4
        %v5414 = vpop.permute.xlu0 %5413
        %v5447 = vsel %vm342, %v5224, %v5352
        %v5448 = vsel %vm342, %v5226, %v5354
        %v5449 = vsel %vm342, %v5228, %v5356
        %v5450 = vsel %vm342, %v5230, %v5358
        %v5451 = vsel %vm342, %v5232, %v5360
        %v5452 = vsel %vm342, %v5234, %v5362
        %v5453 = vsel %vm342, %v5236, %v5364
        %v5454 = vsel %vm342, %v5238, %v5366
        %v5455 = vsel %vm342, %v5240, %v5368
        %v5456 = vsel %vm342, %v5242, %v5370
        %v5457 = vsel %vm342, %v5244, %v5372
        %v5458 = vsel %vm342, %v5246, %v5374
        %v5459 = vsel %vm342, %v5248, %v5376
        %v5460 = vsel %vm342, %v5250, %v5378
        %v5461 = vsel %vm342, %v5252, %v5380
        %v5462 = vsel %vm342, %v5254, %v5382
        %v5463 = vsel %vm342, %v5256, %v5384
        %v5464 = vsel %vm342, %v5258, %v5386
        %v5465 = vsel %vm342, %v5260, %v5388
        %v5466 = vsel %vm342, %v5262, %v5390
        %v5467 = vsel %vm342, %v5264, %v5392
        %v5468 = vsel %vm342, %v5266, %v5394
        %v5469 = vsel %vm342, %v5268, %v5396
        %v5470 = vsel %vm342, %v5270, %v5398
        %v5471 = vsel %vm342, %v5272, %v5400
        %v5472 = vsel %vm342, %v5274, %v5402
        %v5473 = vsel %vm342, %v5276, %v5404
        %v5474 = vsel %vm342, %v5278, %v5406
        %v5475 = vsel %vm342, %v5280, %v5408
        %v5476 = vsel %vm342, %v5282, %v5410
        %v5477 = vsel %vm342, %v5284, %v5412
        %v5478 = vsel %vm342, %v5286, %v5414
        %5479 = vxpose.xlu0.b32.start [1/16] %v5447, 128
        %5480 = vxpose.xlu0.b32.cont [2/16] %v5448, 128
        %5481 = vxpose.xlu0.b32.cont [3/16] %v5449, 128
        %5482 = vxpose.xlu0.b32.cont [4/16] %v5450, 128
        %5483 = vxpose.xlu0.b32.cont [5/16] %v5451, 128
        %5484 = vxpose.xlu0.b32.cont [6/16] %v5452, 128
        %5485 = vxpose.xlu0.b32.cont [7/16] %v5453, 128
        %5486 = vxpose.xlu0.b32.cont [8/16] %v5454, 128
        %5487 = vxpose.xlu0.b32.cont [9/16] %v5455, 128
        %5488 = vxpose.xlu0.b32.cont [10/16] %v5456, 128
        %5489 = vxpose.xlu0.b32.cont [11/16] %v5457, 128
        %5490 = vxpose.xlu0.b32.cont [12/16] %v5458, 128
        %5491 = vxpose.xlu0.b32.cont [13/16] %v5459, 128
        %5492 = vxpose.xlu0.b32.cont [14/16] %v5460, 128
        %5493 = vxpose.xlu0.b32.cont [15/16] %v5461, 128
        %5494 = vxpose.xlu0.b32.end [16/16] %v5462, 128
        %v5495 = vpop.trf.xlu0
        %v5496 = vpop.trf.xlu0
        %v5497 = vpop.trf.xlu0
        %v5498 = vpop.trf.xlu0
        %v5499 = vpop.trf.xlu0
        %v5500 = vpop.trf.xlu0
        %v5501 = vpop.trf.xlu0
        %v5502 = vpop.trf.xlu0
        %v5503 = vpop.trf.xlu0
        %v5504 = vpop.trf.xlu0
        %v5505 = vpop.trf.xlu0
        %v5506 = vpop.trf.xlu0
        %v5507 = vpop.trf.xlu0
        %v5508 = vpop.trf.xlu0
        %v5509 = vpop.trf.xlu0
        %v5510 = vpop.trf.xlu0
        %5511 = vxpose.xlu0.b32.start [1/16] %v5463, 128
        %5512 = vxpose.xlu0.b32.cont [2/16] %v5464, 128
        %5513 = vxpose.xlu0.b32.cont [3/16] %v5465, 128
        %5514 = vxpose.xlu0.b32.cont [4/16] %v5466, 128
        %5515 = vxpose.xlu0.b32.cont [5/16] %v5467, 128
        %5516 = vxpose.xlu0.b32.cont [6/16] %v5468, 128
        %5517 = vxpose.xlu0.b32.cont [7/16] %v5469, 128
        %5518 = vxpose.xlu0.b32.cont [8/16] %v5470, 128
        %5519 = vxpose.xlu0.b32.cont [9/16] %v5471, 128
        %5520 = vxpose.xlu0.b32.cont [10/16] %v5472, 128
        %5521 = vxpose.xlu0.b32.cont [11/16] %v5473, 128
        %5522 = vxpose.xlu0.b32.cont [12/16] %v5474, 128
        %5523 = vxpose.xlu0.b32.cont [13/16] %v5475, 128
        %5524 = vxpose.xlu0.b32.cont [14/16] %v5476, 128
        %5525 = vxpose.xlu0.b32.cont [15/16] %v5477, 128
        %5526 = vxpose.xlu0.b32.end [16/16] %v5478, 128
        %v5527 = vpop.trf.xlu0
        %v5528 = vpop.trf.xlu0
        %v5529 = vpop.trf.xlu0
        %v5530 = vpop.trf.xlu0
        %v5531 = vpop.trf.xlu0
        %v5532 = vpop.trf.xlu0
        %v5533 = vpop.trf.xlu0
        %v5534 = vpop.trf.xlu0
        %v5535 = vpop.trf.xlu0
        %v5536 = vpop.trf.xlu0
        %v5537 = vpop.trf.xlu0
        %v5538 = vpop.trf.xlu0
        %v5539 = vpop.trf.xlu0
        %v5540 = vpop.trf.xlu0
        %v5541 = vpop.trf.xlu0
        %v5542 = vpop.trf.xlu0
        %v5543 = vld [vmem:[#allocation6] sm:$0xff]
        %v5544 = vadd.f32 %v5495, %v5527
        %5545 = vadd.xlane.f32.xlu0 %v5544
        %v5546 = vpop.xlane.xlu0 %5545
        %v5547 = vadd.f32 %v5543, %v5546
        %vm5548 = vcmask 7168
        %5549 = vst.msk [vmem:[#allocation6] sm:$0xff] %vm5548, %v5547
        %v5550 = vld [vmem:[#allocation7] sm:$0xff]
        %v5551 = vmul.f32 %v5495, %v5495
        %v5552 = vmul.f32 %v5527, %v5527
        %v5553 = vadd.f32 %v5551, %v5552
        %5554 = vadd.xlane.f32.xlu0 %v5553
        %v5555 = vpop.xlane.xlu0 %5554
        %v5556 = vadd.f32 %v5550, %v5555
        %5557 = vst.msk [vmem:[#allocation7] sm:$0xff] %vm5548, %v5556
        %s5558 = smul.u32 %s16, 2
        %s5559 = smul.addr %s5558, 8
        %s5560 = scalar_lea.vmem [#allocation8], %s5559
        %5561 = vst [vmem:[%s5560] sm:$0xff] %v5495
        %5562 = vst [vmem:[%s5560 + $0x8] sm:$0xff] %v5527
        %p5563 = scmp.eq.s32.totalorder %s16, 1
        // Predicated region
        $region41: #{tpu_custom_call.1} parent=35 // pred_check
          %p5564 = pneg %p5563
        $region42: #{tpu_custom_call.1} parent=35 // pred_check_branch
          %5566 = sbr.rel (%p5564) target = $region44
        $region43: #{tpu_custom_call.1} parent=35 // pred_region
          %v5567 = vld [vmem:[#allocation6] sm:$0xff]
          %v5568 = vrcp.pop 512.0
          %v5569 = vmul.f32 %v5567, %v5568
          %v5570 = vld [vmem:[#allocation7] sm:$0xff]
          %v5571 = vmul.f32 %v5570, %v5568
          %v5572 = vmul.f32 %v5569, %v5569
          %v5573 = vsub.f32 %v5571, %v5572
          %v5574 = vadd.f32 %v5573, 1e-05
          %v5575 = vrsqrt.pop %v5574
          %v5576 = vld [vmem:[%s3] sm:$0xff]
          %v5577 = vmul.f32 %v5576, %v5575
          %v5578 = vmul.f32 %v5569, %v5577
          %5580 = vrot.lane.b32.xlu0 %v5578, 1
          %v5581 = vpop.permute.xlu0 %5580
          %v5583 = vsub.f32 %v5576, %v5581
          %v5584 = vld [vmem:[#allocation8] sm:$0xff]
          %v5585 = vld [vmem:[#allocation8 + $0x8] sm:$0xff]
          %v5586 = vld [vmem:[#allocation8 + $0x10] sm:$0xff]
          %v5587 = vld [vmem:[#allocation8 + $0x18] sm:$0xff]
          %5589 = vset.pattern.permute.xlu0 0
          %5590 = vperm.xlu0 %5589, %v5577
          %v5591 = vpop.permute.xlu0 %5590
          %v5593 = vmul.f32 %v5584, %v5591
          %v5594 = vmul.f32 %v5585, %v5591
          %v5595 = vmul.f32 %v5586, %v5591
          %v5596 = vmul.f32 %v5587, %v5591
          %5598 = vset.pattern.permute.xlu0 1
          %5599 = vperm.xlu0 %5598, %v5583
          %v5600 = vpop.permute.xlu0 %5599
          %v5602 = vadd.f32 %v5593, %v5600
          %v5603 = vadd.f32 %v5594, %v5600
          %v5604 = vadd.f32 %v5595, %v5600
          %v5605 = vadd.f32 %v5596, %v5600
          %v5606 = vmax.f32 %v5602, 0.0
          %v5607 = vmax.f32 %v5603, 0.0
          %v5608 = vmax.f32 %v5604, 0.0
          %v5609 = vmax.f32 %v5605, 0.0
          %5610 = vst [vmem:[#allocation8] sm:$0xff] %v5606
          %5611 = vst [vmem:[#allocation8 + $0x8] sm:$0xff] %v5607
          %5612 = vst [vmem:[#allocation8 + $0x10] sm:$0xff] %v5608
          %5613 = vst [vmem:[#allocation8 + $0x18] sm:$0xff] %v5609
        $region44: #{tpu_custom_call.1} parent=35 // pred_fallthru
          _
        // Predicated region
        $region45: #{tpu_custom_call.1} parent=35 // pred_check
          %p5614 = pneg %p118
        $region46: #{tpu_custom_call.1} parent=35 // pred_check_branch
          %5616 = sbr.rel (%p5614) target = $region48
        $region47: #{tpu_custom_call.1} parent=35 // pred_region
          %s5618 = ssub.s32 512, 512
          %5619 = vsyncadd [#allocation9], %s5618
          %s5620 = sshll.u32 [#allocation8], 4
          %s5621 = int_to_ptr.vmem [resolvable:$true] %s5620
          %5626 = dma.vmem_to_hbm [thread:$0]  %s5621, 512, %s4, [#allocation9], 256, 256, 16
        $region48: #{tpu_custom_call.1} parent=35 // pred_fallthru
          _
        // Predicated region
        $region49: #{tpu_custom_call.1} parent=35 // pred_check
          %p5627 = pneg %p118
        $region50: #{tpu_custom_call.1} parent=35 // pred_check_branch
          %5629 = sbr.rel (%p5627) target = $region52
        $region51: #{tpu_custom_call.1} parent=35 // pred_region
          %5630 = dma.done [#allocation9], 512
        $region52: #{tpu_custom_call.1} parent=35 // pred_fallthru
          _
      $region36: #{tpu_custom_call.1} parent=5 // pred_fallthru
        _
      %p5631 = scmp.le.s32.totalorder 2, %s11
      // Predicated region
      $region53: #{tpu_custom_call.1} parent=5 // pred_check
        %p5632 = pneg %p5631
      $region54: #{tpu_custom_call.1} parent=5 // pred_check_branch
        %5634 = sbr.rel (%p5632) target = $region56
      $region55: #{tpu_custom_call.1} parent=5 // pred_region
        %s5635 = ssub.s32 %s11, 2
      $region56: #{tpu_custom_call.1} parent=5 // pred_fallthru
        _
    $region6: #{tpu_custom_call.1} parent=1 // loop_footer
      %s15 = sadd.s32 1, %s11
    $region7: #{tpu_custom_call.1} parent=1 // loop_footer_branch
      %10 = sbr.rel target = $region3
    $region8: #{tpu_custom_call.1} parent=1 // loop_exit
      _
    %5636 = vsyncpa [#allocation9], 1
    %s5637 = scalar_lea.sflag [#allocation9], 1
    %5638 = vsyncpa %s5637, 1

</llo_original>
